<compile_context>
chip_gen: v7x
topology: tpu7x:2x2x1
jax: 0.10.0
libtpu: 0.0.40
codegen_flags: <defaults>
</compile_context>

<pallas_src>
import functools
import math

import jax
import jax.numpy as jnp
from jax.experimental import pallas as pl
from jax.experimental.pallas import tpu as pltpu


def _pad_up(n, m):
    return ((n + m - 1) // m) * m


# ----------------------------------------------------------------------------- in-kernel helpers

def _ln(x, g, b, eps=1e-5):
    # LayerNorm over last dim, f32 statistics, biased variance (matches nn.LayerNorm).
    mean = jnp.mean(x, axis=-1, keepdims=True)
    var = jnp.mean(jnp.square(x - mean), axis=-1, keepdims=True)
    return (x - mean) * jax.lax.rsqrt(var + eps) * g + b


def _mm(x, w, b=None):
    # Mixed-precision matmul: cast activations to the (bf16) weight dtype, accumulate f32.
    acc = jnp.dot(x.astype(w.dtype), w, preferred_element_type=jnp.float32)
    if b is not None:
        acc = acc + b
    return acc


# ----------------------------------------------------------------------------- fused kernel

def _hypernet_kernel(y_ref, pw_ref, pb_ref, pe_ref,
                     wqkv_ref, bqkv_ref, wo_ref, bo_ref,
                     w1_ref, b1_ref, w2_ref, b2_ref,
                     g1_ref, be1_ref, g2_ref, be2_ref,
                     dw_ref, db_ref,
                     hw_ref, hb_ref, hg_ref, hbe_ref, hwo_ref, hbo_ref,
                     cw_ref, cb_ref, cg_ref, cbe_ref, cwo_ref, cbo_ref,
                     disent_ref, hyper_ref, w_ref,
                     act_ref, *, nhead, w_valid):
    l = pl.program_id(1)
    n_layers = pl.num_programs(1)

    # ---- first layer step only: input projection + positional encoding --------------------
    @pl.when(l == 0)
    def _():
        act_ref[...] = _mm(y_ref[...], pw_ref[...], pb_ref[...]) + pe_ref[...]

    # ---- one post-norm TransformerEncoderLayer (eval / no dropout), fully VMEM-resident ----
    x = act_ref[...]                                      # (S, H) f32
    S, H = x.shape
    dh = H // nhead
    scale = 1.0 / math.sqrt(dh)

    # Q/K/V split along a non-lane axis of the stacked (3, H, H) weight.
    q = (_mm(x, wqkv_ref[0]) + bqkv_ref[0]) * scale       # (S, H) f32
    k = _mm(x, wqkv_ref[1]) + bqkv_ref[1]
    v = _mm(x, wqkv_ref[2]) + bqkv_ref[2]

    heads = []
    for h in range(nhead):                                # statically unrolled (tiny dh=H/nhead)
        sl = slice(h * dh, (h + 1) * dh)
        s = jnp.einsum("qd,kd->qk", q[:, sl], k[:, sl],
                       preferred_element_type=jnp.float32)
        m = jnp.max(s, axis=-1, keepdims=True)
        e = jnp.exp(s - m)
        p = e / jnp.sum(e, axis=-1, keepdims=True)        # exact softmax (parity with reference)
        heads.append(jnp.dot(p, v[:, sl], preferred_element_type=jnp.float32))
    attn = jnp.concatenate(heads, axis=-1)                # (S, H)
    sa = _mm(attn, wo_ref[...], bo_ref[...])              # single (S,H)@(H,H) out-projection

    x = _ln(x + sa, g1_ref[...], be1_ref[...])
    ff = jnp.maximum(_mm(x, w1_ref[...], b1_ref[...]), 0.0)
    ff = _mm(ff, w2_ref[...], b2_ref[...])
    x = _ln(x + ff, g2_ref[...], be2_ref[...])
    act_ref[...] = x                                      # carried to the next layer step

    # ---- last layer step only: disentangle projection + hyper / const MLP heads ------------
    @pl.when(l == n_layers - 1)
    def _():
        z = x[0:1, :]                                     # final_z = zs[:, 0, :]
        disent = _mm(z, dw_ref[...], db_ref[...])         # (1, 3H)
        disent_ref[...] = disent.astype(disent_ref.dtype)

        f_inv = disent[:, 0:H]                            # eval path: f_combined = f_inv
        w_ind = disent[:, 2 * H:3 * H]

        def mlp(t, w_s, b_s, g_s, be_s, wo_r, bo_r):
            for i in range(3):                            # [Linear -> LayerNorm -> ReLU] x 3
                t = _mm(t, w_s[i], b_s[i])
                t = jnp.maximum(_ln(t, g_s[i], be_s[i]), 0.0)
            return _mm(t, wo_r[...], bo_r[...])           # lane-dense (128-padded) output

        hyper_ref[...] = mlp(f_inv, hw_ref, hb_ref, hg_ref, hbe_ref,
                             hwo_ref, hbo_ref).astype(hyper_ref.dtype)

        W = mlp(w_ind, cw_ref, cb_ref, cg_ref, cbe_ref, cwo_ref, cbo_ref)
        cols = jax.lax.broadcasted_iota(jnp.int32, W.shape, 1)
        W = jnp.where(cols < (w_valid // 2), W, 0.0)      # eval masking: W[:, W//2:] = 0
        w_ref[...] = W.astype(w_ref.dtype)


# ----------------------------------------------------------------------------- pallas_call wrapper

def _fused_hypernet(y, params, w_channels, nhead):
    B, T, Cy = y.shape
    H = params["proj"]["w"].shape[1]
    L = params["wqkv"].shape[0]
    hyp, con = params["hyper"], params["const"]
    p_pad = hyp["wo"].shape[1]
    w_pad = con["wo"].shape[1]

    def rep(a):                      # replicated across the whole grid
        zeros = (0,) * a.ndim
        return pl.BlockSpec(a.shape, lambda b, l: zeros)

    def per_layer(a):                # first axis indexed by the layer grid axis
        zeros = (0,) * (a.ndim - 1)
        return pl.BlockSpec((None,) + a.shape[1:], lambda b, l: (l,) + zeros)

    pe_T = params["pe"][:T]
    args = (y, params["proj"]["w"], params["proj"]["b"], pe_T,
            params["wqkv"], params["bqkv"], params["wo"], params["bo"],
            params["w1"], params["b1"], params["w2"], params["b2"],
            params["g1"], params["be1"], params["g2"], params["be2"],
            params["disent"]["w"], params["disent"]["b"],
            hyp["w"], hyp["b"], hyp["g"], hyp["be"], hyp["wo"], hyp["bo"],
            con["w"], con["b"], con["g"], con["be"], con["wo"], con["bo"])

    in_specs = (
        [pl.BlockSpec((None, T, Cy), lambda b, l: (b, 0, 0)),
         rep(args[1]), rep(args[2]), rep(args[3])]
        + [per_layer(a) for a in args[4:16]]
        + [rep(a) for a in args[16:]]
    )

    out_shape = (jax.ShapeDtypeStruct((B, 1, 3 * H), jnp.float32),
                 jax.ShapeDtypeStruct((B, 1, p_pad), jnp.float32),
                 jax.ShapeDtypeStruct((B, 1, w_pad), jnp.float32))
    out_specs = (pl.BlockSpec((None, 1, 3 * H), lambda b, l: (b, 0, 0)),
                 pl.BlockSpec((None, 1, p_pad), lambda b, l: (b, 0, 0)),
                 pl.BlockSpec((None, 1, w_pad), lambda b, l: (b, 0, 0)))

    kern = functools.partial(_hypernet_kernel, nhead=nhead, w_valid=w_channels)
    disent, hyper_p, w_p = pl.pallas_call(
        kern,
        grid=(B, L),
        out_shape=out_shape,
        in_specs=in_specs,
        out_specs=out_specs,
        scratch_shapes=[pltpu.VMEM((T, H), jnp.float32)],   # activation carried across layers
        compiler_params=pltpu.CompilerParams(
            dimension_semantics=("parallel", "arbitrary")),
    )(*args)
    return disent[:, 0, :], hyper_p[:, 0, :], w_p[:, 0, :]


# ----------------------------------------------------------------------------- params

def _init_linear(key, in_f, out_f, w_dtype=jnp.bfloat16):
    k1, k2 = jax.random.split(key)
    bound = 1.0 / math.sqrt(in_f)
    # weight stored pre-transposed (in_f, out_f) so kernels compute x @ w.
    # NOTE: real PyTorch nn.Linear / MHA in_proj checkpoints must be transposed on load.
    w = jax.random.uniform(k1, (in_f, out_f), jnp.float32, -bound, bound).astype(w_dtype)
    b = jax.random.uniform(k2, (1, out_f), jnp.float32, -bound, bound)
    return w, b


def _init_padded_linear(key, in_f, out_f, out_pad, w_dtype=jnp.bfloat16):
    # Final head linears padded (with zero columns) to a lane-dense width; sliced in wrapper.
    w, b = _init_linear(key, in_f, out_f, jnp.float32)
    wp = jnp.zeros((in_f, out_pad), jnp.float32).at[:, :out_f].set(w).astype(w_dtype)
    bp = jnp.zeros((1, out_pad), jnp.float32).at[:, :out_f].set(b)
    return wp, bp


def _positional_encoding(max_len, hidden):
    position = jnp.arange(max_len, dtype=jnp.float32)[:, None]
    div_term = jnp.exp(jnp.arange(0, hidden, 2, dtype=jnp.float32)
                       * (-math.log(10000.0) / hidden))
    pe = jnp.zeros((max_len, hidden), jnp.float32)
    pe = pe.at[:, 0::2].set(jnp.sin(position * div_term))
    pe = pe.at[:, 1::2].set(jnp.cos(position * div_term))
    return pe


def init_hypernetwork_params(key, y_channels, hidden, w_channels, num_param,
                             num_layers=6, ff_dim=256, max_len=5000):
    keys = iter(jax.random.split(key, 256))
    p = {}
    pw, pb = _init_linear(next(keys), y_channels, hidden)
    p["proj"] = {"w": pw, "b": pb}
    p["pe"] = _positional_encoding(max_len, hidden)

    acc = {k: [] for k in ("wqkv", "bqkv", "wo", "bo", "w1", "b1", "w2", "b2",
                           "g1", "be1", "g2", "be2")}
    for _ in range(num_layers):
        wq_, bq_ = _init_linear(next(keys), hidden, hidden)
        wk_, bk_ = _init_linear(next(keys), hidden, hidden)
        wv_, bv_ = _init_linear(next(keys), hidden, hidden)
        acc["wqkv"].append(jnp.stack([wq_, wk_, wv_]))      # (3, H, H), split on non-lane axis
        acc["bqkv"].append(jnp.stack([bq_, bk_, bv_]))      # (3, 1, H)
        wo_, bo_ = _init_linear(next(keys), hidden, hidden)
        acc["wo"].append(wo_); acc["bo"].append(bo_)
        w1_, b1_ = _init_linear(next(keys), hidden, ff_dim)
        acc["w1"].append(w1_); acc["b1"].append(b1_)
        w2_, b2_ = _init_linear(next(keys), ff_dim, hidden)
        acc["w2"].append(w2_); acc["b2"].append(b2_)
        acc["g1"].append(jnp.ones((1, hidden), jnp.float32))
        acc["be1"].append(jnp.zeros((1, hidden), jnp.float32))
        acc["g2"].append(jnp.ones((1, hidden), jnp.float32))
        acc["be2"].append(jnp.zeros((1, hidden), jnp.float32))
    for k, v in acc.items():
        p[k] = jnp.stack(v)                                 # leading L axis → streamed per layer

    dw, db = _init_linear(next(keys), hidden, 3 * hidden)
    p["disent"] = {"w": dw, "b": db}

    def mlp_head(out_dim):
        ws, bs = [], []
        for _ in range(3):
            w, b = _init_linear(next(keys), hidden, hidden)
            ws.append(w); bs.append(b)
        wo_, bo_ = _init_padded_linear(next(keys), hidden, out_dim, _pad_up(out_dim, 128))
        return {"w": jnp.stack(ws), "b": jnp.stack(bs),
                "g": jnp.ones((3, 1, hidden), jnp.float32),
                "be": jnp.zeros((3, 1, hidden), jnp.float32),
                "wo": wo_, "bo": bo_}

    p["hyper"] = mlp_head(num_param)
    p["const"] = mlp_head(w_channels)
    return p


# ----------------------------------------------------------------------------- model

def hypernetwork_forward(y, params, main_param_shapes, w_channels, nhead=8):
    """Eval-mode forward: returns (params_dict, {'inv','env'}, W)."""
    B = y.shape[0]
    H = params["proj"]["w"].shape[1]

    disent, hyper_padded, w_padded = _fused_hypernet(y, params, w_channels, nhead)

    f_inv = disent[:, 0:H]
    f_env = disent[:, H:2 * H]

    num_param = sum(int(math.prod(s)) for s in main_param_shapes.values())
    params_func = hyper_padded[:, :num_param]               # strip lane padding

    # connect_buffer_to_params: slice the flat per-sample buffer into the
    # main-function parameter shapes (pointer walk), per batch element.
    params_dict = {}
    ptr = 0
    for name, shape in main_param_shapes.items():
        n = int(math.prod(shape))
        params_dict[name] = params_func[:, ptr:ptr + n].reshape((B,) + tuple(shape))
        ptr += n

    W = w_padded[:, :w_channels]                            # masking already applied in-kernel
    return params_dict, {"inv": f_inv, "env": f_env}, W


# ----------------------------------------------------------------------------- main

if __name__ == "__main__":
    B, T, Y_CH = 2, 8, 4
    HIDDEN = 64          # must be divisible by nhead=8
    W_CH = 6

    # synthetic "main_func": Linear(3,16) -> Linear(16,3); only its parameter
    # shapes matter (num_param_main_func = hyper_mlp output width).
    main_param_shapes = {
        "net.0.weight": (16, 3),
        "net.0.bias": (16,),
        "net.2.weight": (3, 16),
        "net.2.bias": (3,),
    }
    num_param = sum(int(math.prod(s)) for s in main_param_shapes.values())  # 115

    key = jax.random.PRNGKey(0)
    k_params, k_y = jax.random.split(key)
    params = init_hypernetwork_params(k_params, Y_CH, HIDDEN, W_CH, num_param)
    y = jax.random.normal(k_y, (B, T, Y_CH), jnp.float32)

    params_dict, fz, W = hypernetwork_forward(y, params, main_param_shapes, W_CH)
    jax.block_until_ready((params_dict, fz, W))

    # light sanity checks on shapes / masking semantics
    assert W.shape == (B, W_CH)
    assert bool(jnp.all(W[:, W_CH // 2:] == 0.0))
    assert fz["inv"].shape == (B, HIDDEN) and fz["env"].shape == (B, HIDDEN)
    assert params_dict["net.0.weight"].shape == (B, 16, 3)
    assert all(bool(jnp.all(jnp.isfinite(v))) for v in params_dict.values())
    assert bool(jnp.all(jnp.isfinite(fz["inv"]))) and bool(jnp.all(jnp.isfinite(W)))

    print("KERNEL_OK")
</pallas_src>

<mosaic_0001>
module attributes {stable_mosaic.version = 11 : i64} {
  func.func @_hypernet_kernel(%arg0: i32, %arg1: i32, %arg2: memref<1x8x4xf32, #tpu.memory_space<vmem>>, %arg3: memref<4x64xbf16, #tpu.memory_space<vmem>>, %arg4: memref<1x64xf32, #tpu.memory_space<vmem>>, %arg5: memref<8x64xf32, #tpu.memory_space<vmem>>, %arg6: memref<1x3x64x64xbf16, #tpu.memory_space<vmem>>, %arg7: memref<1x3x1x64xf32, #tpu.memory_space<vmem>>, %arg8: memref<1x64x64xbf16, #tpu.memory_space<vmem>>, %arg9: memref<1x1x64xf32, #tpu.memory_space<vmem>>, %arg10: memref<1x64x256xbf16, #tpu.memory_space<vmem>>, %arg11: memref<1x1x256xf32, #tpu.memory_space<vmem>>, %arg12: memref<1x256x64xbf16, #tpu.memory_space<vmem>>, %arg13: memref<1x1x64xf32, #tpu.memory_space<vmem>>, %arg14: memref<1x1x64xf32, #tpu.memory_space<vmem>>, %arg15: memref<1x1x64xf32, #tpu.memory_space<vmem>>, %arg16: memref<1x1x64xf32, #tpu.memory_space<vmem>>, %arg17: memref<1x1x64xf32, #tpu.memory_space<vmem>>, %arg18: memref<64x192xbf16, #tpu.memory_space<vmem>>, %arg19: memref<1x192xf32, #tpu.memory_space<vmem>>, %arg20: memref<3x64x64xbf16, #tpu.memory_space<vmem>>, %arg21: memref<3x1x64xf32, #tpu.memory_space<vmem>>, %arg22: memref<3x1x64xf32, #tpu.memory_space<vmem>>, %arg23: memref<3x1x64xf32, #tpu.memory_space<vmem>>, %arg24: memref<64x128xbf16, #tpu.memory_space<vmem>>, %arg25: memref<1x128xf32, #tpu.memory_space<vmem>>, %arg26: memref<3x64x64xbf16, #tpu.memory_space<vmem>>, %arg27: memref<3x1x64xf32, #tpu.memory_space<vmem>>, %arg28: memref<3x1x64xf32, #tpu.memory_space<vmem>>, %arg29: memref<3x1x64xf32, #tpu.memory_space<vmem>>, %arg30: memref<64x128xbf16, #tpu.memory_space<vmem>>, %arg31: memref<1x128xf32, #tpu.memory_space<vmem>>, %arg32: memref<1x1x192xf32, #tpu.memory_space<vmem>>, %arg33: memref<1x1x128xf32, #tpu.memory_space<vmem>>, %arg34: memref<1x1x128xf32, #tpu.memory_space<vmem>>, %arg35: memref<8x64xf32, #tpu.memory_space<vmem>>) attributes {dimension_semantics = [#tpu.dimension_semantics<parallel>, #tpu.dimension_semantics<arbitrary>], iteration_bounds = array<i64: 2, 6>, scalar_prefetch = 0 : i64, scratch_operands = 1 : i64, tpu.core_type = #tpu.core_type<tc>, window_params = [{transform_indices = @transform_0, window_bounds = array<i64: 1, 8, 4>}, {pipeline_mode = #tpu.pipeline_mode<synchronous>, transform_indices = @transform_1, window_bounds = array<i64: 4, 64>}, {pipeline_mode = #tpu.pipeline_mode<synchronous>, transform_indices = @transform_2, window_bounds = array<i64: 1, 64>}, {pipeline_mode = #tpu.pipeline_mode<synchronous>, transform_indices = @transform_3, window_bounds = array<i64: 8, 64>}, {transform_indices = @transform_4, window_bounds = array<i64: 1, 3, 64, 64>}, {transform_indices = @transform_5, window_bounds = array<i64: 1, 3, 1, 64>}, {transform_indices = @transform_6, window_bounds = array<i64: 1, 64, 64>}, {transform_indices = @transform_7, window_bounds = array<i64: 1, 1, 64>}, {transform_indices = @transform_8, window_bounds = array<i64: 1, 64, 256>}, {transform_indices = @transform_9, window_bounds = array<i64: 1, 1, 256>}, {transform_indices = @transform_10, window_bounds = array<i64: 1, 256, 64>}, {transform_indices = @transform_11, window_bounds = array<i64: 1, 1, 64>}, {transform_indices = @transform_12, window_bounds = array<i64: 1, 1, 64>}, {transform_indices = @transform_13, window_bounds = array<i64: 1, 1, 64>}, {transform_indices = @transform_14, window_bounds = array<i64: 1, 1, 64>}, {transform_indices = @transform_15, window_bounds = array<i64: 1, 1, 64>}, {pipeline_mode = #tpu.pipeline_mode<synchronous>, transform_indices = @transform_16, window_bounds = array<i64: 64, 192>}, {pipeline_mode = #tpu.pipeline_mode<synchronous>, transform_indices = @transform_17, window_bounds = array<i64: 1, 192>}, {pipeline_mode = #tpu.pipeline_mode<synchronous>, transform_indices = @transform_18, window_bounds = array<i64: 3, 64, 64>}, {pipeline_mode = #tpu.pipeline_mode<synchronous>, transform_indices = @transform_19, window_bounds = array<i64: 3, 1, 64>}, {pipeline_mode = #tpu.pipeline_mode<synchronous>, transform_indices = @transform_20, window_bounds = array<i64: 3, 1, 64>}, {pipeline_mode = #tpu.pipeline_mode<synchronous>, transform_indices = @transform_21, window_bounds = array<i64: 3, 1, 64>}, {pipeline_mode = #tpu.pipeline_mode<synchronous>, transform_indices = @transform_22, window_bounds = array<i64: 64, 128>}, {pipeline_mode = #tpu.pipeline_mode<synchronous>, transform_indices = @transform_23, window_bounds = array<i64: 1, 128>}, {pipeline_mode = #tpu.pipeline_mode<synchronous>, transform_indices = @transform_24, window_bounds = array<i64: 3, 64, 64>}, {pipeline_mode = #tpu.pipeline_mode<synchronous>, transform_indices = @transform_25, window_bounds = array<i64: 3, 1, 64>}, {pipeline_mode = #tpu.pipeline_mode<synchronous>, transform_indices = @transform_26, window_bounds = array<i64: 3, 1, 64>}, {pipeline_mode = #tpu.pipeline_mode<synchronous>, transform_indices = @transform_27, window_bounds = array<i64: 3, 1, 64>}, {pipeline_mode = #tpu.pipeline_mode<synchronous>, transform_indices = @transform_28, window_bounds = array<i64: 64, 128>}, {pipeline_mode = #tpu.pipeline_mode<synchronous>, transform_indices = @transform_29, window_bounds = array<i64: 1, 128>}, {transform_indices = @transform_30, window_bounds = array<i64: 1, 1, 192>}, {transform_indices = @transform_31, window_bounds = array<i64: 1, 1, 128>}, {transform_indices = @transform_32, window_bounds = array<i64: 1, 1, 128>}]} {
    %c0_i32 = arith.constant 0 : i32
    %0 = arith.cmpi eq, %arg1, %c0_i32 : i32
    %1 = arith.extui %0 : i1 to i32
    %c0_i32_0 = arith.constant 0 : i32
    %2 = arith.cmpi ne, %1, %c0_i32_0 : i32
    scf.if %2 {
      %c0_106 = arith.constant 0 : index
      %c0_107 = arith.constant 0 : index
      %c0_108 = arith.constant 0 : index
      %227 = vector.load %arg2[%c0_106, %c0_107, %c0_108] : memref<1x8x4xf32, #tpu.memory_space<vmem>>, vector<1x8x4xf32>
      %228 = vector.shape_cast %227 : vector<1x8x4xf32> to vector<8x4xf32>
      %c0_109 = arith.constant 0 : index
      %c0_110 = arith.constant 0 : index
      %229 = vector.load %arg3[%c0_109, %c0_110] : memref<4x64xbf16, #tpu.memory_space<vmem>>, vector<4x64xbf16>
      %c0_111 = arith.constant 0 : index
      %c0_112 = arith.constant 0 : index
      %230 = vector.load %arg4[%c0_111, %c0_112] : memref<1x64xf32, #tpu.memory_space<vmem>>, vector<1x64xf32>
      %231 = arith.truncf %228 : vector<8x4xf32> to vector<8x4xbf16>
      %cst_113 = arith.constant dense<0.000000e+00> : vector<8x64xf32>
      %232 = tpu.matmul %231, %229, %cst_113 {dimension_numbers = #tpu.dot_dimension_numbers<[1], [0], [0], [1], [0, 0, 1, 1], [], []>} : vector<8x4xbf16>, vector<4x64xbf16>, vector<8x64xf32> -> vector<8x64xf32>
      %233 = vector.broadcast %230 : vector<1x64xf32> to vector<8x64xf32>
      %234 = arith.addf %232, %233 : vector<8x64xf32>
      %c0_114 = arith.constant 0 : index
      %c0_115 = arith.constant 0 : index
      %235 = vector.load %arg5[%c0_114, %c0_115] : memref<8x64xf32, #tpu.memory_space<vmem>>, vector<8x64xf32>
      %236 = arith.addf %234, %235 : vector<8x64xf32>
      %c0_116 = arith.constant 0 : index
      %c0_117 = arith.constant 0 : index
      %237 = vector.load %arg35[%c0_116, %c0_117] : memref<8x64xf32, #tpu.memory_space<vmem>>, vector<8x64xf32>
      tpu.vector_store %arg35[%c0_116, %c0_117], %236 {strides = array<i32>} : memref<8x64xf32, #tpu.memory_space<vmem>>, vector<8x64xf32>,
    } else {
    }
    %c0 = arith.constant 0 : index
    %c0_1 = arith.constant 0 : index
    %3 = vector.load %arg35[%c0, %c0_1] : memref<8x64xf32, #tpu.memory_space<vmem>>, vector<8x64xf32>
    %c0_2 = arith.constant 0 : index
    %c0_3 = arith.constant 0 : index
    %c0_4 = arith.constant 0 : index
    %c0_5 = arith.constant 0 : index
    %4 = vector.load %arg6[%c0_2, %c0_3, %c0_4, %c0_5] : memref<1x3x64x64xbf16, #tpu.memory_space<vmem>>, vector<1x1x64x64xbf16>
    %5 = vector.shape_cast %4 : vector<1x1x64x64xbf16> to vector<64x64xbf16>
    %6 = arith.truncf %3 : vector<8x64xf32> to vector<8x64xbf16>
    %cst = arith.constant dense<0.000000e+00> : vector<8x64xf32>
    %7 = tpu.matmul %6, %5, %cst {dimension_numbers = #tpu.dot_dimension_numbers<[1], [0], [0], [1], [0, 0, 1, 1], [], []>} : vector<8x64xbf16>, vector<64x64xbf16>, vector<8x64xf32> -> vector<8x64xf32>
    %c0_6 = arith.constant 0 : index
    %c0_7 = arith.constant 0 : index
    %c0_8 = arith.constant 0 : index
    %c0_9 = arith.constant 0 : index
    %8 = vector.load %arg7[%c0_6, %c0_7, %c0_8, %c0_9] : memref<1x3x1x64xf32, #tpu.memory_space<vmem>>, vector<1x1x1x64xf32>
    %9 = vector.shape_cast %8 : vector<1x1x1x64xf32> to vector<1x64xf32>
    %10 = vector.broadcast %9 : vector<1x64xf32> to vector<8x64xf32>
    %11 = arith.addf %7, %10 : vector<8x64xf32>
    %cst_10 = arith.constant 0.353553385 : f32
    %12 = vector.broadcast %cst_10 : f32 to vector<8x64xf32>
    %13 = arith.mulf %11, %12 : vector<8x64xf32>
    %c0_11 = arith.constant 0 : index
    %c1 = arith.constant 1 : index
    %c0_12 = arith.constant 0 : index
    %c0_13 = arith.constant 0 : index
    %14 = vector.load %arg6[%c0_11, %c1, %c0_12, %c0_13] : memref<1x3x64x64xbf16, #tpu.memory_space<vmem>>, vector<1x1x64x64xbf16>
    %15 = vector.shape_cast %14 : vector<1x1x64x64xbf16> to vector<64x64xbf16>
    %16 = arith.truncf %3 : vector<8x64xf32> to vector<8x64xbf16>
    %cst_14 = arith.constant dense<0.000000e+00> : vector<8x64xf32>
    %17 = tpu.matmul %16, %15, %cst_14 {dimension_numbers = #tpu.dot_dimension_numbers<[1], [0], [0], [1], [0, 0, 1, 1], [], []>} : vector<8x64xbf16>, vector<64x64xbf16>, vector<8x64xf32> -> vector<8x64xf32>
    %c0_15 = arith.constant 0 : index
    %c1_16 = arith.constant 1 : index
    %c0_17 = arith.constant 0 : index
    %c0_18 = arith.constant 0 : index
    %18 = vector.load %arg7[%c0_15, %c1_16, %c0_17, %c0_18] : memref<1x3x1x64xf32, #tpu.memory_space<vmem>>, vector<1x1x1x64xf32>
    %19 = vector.shape_cast %18 : vector<1x1x1x64xf32> to vector<1x64xf32>
    %20 = vector.broadcast %19 : vector<1x64xf32> to vector<8x64xf32>
    %21 = arith.addf %17, %20 : vector<8x64xf32>
    %c0_19 = arith.constant 0 : index
    %c2 = arith.constant 2 : index
    %c0_20 = arith.constant 0 : index
    %c0_21 = arith.constant 0 : index
    %22 = vector.load %arg6[%c0_19, %c2, %c0_20, %c0_21] : memref<1x3x64x64xbf16, #tpu.memory_space<vmem>>, vector<1x1x64x64xbf16>
    %23 = vector.shape_cast %22 : vector<1x1x64x64xbf16> to vector<64x64xbf16>
    %24 = arith.truncf %3 : vector<8x64xf32> to vector<8x64xbf16>
    %cst_22 = arith.constant dense<0.000000e+00> : vector<8x64xf32>
    %25 = tpu.matmul %24, %23, %cst_22 {dimension_numbers = #tpu.dot_dimension_numbers<[1], [0], [0], [1], [0, 0, 1, 1], [], []>} : vector<8x64xbf16>, vector<64x64xbf16>, vector<8x64xf32> -> vector<8x64xf32>
    %c0_23 = arith.constant 0 : index
    %c2_24 = arith.constant 2 : index
    %c0_25 = arith.constant 0 : index
    %c0_26 = arith.constant 0 : index
    %26 = vector.load %arg7[%c0_23, %c2_24, %c0_25, %c0_26] : memref<1x3x1x64xf32, #tpu.memory_space<vmem>>, vector<1x1x1x64xf32>
    %27 = vector.shape_cast %26 : vector<1x1x1x64xf32> to vector<1x64xf32>
    %28 = vector.broadcast %27 : vector<1x64xf32> to vector<8x64xf32>
    %29 = arith.addf %25, %28 : vector<8x64xf32>
    %30 = vector.extract_strided_slice %13 {offsets = [0, 0], sizes = [8, 8], strides = [1, 1]} : vector<8x64xf32> to vector<8x8xf32>
    %31 = vector.extract_strided_slice %21 {offsets = [0, 0], sizes = [8, 8], strides = [1, 1]} : vector<8x64xf32> to vector<8x8xf32>
    "tpu.trace_start"() <{level = 10 : i32, message = "qd,kd->qk"}> : () -> ()
    %cst_27 = arith.constant dense<0.000000e+00> : vector<8x8xf32>
    %32 = tpu.matmul %30, %31, %cst_27 {dimension_numbers = #tpu.dot_dimension_numbers<[1], [1], [0], [0], [0, 0, 1, 0], [], []>} : vector<8x8xf32>, vector<8x8xf32>, vector<8x8xf32> -> vector<8x8xf32>
    "tpu.trace_stop"() : () -> ()
    %cst_28 = arith.constant dense<0xFF800000> : vector<8xf32>
    %33 = vector.multi_reduction <maximumf>, %32, %cst_28 [1] : vector<8x8xf32> to vector<8xf32>
    %34 = vector.shape_cast %33 : vector<8xf32> to vector<8x1xf32>
    %35 = vector.broadcast %34 : vector<8x1xf32> to vector<8x8xf32>
    %36 = arith.subf %32, %35 : vector<8x8xf32>
    %37 = math.exp %36 : vector<8x8xf32>
    %cst_29 = arith.constant dense<0.000000e+00> : vector<8xf32>
    %38 = vector.multi_reduction <add>, %37, %cst_29 [1] : vector<8x8xf32> to vector<8xf32>
    %39 = vector.shape_cast %38 : vector<8xf32> to vector<8x1xf32>
    %40 = vector.broadcast %39 : vector<8x1xf32> to vector<8x8xf32>
    %41 = arith.divf %37, %40 : vector<8x8xf32>
    %42 = vector.extract_strided_slice %29 {offsets = [0, 0], sizes = [8, 8], strides = [1, 1]} : vector<8x64xf32> to vector<8x8xf32>
    %cst_30 = arith.constant dense<0.000000e+00> : vector<8x8xf32>
    %43 = tpu.matmul %41, %42, %cst_30 {dimension_numbers = #tpu.dot_dimension_numbers<[1], [0], [0], [1], [0, 0, 1, 1], [], []>} : vector<8x8xf32>, vector<8x8xf32>, vector<8x8xf32> -> vector<8x8xf32>
    %44 = vector.extract_strided_slice %13 {offsets = [0, 8], sizes = [8, 8], strides = [1, 1]} : vector<8x64xf32> to vector<8x8xf32>
    %45 = vector.extract_strided_slice %21 {offsets = [0, 8], sizes = [8, 8], strides = [1, 1]} : vector<8x64xf32> to vector<8x8xf32>
    "tpu.trace_start"() <{level = 10 : i32, message = "qd,kd->qk"}> : () -> ()
    %cst_31 = arith.constant dense<0.000000e+00> : vector<8x8xf32>
    %46 = tpu.matmul %44, %45, %cst_31 {dimension_numbers = #tpu.dot_dimension_numbers<[1], [1], [0], [0], [0, 0, 1, 0], [], []>} : vector<8x8xf32>, vector<8x8xf32>, vector<8x8xf32> -> vector<8x8xf32>
    "tpu.trace_stop"() : () -> ()
    %cst_32 = arith.constant dense<0xFF800000> : vector<8xf32>
    %47 = vector.multi_reduction <maximumf>, %46, %cst_32 [1] : vector<8x8xf32> to vector<8xf32>
    %48 = vector.shape_cast %47 : vector<8xf32> to vector<8x1xf32>
    %49 = vector.broadcast %48 : vector<8x1xf32> to vector<8x8xf32>
    %50 = arith.subf %46, %49 : vector<8x8xf32>
    %51 = math.exp %50 : vector<8x8xf32>
    %cst_33 = arith.constant dense<0.000000e+00> : vector<8xf32>
    %52 = vector.multi_reduction <add>, %51, %cst_33 [1] : vector<8x8xf32> to vector<8xf32>
    %53 = vector.shape_cast %52 : vector<8xf32> to vector<8x1xf32>
    %54 = vector.broadcast %53 : vector<8x1xf32> to vector<8x8xf32>
    %55 = arith.divf %51, %54 : vector<8x8xf32>
    %56 = vector.extract_strided_slice %29 {offsets = [0, 8], sizes = [8, 8], strides = [1, 1]} : vector<8x64xf32> to vector<8x8xf32>
    %cst_34 = arith.constant dense<0.000000e+00> : vector<8x8xf32>
    %57 = tpu.matmul %55, %56, %cst_34 {dimension_numbers = #tpu.dot_dimension_numbers<[1], [0], [0], [1], [0, 0, 1, 1], [], []>} : vector<8x8xf32>, vector<8x8xf32>, vector<8x8xf32> -> vector<8x8xf32>
    %58 = vector.extract_strided_slice %13 {offsets = [0, 16], sizes = [8, 8], strides = [1, 1]} : vector<8x64xf32> to vector<8x8xf32>
    %59 = vector.extract_strided_slice %21 {offsets = [0, 16], sizes = [8, 8], strides = [1, 1]} : vector<8x64xf32> to vector<8x8xf32>
    "tpu.trace_start"() <{level = 10 : i32, message = "qd,kd->qk"}> : () -> ()
    %cst_35 = arith.constant dense<0.000000e+00> : vector<8x8xf32>
    %60 = tpu.matmul %58, %59, %cst_35 {dimension_numbers = #tpu.dot_dimension_numbers<[1], [1], [0], [0], [0, 0, 1, 0], [], []>} : vector<8x8xf32>, vector<8x8xf32>, vector<8x8xf32> -> vector<8x8xf32>
    "tpu.trace_stop"() : () -> ()
    %cst_36 = arith.constant dense<0xFF800000> : vector<8xf32>
    %61 = vector.multi_reduction <maximumf>, %60, %cst_36 [1] : vector<8x8xf32> to vector<8xf32>
    %62 = vector.shape_cast %61 : vector<8xf32> to vector<8x1xf32>
    %63 = vector.broadcast %62 : vector<8x1xf32> to vector<8x8xf32>
    %64 = arith.subf %60, %63 : vector<8x8xf32>
    %65 = math.exp %64 : vector<8x8xf32>
    %cst_37 = arith.constant dense<0.000000e+00> : vector<8xf32>
    %66 = vector.multi_reduction <add>, %65, %cst_37 [1] : vector<8x8xf32> to vector<8xf32>
    %67 = vector.shape_cast %66 : vector<8xf32> to vector<8x1xf32>
    %68 = vector.broadcast %67 : vector<8x1xf32> to vector<8x8xf32>
    %69 = arith.divf %65, %68 : vector<8x8xf32>
    %70 = vector.extract_strided_slice %29 {offsets = [0, 16], sizes = [8, 8], strides = [1, 1]} : vector<8x64xf32> to vector<8x8xf32>
    %cst_38 = arith.constant dense<0.000000e+00> : vector<8x8xf32>
    %71 = tpu.matmul %69, %70, %cst_38 {dimension_numbers = #tpu.dot_dimension_numbers<[1], [0], [0], [1], [0, 0, 1, 1], [], []>} : vector<8x8xf32>, vector<8x8xf32>, vector<8x8xf32> -> vector<8x8xf32>
    %72 = vector.extract_strided_slice %13 {offsets = [0, 24], sizes = [8, 8], strides = [1, 1]} : vector<8x64xf32> to vector<8x8xf32>
    %73 = vector.extract_strided_slice %21 {offsets = [0, 24], sizes = [8, 8], strides = [1, 1]} : vector<8x64xf32> to vector<8x8xf32>
    "tpu.trace_start"() <{level = 10 : i32, message = "qd,kd->qk"}> : () -> ()
    %cst_39 = arith.constant dense<0.000000e+00> : vector<8x8xf32>
    %74 = tpu.matmul %72, %73, %cst_39 {dimension_numbers = #tpu.dot_dimension_numbers<[1], [1], [0], [0], [0, 0, 1, 0], [], []>} : vector<8x8xf32>, vector<8x8xf32>, vector<8x8xf32> -> vector<8x8xf32>
    "tpu.trace_stop"() : () -> ()
    %cst_40 = arith.constant dense<0xFF800000> : vector<8xf32>
    %75 = vector.multi_reduction <maximumf>, %74, %cst_40 [1] : vector<8x8xf32> to vector<8xf32>
    %76 = vector.shape_cast %75 : vector<8xf32> to vector<8x1xf32>
    %77 = vector.broadcast %76 : vector<8x1xf32> to vector<8x8xf32>
    %78 = arith.subf %74, %77 : vector<8x8xf32>
    %79 = math.exp %78 : vector<8x8xf32>
    %cst_41 = arith.constant dense<0.000000e+00> : vector<8xf32>
    %80 = vector.multi_reduction <add>, %79, %cst_41 [1] : vector<8x8xf32> to vector<8xf32>
    %81 = vector.shape_cast %80 : vector<8xf32> to vector<8x1xf32>
    %82 = vector.broadcast %81 : vector<8x1xf32> to vector<8x8xf32>
    %83 = arith.divf %79, %82 : vector<8x8xf32>
    %84 = vector.extract_strided_slice %29 {offsets = [0, 24], sizes = [8, 8], strides = [1, 1]} : vector<8x64xf32> to vector<8x8xf32>
    %cst_42 = arith.constant dense<0.000000e+00> : vector<8x8xf32>
    %85 = tpu.matmul %83, %84, %cst_42 {dimension_numbers = #tpu.dot_dimension_numbers<[1], [0], [0], [1], [0, 0, 1, 1], [], []>} : vector<8x8xf32>, vector<8x8xf32>, vector<8x8xf32> -> vector<8x8xf32>
    %86 = vector.extract_strided_slice %13 {offsets = [0, 32], sizes = [8, 8], strides = [1, 1]} : vector<8x64xf32> to vector<8x8xf32>
    %87 = vector.extract_strided_slice %21 {offsets = [0, 32], sizes = [8, 8], strides = [1, 1]} : vector<8x64xf32> to vector<8x8xf32>
    "tpu.trace_start"() <{level = 10 : i32, message = "qd,kd->qk"}> : () -> ()
    %cst_43 = arith.constant dense<0.000000e+00> : vector<8x8xf32>
    %88 = tpu.matmul %86, %87, %cst_43 {dimension_numbers = #tpu.dot_dimension_numbers<[1], [1], [0], [0], [0, 0, 1, 0], [], []>} : vector<8x8xf32>, vector<8x8xf32>, vector<8x8xf32> -> vector<8x8xf32>
    "tpu.trace_stop"() : () -> ()
    %cst_44 = arith.constant dense<0xFF800000> : vector<8xf32>
    %89 = vector.multi_reduction <maximumf>, %88, %cst_44 [1] : vector<8x8xf32> to vector<8xf32>
    %90 = vector.shape_cast %89 : vector<8xf32> to vector<8x1xf32>
    %91 = vector.broadcast %90 : vector<8x1xf32> to vector<8x8xf32>
    %92 = arith.subf %88, %91 : vector<8x8xf32>
    %93 = math.exp %92 : vector<8x8xf32>
    %cst_45 = arith.constant dense<0.000000e+00> : vector<8xf32>
    %94 = vector.multi_reduction <add>, %93, %cst_45 [1] : vector<8x8xf32> to vector<8xf32>
    %95 = vector.shape_cast %94 : vector<8xf32> to vector<8x1xf32>
    %96 = vector.broadcast %95 : vector<8x1xf32> to vector<8x8xf32>
    %97 = arith.divf %93, %96 : vector<8x8xf32>
    %98 = vector.extract_strided_slice %29 {offsets = [0, 32], sizes = [8, 8], strides = [1, 1]} : vector<8x64xf32> to vector<8x8xf32>
    %cst_46 = arith.constant dense<0.000000e+00> : vector<8x8xf32>
    %99 = tpu.matmul %97, %98, %cst_46 {dimension_numbers = #tpu.dot_dimension_numbers<[1], [0], [0], [1], [0, 0, 1, 1], [], []>} : vector<8x8xf32>, vector<8x8xf32>, vector<8x8xf32> -> vector<8x8xf32>
    %100 = vector.extract_strided_slice %13 {offsets = [0, 40], sizes = [8, 8], strides = [1, 1]} : vector<8x64xf32> to vector<8x8xf32>
    %101 = vector.extract_strided_slice %21 {offsets = [0, 40], sizes = [8, 8], strides = [1, 1]} : vector<8x64xf32> to vector<8x8xf32>
    "tpu.trace_start"() <{level = 10 : i32, message = "qd,kd->qk"}> : () -> ()
    %cst_47 = arith.constant dense<0.000000e+00> : vector<8x8xf32>
    %102 = tpu.matmul %100, %101, %cst_47 {dimension_numbers = #tpu.dot_dimension_numbers<[1], [1], [0], [0], [0, 0, 1, 0], [], []>} : vector<8x8xf32>, vector<8x8xf32>, vector<8x8xf32> -> vector<8x8xf32>
    "tpu.trace_stop"() : () -> ()
    %cst_48 = arith.constant dense<0xFF800000> : vector<8xf32>
    %103 = vector.multi_reduction <maximumf>, %102, %cst_48 [1] : vector<8x8xf32> to vector<8xf32>
    %104 = vector.shape_cast %103 : vector<8xf32> to vector<8x1xf32>
    %105 = vector.broadcast %104 : vector<8x1xf32> to vector<8x8xf32>
    %106 = arith.subf %102, %105 : vector<8x8xf32>
    %107 = math.exp %106 : vector<8x8xf32>
    %cst_49 = arith.constant dense<0.000000e+00> : vector<8xf32>
    %108 = vector.multi_reduction <add>, %107, %cst_49 [1] : vector<8x8xf32> to vector<8xf32>
    %109 = vector.shape_cast %108 : vector<8xf32> to vector<8x1xf32>
    %110 = vector.broadcast %109 : vector<8x1xf32> to vector<8x8xf32>
    %111 = arith.divf %107, %110 : vector<8x8xf32>
    %112 = vector.extract_strided_slice %29 {offsets = [0, 40], sizes = [8, 8], strides = [1, 1]} : vector<8x64xf32> to vector<8x8xf32>
    %cst_50 = arith.constant dense<0.000000e+00> : vector<8x8xf32>
    %113 = tpu.matmul %111, %112, %cst_50 {dimension_numbers = #tpu.dot_dimension_numbers<[1], [0], [0], [1], [0, 0, 1, 1], [], []>} : vector<8x8xf32>, vector<8x8xf32>, vector<8x8xf32> -> vector<8x8xf32>
    %114 = vector.extract_strided_slice %13 {offsets = [0, 48], sizes = [8, 8], strides = [1, 1]} : vector<8x64xf32> to vector<8x8xf32>
    %115 = vector.extract_strided_slice %21 {offsets = [0, 48], sizes = [8, 8], strides = [1, 1]} : vector<8x64xf32> to vector<8x8xf32>
    "tpu.trace_start"() <{level = 10 : i32, message = "qd,kd->qk"}> : () -> ()
    %cst_51 = arith.constant dense<0.000000e+00> : vector<8x8xf32>
    %116 = tpu.matmul %114, %115, %cst_51 {dimension_numbers = #tpu.dot_dimension_numbers<[1], [1], [0], [0], [0, 0, 1, 0], [], []>} : vector<8x8xf32>, vector<8x8xf32>, vector<8x8xf32> -> vector<8x8xf32>
    "tpu.trace_stop"() : () -> ()
    %cst_52 = arith.constant dense<0xFF800000> : vector<8xf32>
    %117 = vector.multi_reduction <maximumf>, %116, %cst_52 [1] : vector<8x8xf32> to vector<8xf32>
    %118 = vector.shape_cast %117 : vector<8xf32> to vector<8x1xf32>
    %119 = vector.broadcast %118 : vector<8x1xf32> to vector<8x8xf32>
    %120 = arith.subf %116, %119 : vector<8x8xf32>
    %121 = math.exp %120 : vector<8x8xf32>
    %cst_53 = arith.constant dense<0.000000e+00> : vector<8xf32>
    %122 = vector.multi_reduction <add>, %121, %cst_53 [1] : vector<8x8xf32> to vector<8xf32>
    %123 = vector.shape_cast %122 : vector<8xf32> to vector<8x1xf32>
    %124 = vector.broadcast %123 : vector<8x1xf32> to vector<8x8xf32>
    %125 = arith.divf %121, %124 : vector<8x8xf32>
    %126 = vector.extract_strided_slice %29 {offsets = [0, 48], sizes = [8, 8], strides = [1, 1]} : vector<8x64xf32> to vector<8x8xf32>
    %cst_54 = arith.constant dense<0.000000e+00> : vector<8x8xf32>
    %127 = tpu.matmul %125, %126, %cst_54 {dimension_numbers = #tpu.dot_dimension_numbers<[1], [0], [0], [1], [0, 0, 1, 1], [], []>} : vector<8x8xf32>, vector<8x8xf32>, vector<8x8xf32> -> vector<8x8xf32>
    %128 = vector.extract_strided_slice %13 {offsets = [0, 56], sizes = [8, 8], strides = [1, 1]} : vector<8x64xf32> to vector<8x8xf32>
    %129 = vector.extract_strided_slice %21 {offsets = [0, 56], sizes = [8, 8], strides = [1, 1]} : vector<8x64xf32> to vector<8x8xf32>
    "tpu.trace_start"() <{level = 10 : i32, message = "qd,kd->qk"}> : () -> ()
    %cst_55 = arith.constant dense<0.000000e+00> : vector<8x8xf32>
    %130 = tpu.matmul %128, %129, %cst_55 {dimension_numbers = #tpu.dot_dimension_numbers<[1], [1], [0], [0], [0, 0, 1, 0], [], []>} : vector<8x8xf32>, vector<8x8xf32>, vector<8x8xf32> -> vector<8x8xf32>
    "tpu.trace_stop"() : () -> ()
    %cst_56 = arith.constant dense<0xFF800000> : vector<8xf32>
    %131 = vector.multi_reduction <maximumf>, %130, %cst_56 [1] : vector<8x8xf32> to vector<8xf32>
    %132 = vector.shape_cast %131 : vector<8xf32> to vector<8x1xf32>
    %133 = vector.broadcast %132 : vector<8x1xf32> to vector<8x8xf32>
    %134 = arith.subf %130, %133 : vector<8x8xf32>
    %135 = math.exp %134 : vector<8x8xf32>
    %cst_57 = arith.constant dense<0.000000e+00> : vector<8xf32>
    %136 = vector.multi_reduction <add>, %135, %cst_57 [1] : vector<8x8xf32> to vector<8xf32>
    %137 = vector.shape_cast %136 : vector<8xf32> to vector<8x1xf32>
    %138 = vector.broadcast %137 : vector<8x1xf32> to vector<8x8xf32>
    %139 = arith.divf %135, %138 : vector<8x8xf32>
    %140 = vector.extract_strided_slice %29 {offsets = [0, 56], sizes = [8, 8], strides = [1, 1]} : vector<8x64xf32> to vector<8x8xf32>
    %cst_58 = arith.constant dense<0.000000e+00> : vector<8x8xf32>
    %141 = tpu.matmul %139, %140, %cst_58 {dimension_numbers = #tpu.dot_dimension_numbers<[1], [0], [0], [1], [0, 0, 1, 1], [], []>} : vector<8x8xf32>, vector<8x8xf32>, vector<8x8xf32> -> vector<8x8xf32>
    %142 = tpu.concatenate %43, %57, %71, %85, %99, %113, %127, %141 in 1 : vector<8x8xf32>, vector<8x8xf32>, vector<8x8xf32>, vector<8x8xf32>, vector<8x8xf32>, vector<8x8xf32>, vector<8x8xf32>, vector<8x8xf32> -> vector<8x64xf32>
    %c0_59 = arith.constant 0 : index
    %c0_60 = arith.constant 0 : index
    %c0_61 = arith.constant 0 : index
    %143 = vector.load %arg8[%c0_59, %c0_60, %c0_61] : memref<1x64x64xbf16, #tpu.memory_space<vmem>>, vector<1x64x64xbf16>
    %144 = vector.shape_cast %143 : vector<1x64x64xbf16> to vector<64x64xbf16>
    %c0_62 = arith.constant 0 : index
    %c0_63 = arith.constant 0 : index
    %c0_64 = arith.constant 0 : index
    %145 = vector.load %arg9[%c0_62, %c0_63, %c0_64] : memref<1x1x64xf32, #tpu.memory_space<vmem>>, vector<1x1x64xf32>
    %146 = vector.shape_cast %145 : vector<1x1x64xf32> to vector<1x64xf32>
    %147 = arith.truncf %142 : vector<8x64xf32> to vector<8x64xbf16>
    %cst_65 = arith.constant dense<0.000000e+00> : vector<8x64xf32>
    %148 = tpu.matmul %147, %144, %cst_65 {dimension_numbers = #tpu.dot_dimension_numbers<[1], [0], [0], [1], [0, 0, 1, 1], [], []>} : vector<8x64xbf16>, vector<64x64xbf16>, vector<8x64xf32> -> vector<8x64xf32>
    %149 = vector.broadcast %146 : vector<1x64xf32> to vector<8x64xf32>
    %150 = arith.addf %148, %149 : vector<8x64xf32>
    %151 = arith.addf %3, %150 : vector<8x64xf32>
    %c0_66 = arith.constant 0 : index
    %c0_67 = arith.constant 0 : index
    %c0_68 = arith.constant 0 : index
    %152 = vector.load %arg14[%c0_66, %c0_67, %c0_68] : memref<1x1x64xf32, #tpu.memory_space<vmem>>, vector<1x1x64xf32>
    %153 = vector.shape_cast %152 : vector<1x1x64xf32> to vector<1x64xf32>
    %c0_69 = arith.constant 0 : index
    %c0_70 = arith.constant 0 : index
    %c0_71 = arith.constant 0 : index
    %154 = vector.load %arg15[%c0_69, %c0_70, %c0_71] : memref<1x1x64xf32, #tpu.memory_space<vmem>>, vector<1x1x64xf32>
    %155 = vector.shape_cast %154 : vector<1x1x64xf32> to vector<1x64xf32>
    %cst_72 = arith.constant dense<0.000000e+00> : vector<8xf32>
    %156 = vector.multi_reduction <add>, %151, %cst_72 [1] : vector<8x64xf32> to vector<8xf32>
    %157 = vector.shape_cast %156 : vector<8xf32> to vector<8x1xf32>
    %cst_73 = arith.constant 6.400000e+01 : f32
    %158 = vector.broadcast %cst_73 : f32 to vector<8x1xf32>
    %159 = arith.divf %157, %158 : vector<8x1xf32>
    %160 = vector.broadcast %159 : vector<8x1xf32> to vector<8x64xf32>
    %161 = arith.subf %151, %160 : vector<8x64xf32>
    %162 = arith.mulf %161, %161 : vector<8x64xf32>
    %cst_74 = arith.constant dense<0.000000e+00> : vector<8xf32>
    %163 = vector.multi_reduction <add>, %162, %cst_74 [1] : vector<8x64xf32> to vector<8xf32>
    %164 = vector.shape_cast %163 : vector<8xf32> to vector<8x1xf32>
    %cst_75 = arith.constant 6.400000e+01 : f32
    %165 = vector.broadcast %cst_75 : f32 to vector<8x1xf32>
    %166 = arith.divf %164, %165 : vector<8x1xf32>
    %167 = vector.broadcast %159 : vector<8x1xf32> to vector<8x64xf32>
    %168 = arith.subf %151, %167 : vector<8x64xf32>
    %cst_76 = arith.constant 9.99999974E-6 : f32
    %169 = vector.broadcast %cst_76 : f32 to vector<8x1xf32>
    %170 = arith.addf %166, %169 : vector<8x1xf32>
    %171 = math.rsqrt %170 : vector<8x1xf32>
    %172 = vector.broadcast %171 : vector<8x1xf32> to vector<8x64xf32>
    %173 = arith.mulf %168, %172 : vector<8x64xf32>
    %174 = vector.broadcast %153 : vector<1x64xf32> to vector<8x64xf32>
    %175 = arith.mulf %173, %174 : vector<8x64xf32>
    %176 = vector.broadcast %155 : vector<1x64xf32> to vector<8x64xf32>
    %177 = arith.addf %175, %176 : vector<8x64xf32>
    %c0_77 = arith.constant 0 : index
    %c0_78 = arith.constant 0 : index
    %c0_79 = arith.constant 0 : index
    %178 = vector.load %arg10[%c0_77, %c0_78, %c0_79] : memref<1x64x256xbf16, #tpu.memory_space<vmem>>, vector<1x64x256xbf16>
    %179 = vector.shape_cast %178 : vector<1x64x256xbf16> to vector<64x256xbf16>
    %c0_80 = arith.constant 0 : index
    %c0_81 = arith.constant 0 : index
    %c0_82 = arith.constant 0 : index
    %180 = vector.load %arg11[%c0_80, %c0_81, %c0_82] : memref<1x1x256xf32, #tpu.memory_space<vmem>>, vector<1x1x256xf32>
    %181 = vector.shape_cast %180 : vector<1x1x256xf32> to vector<1x256xf32>
    %182 = arith.truncf %177 : vector<8x64xf32> to vector<8x64xbf16>
    %cst_83 = arith.constant dense<0.000000e+00> : vector<8x256xf32>
    %183 = tpu.matmul %182, %179, %cst_83 {dimension_numbers = #tpu.dot_dimension_numbers<[1], [0], [0], [1], [0, 0, 1, 1], [], []>} : vector<8x64xbf16>, vector<64x256xbf16>, vector<8x256xf32> -> vector<8x256xf32>
    %184 = vector.broadcast %181 : vector<1x256xf32> to vector<8x256xf32>
    %185 = arith.addf %183, %184 : vector<8x256xf32>
    %cst_84 = arith.constant 0.000000e+00 : f32
    %186 = vector.broadcast %cst_84 : f32 to vector<8x256xf32>
    %187 = arith.maximumf %185, %186 : vector<8x256xf32>
    %c0_85 = arith.constant 0 : index
    %c0_86 = arith.constant 0 : index
    %c0_87 = arith.constant 0 : index
    %188 = vector.load %arg12[%c0_85, %c0_86, %c0_87] : memref<1x256x64xbf16, #tpu.memory_space<vmem>>, vector<1x256x64xbf16>
    %189 = vector.shape_cast %188 : vector<1x256x64xbf16> to vector<256x64xbf16>
    %c0_88 = arith.constant 0 : index
    %c0_89 = arith.constant 0 : index
    %c0_90 = arith.constant 0 : index
    %190 = vector.load %arg13[%c0_88, %c0_89, %c0_90] : memref<1x1x64xf32, #tpu.memory_space<vmem>>, vector<1x1x64xf32>
    %191 = vector.shape_cast %190 : vector<1x1x64xf32> to vector<1x64xf32>
    %192 = arith.truncf %187 : vector<8x256xf32> to vector<8x256xbf16>
    %cst_91 = arith.constant dense<0.000000e+00> : vector<8x64xf32>
    %193 = tpu.matmul %192, %189, %cst_91 {dimension_numbers = #tpu.dot_dimension_numbers<[1], [0], [0], [1], [0, 0, 1, 1], [], []>} : vector<8x256xbf16>, vector<256x64xbf16>, vector<8x64xf32> -> vector<8x64xf32>
    %194 = vector.broadcast %191 : vector<1x64xf32> to vector<8x64xf32>
    %195 = arith.addf %193, %194 : vector<8x64xf32>
    %196 = arith.addf %177, %195 : vector<8x64xf32>
    %c0_92 = arith.constant 0 : index
    %c0_93 = arith.constant 0 : index
    %c0_94 = arith.constant 0 : index
    %197 = vector.load %arg16[%c0_92, %c0_93, %c0_94] : memref<1x1x64xf32, #tpu.memory_space<vmem>>, vector<1x1x64xf32>
    %198 = vector.shape_cast %197 : vector<1x1x64xf32> to vector<1x64xf32>
    %c0_95 = arith.constant 0 : index
    %c0_96 = arith.constant 0 : index
    %c0_97 = arith.constant 0 : index
    %199 = vector.load %arg17[%c0_95, %c0_96, %c0_97] : memref<1x1x64xf32, #tpu.memory_space<vmem>>, vector<1x1x64xf32>
    %200 = vector.shape_cast %199 : vector<1x1x64xf32> to vector<1x64xf32>
    %cst_98 = arith.constant dense<0.000000e+00> : vector<8xf32>
    %201 = vector.multi_reduction <add>, %196, %cst_98 [1] : vector<8x64xf32> to vector<8xf32>
    %202 = vector.shape_cast %201 : vector<8xf32> to vector<8x1xf32>
    %cst_99 = arith.constant 6.400000e+01 : f32
    %203 = vector.broadcast %cst_99 : f32 to vector<8x1xf32>
    %204 = arith.divf %202, %203 : vector<8x1xf32>
    %205 = vector.broadcast %204 : vector<8x1xf32> to vector<8x64xf32>
    %206 = arith.subf %196, %205 : vector<8x64xf32>
    %207 = arith.mulf %206, %206 : vector<8x64xf32>
    %cst_100 = arith.constant dense<0.000000e+00> : vector<8xf32>
    %208 = vector.multi_reduction <add>, %207, %cst_100 [1] : vector<8x64xf32> to vector<8xf32>
    %209 = vector.shape_cast %208 : vector<8xf32> to vector<8x1xf32>
    %cst_101 = arith.constant 6.400000e+01 : f32
    %210 = vector.broadcast %cst_101 : f32 to vector<8x1xf32>
    %211 = arith.divf %209, %210 : vector<8x1xf32>
    %212 = vector.broadcast %204 : vector<8x1xf32> to vector<8x64xf32>
    %213 = arith.subf %196, %212 : vector<8x64xf32>
    %cst_102 = arith.constant 9.99999974E-6 : f32
    %214 = vector.broadcast %cst_102 : f32 to vector<8x1xf32>
    %215 = arith.addf %211, %214 : vector<8x1xf32>
    %216 = math.rsqrt %215 : vector<8x1xf32>
    %217 = vector.broadcast %216 : vector<8x1xf32> to vector<8x64xf32>
    %218 = arith.mulf %213, %217 : vector<8x64xf32>
    %219 = vector.broadcast %198 : vector<1x64xf32> to vector<8x64xf32>
    %220 = arith.mulf %218, %219 : vector<8x64xf32>
    %221 = vector.broadcast %200 : vector<1x64xf32> to vector<8x64xf32>
    %222 = arith.addf %220, %221 : vector<8x64xf32>
    %c0_103 = arith.constant 0 : index
    %c0_104 = arith.constant 0 : index
    %223 = vector.load %arg35[%c0_103, %c0_104] : memref<8x64xf32, #tpu.memory_space<vmem>>, vector<8x64xf32>
    tpu.vector_store %arg35[%c0_103, %c0_104], %222 {strides = array<i32>} : memref<8x64xf32, #tpu.memory_space<vmem>>, vector<8x64xf32>,
    %c5_i32 = arith.constant 5 : i32
    %224 = arith.cmpi eq, %arg1, %c5_i32 : i32
    %225 = arith.extui %224 : i1 to i32
    %c0_i32_105 = arith.constant 0 : i32
    %226 = arith.cmpi ne, %225, %c0_i32_105 : i32
    scf.if %226 {
      %227 = vector.extract_strided_slice %222 {offsets = [0, 0], sizes = [1, 64], strides = [1, 1]} : vector<8x64xf32> to vector<1x64xf32>
      %c0_106 = arith.constant 0 : index
      %c0_107 = arith.constant 0 : index
      %228 = vector.load %arg18[%c0_106, %c0_107] : memref<64x192xbf16, #tpu.memory_space<vmem>>, vector<64x192xbf16>
      %c0_108 = arith.constant 0 : index
      %c0_109 = arith.constant 0 : index
      %229 = vector.load %arg19[%c0_108, %c0_109] : memref<1x192xf32, #tpu.memory_space<vmem>>, vector<1x192xf32>
      %230 = arith.truncf %227 : vector<1x64xf32> to vector<1x64xbf16>
      %cst_110 = arith.constant dense<0.000000e+00> : vector<1x192xf32>
      %231 = tpu.matmul %230, %228, %cst_110 {dimension_numbers = #tpu.dot_dimension_numbers<[1], [0], [0], [1], [0, 0, 1, 1], [], []>} : vector<1x64xbf16>, vector<64x192xbf16>, vector<1x192xf32> -> vector<1x192xf32>
      %232 = arith.addf %231, %229 : vector<1x192xf32>
      %c0_111 = arith.constant 0 : index
      %c0_112 = arith.constant 0 : index
      %c0_113 = arith.constant 0 : index
      %233 = vector.load %arg32[%c0_111, %c0_112, %c0_113] : memref<1x1x192xf32, #tpu.memory_space<vmem>>, vector<1x1x192xf32>
      %234 = vector.shape_cast %233 : vector<1x1x192xf32> to vector<1x192xf32>
      %235 = vector.shape_cast %232 : vector<1x192xf32> to vector<1x1x192xf32>
      tpu.vector_store %arg32[%c0_111, %c0_112, %c0_113], %235 {strides = array<i32>} : memref<1x1x192xf32, #tpu.memory_space<vmem>>, vector<1x1x192xf32>,
      %236 = vector.extract_strided_slice %232 {offsets = [0, 0], sizes = [1, 64], strides = [1, 1]} : vector<1x192xf32> to vector<1x64xf32>
      %237 = vector.extract_strided_slice %232 {offsets = [0, 128], sizes = [1, 64], strides = [1, 1]} : vector<1x192xf32> to vector<1x64xf32>
      %c0_114 = arith.constant 0 : index
      %c0_115 = arith.constant 0 : index
      %c0_116 = arith.constant 0 : index
      %238 = vector.load %arg20[%c0_114, %c0_115, %c0_116] : memref<3x64x64xbf16, #tpu.memory_space<vmem>>, vector<1x64x64xbf16>
      %239 = vector.shape_cast %238 : vector<1x64x64xbf16> to vector<64x64xbf16>
      %c0_117 = arith.constant 0 : index
      %c0_118 = arith.constant 0 : index
      %c0_119 = arith.constant 0 : index
      %240 = vector.load %arg21[%c0_117, %c0_118, %c0_119] : memref<3x1x64xf32, #tpu.memory_space<vmem>>, vector<1x1x64xf32>
      %241 = vector.shape_cast %240 : vector<1x1x64xf32> to vector<1x64xf32>
      %242 = arith.truncf %236 : vector<1x64xf32> to vector<1x64xbf16>
      %cst_120 = arith.constant dense<0.000000e+00> : vector<1x64xf32>
      %243 = tpu.matmul %242, %239, %cst_120 {dimension_numbers = #tpu.dot_dimension_numbers<[1], [0], [0], [1], [0, 0, 1, 1], [], []>} : vector<1x64xbf16>, vector<64x64xbf16>, vector<1x64xf32> -> vector<1x64xf32>
      %244 = arith.addf %243, %241 : vector<1x64xf32>
      %c0_121 = arith.constant 0 : index
      %c0_122 = arith.constant 0 : index
      %c0_123 = arith.constant 0 : index
      %245 = vector.load %arg22[%c0_121, %c0_122, %c0_123] : memref<3x1x64xf32, #tpu.memory_space<vmem>>, vector<1x1x64xf32>
      %246 = vector.shape_cast %245 : vector<1x1x64xf32> to vector<1x64xf32>
      %c0_124 = arith.constant 0 : index
      %c0_125 = arith.constant 0 : index
      %c0_126 = arith.constant 0 : index
      %247 = vector.load %arg23[%c0_124, %c0_125, %c0_126] : memref<3x1x64xf32, #tpu.memory_space<vmem>>, vector<1x1x64xf32>
      %248 = vector.shape_cast %247 : vector<1x1x64xf32> to vector<1x64xf32>
      %cst_127 = arith.constant dense<0.000000e+00> : vector<1xf32>
      %249 = vector.multi_reduction <add>, %244, %cst_127 [1] : vector<1x64xf32> to vector<1xf32>
      %250 = vector.shape_cast %249 : vector<1xf32> to vector<1x1xf32>
      %cst_128 = arith.constant 6.400000e+01 : f32
      %251 = vector.broadcast %cst_128 : f32 to vector<1x1xf32>
      %252 = arith.divf %250, %251 : vector<1x1xf32>
      %253 = vector.broadcast %252 : vector<1x1xf32> to vector<1x64xf32>
      %254 = arith.subf %244, %253 : vector<1x64xf32>
      %255 = arith.mulf %254, %254 : vector<1x64xf32>
      %cst_129 = arith.constant dense<0.000000e+00> : vector<1xf32>
      %256 = vector.multi_reduction <add>, %255, %cst_129 [1] : vector<1x64xf32> to vector<1xf32>
      %257 = vector.shape_cast %256 : vector<1xf32> to vector<1x1xf32>
      %cst_130 = arith.constant 6.400000e+01 : f32
      %258 = vector.broadcast %cst_130 : f32 to vector<1x1xf32>
      %259 = arith.divf %257, %258 : vector<1x1xf32>
      %260 = vector.broadcast %252 : vector<1x1xf32> to vector<1x64xf32>
      %261 = arith.subf %244, %260 : vector<1x64xf32>
      %cst_131 = arith.constant 9.99999974E-6 : f32
      %262 = vector.broadcast %cst_131 : f32 to vector<1x1xf32>
      %263 = arith.addf %259, %262 : vector<1x1xf32>
      %264 = math.rsqrt %263 : vector<1x1xf32>
      %265 = vector.broadcast %264 : vector<1x1xf32> to vector<1x64xf32>
      %266 = arith.mulf %261, %265 : vector<1x64xf32>
      %267 = arith.mulf %266, %246 : vector<1x64xf32>
      %268 = arith.addf %267, %248 : vector<1x64xf32>
      %cst_132 = arith.constant 0.000000e+00 : f32
      %269 = vector.broadcast %cst_132 : f32 to vector<1x64xf32>
      %270 = arith.maximumf %268, %269 : vector<1x64xf32>
      %c1_133 = arith.constant 1 : index
      %c0_134 = arith.constant 0 : index
      %c0_135 = arith.constant 0 : index
      %271 = vector.load %arg20[%c1_133, %c0_134, %c0_135] : memref<3x64x64xbf16, #tpu.memory_space<vmem>>, vector<1x64x64xbf16>
      %272 = vector.shape_cast %271 : vector<1x64x64xbf16> to vector<64x64xbf16>
      %c1_136 = arith.constant 1 : index
      %c0_137 = arith.constant 0 : index
      %c0_138 = arith.constant 0 : index
      %273 = vector.load %arg21[%c1_136, %c0_137, %c0_138] : memref<3x1x64xf32, #tpu.memory_space<vmem>>, vector<1x1x64xf32>
      %274 = vector.shape_cast %273 : vector<1x1x64xf32> to vector<1x64xf32>
      %275 = arith.truncf %270 : vector<1x64xf32> to vector<1x64xbf16>
      %cst_139 = arith.constant dense<0.000000e+00> : vector<1x64xf32>
      %276 = tpu.matmul %275, %272, %cst_139 {dimension_numbers = #tpu.dot_dimension_numbers<[1], [0], [0], [1], [0, 0, 1, 1], [], []>} : vector<1x64xbf16>, vector<64x64xbf16>, vector<1x64xf32> -> vector<1x64xf32>
      %277 = arith.addf %276, %274 : vector<1x64xf32>
      %c1_140 = arith.constant 1 : index
      %c0_141 = arith.constant 0 : index
      %c0_142 = arith.constant 0 : index
      %278 = vector.load %arg22[%c1_140, %c0_141, %c0_142] : memref<3x1x64xf32, #tpu.memory_space<vmem>>, vector<1x1x64xf32>
      %279 = vector.shape_cast %278 : vector<1x1x64xf32> to vector<1x64xf32>
      %c1_143 = arith.constant 1 : index
      %c0_144 = arith.constant 0 : index
      %c0_145 = arith.constant 0 : index
      %280 = vector.load %arg23[%c1_143, %c0_144, %c0_145] : memref<3x1x64xf32, #tpu.memory_space<vmem>>, vector<1x1x64xf32>
      %281 = vector.shape_cast %280 : vector<1x1x64xf32> to vector<1x64xf32>
      %cst_146 = arith.constant dense<0.000000e+00> : vector<1xf32>
      %282 = vector.multi_reduction <add>, %277, %cst_146 [1] : vector<1x64xf32> to vector<1xf32>
      %283 = vector.shape_cast %282 : vector<1xf32> to vector<1x1xf32>
      %cst_147 = arith.constant 6.400000e+01 : f32
      %284 = vector.broadcast %cst_147 : f32 to vector<1x1xf32>
      %285 = arith.divf %283, %284 : vector<1x1xf32>
      %286 = vector.broadcast %285 : vector<1x1xf32> to vector<1x64xf32>
      %287 = arith.subf %277, %286 : vector<1x64xf32>
      %288 = arith.mulf %287, %287 : vector<1x64xf32>
      %cst_148 = arith.constant dense<0.000000e+00> : vector<1xf32>
      %289 = vector.multi_reduction <add>, %288, %cst_148 [1] : vector<1x64xf32> to vector<1xf32>
      %290 = vector.shape_cast %289 : vector<1xf32> to vector<1x1xf32>
      %cst_149 = arith.constant 6.400000e+01 : f32
      %291 = vector.broadcast %cst_149 : f32 to vector<1x1xf32>
      %292 = arith.divf %290, %291 : vector<1x1xf32>
      %293 = vector.broadcast %285 : vector<1x1xf32> to vector<1x64xf32>
      %294 = arith.subf %277, %293 : vector<1x64xf32>
      %cst_150 = arith.constant 9.99999974E-6 : f32
      %295 = vector.broadcast %cst_150 : f32 to vector<1x1xf32>
      %296 = arith.addf %292, %295 : vector<1x1xf32>
      %297 = math.rsqrt %296 : vector<1x1xf32>
      %298 = vector.broadcast %297 : vector<1x1xf32> to vector<1x64xf32>
      %299 = arith.mulf %294, %298 : vector<1x64xf32>
      %300 = arith.mulf %299, %279 : vector<1x64xf32>
      %301 = arith.addf %300, %281 : vector<1x64xf32>
      %cst_151 = arith.constant 0.000000e+00 : f32
      %302 = vector.broadcast %cst_151 : f32 to vector<1x64xf32>
      %303 = arith.maximumf %301, %302 : vector<1x64xf32>
      %c2_152 = arith.constant 2 : index
      %c0_153 = arith.constant 0 : index
      %c0_154 = arith.constant 0 : index
      %304 = vector.load %arg20[%c2_152, %c0_153, %c0_154] : memref<3x64x64xbf16, #tpu.memory_space<vmem>>, vector<1x64x64xbf16>
      %305 = vector.shape_cast %304 : vector<1x64x64xbf16> to vector<64x64xbf16>
      %c2_155 = arith.constant 2 : index
      %c0_156 = arith.constant 0 : index
      %c0_157 = arith.constant 0 : index
      %306 = vector.load %arg21[%c2_155, %c0_156, %c0_157] : memref<3x1x64xf32, #tpu.memory_space<vmem>>, vector<1x1x64xf32>
      %307 = vector.shape_cast %306 : vector<1x1x64xf32> to vector<1x64xf32>
      %308 = arith.truncf %303 : vector<1x64xf32> to vector<1x64xbf16>
      %cst_158 = arith.constant dense<0.000000e+00> : vector<1x64xf32>
      %309 = tpu.matmul %308, %305, %cst_158 {dimension_numbers = #tpu.dot_dimension_numbers<[1], [0], [0], [1], [0, 0, 1, 1], [], []>} : vector<1x64xbf16>, vector<64x64xbf16>, vector<1x64xf32> -> vector<1x64xf32>
      %310 = arith.addf %309, %307 : vector<1x64xf32>
      %c2_159 = arith.constant 2 : index
      %c0_160 = arith.constant 0 : index
      %c0_161 = arith.constant 0 : index
      %311 = vector.load %arg22[%c2_159, %c0_160, %c0_161] : memref<3x1x64xf32, #tpu.memory_space<vmem>>, vector<1x1x64xf32>
      %312 = vector.shape_cast %311 : vector<1x1x64xf32> to vector<1x64xf32>
      %c2_162 = arith.constant 2 : index
      %c0_163 = arith.constant 0 : index
      %c0_164 = arith.constant 0 : index
      %313 = vector.load %arg23[%c2_162, %c0_163, %c0_164] : memref<3x1x64xf32, #tpu.memory_space<vmem>>, vector<1x1x64xf32>
      %314 = vector.shape_cast %313 : vector<1x1x64xf32> to vector<1x64xf32>
      %cst_165 = arith.constant dense<0.000000e+00> : vector<1xf32>
      %315 = vector.multi_reduction <add>, %310, %cst_165 [1] : vector<1x64xf32> to vector<1xf32>
      %316 = vector.shape_cast %315 : vector<1xf32> to vector<1x1xf32>
      %cst_166 = arith.constant 6.400000e+01 : f32
      %317 = vector.broadcast %cst_166 : f32 to vector<1x1xf32>
      %318 = arith.divf %316, %317 : vector<1x1xf32>
      %319 = vector.broadcast %318 : vector<1x1xf32> to vector<1x64xf32>
      %320 = arith.subf %310, %319 : vector<1x64xf32>
      %321 = arith.mulf %320, %320 : vector<1x64xf32>
      %cst_167 = arith.constant dense<0.000000e+00> : vector<1xf32>
      %322 = vector.multi_reduction <add>, %321, %cst_167 [1] : vector<1x64xf32> to vector<1xf32>
      %323 = vector.shape_cast %322 : vector<1xf32> to vector<1x1xf32>
      %cst_168 = arith.constant 6.400000e+01 : f32
      %324 = vector.broadcast %cst_168 : f32 to vector<1x1xf32>
      %325 = arith.divf %323, %324 : vector<1x1xf32>
      %326 = vector.broadcast %318 : vector<1x1xf32> to vector<1x64xf32>
      %327 = arith.subf %310, %326 : vector<1x64xf32>
      %cst_169 = arith.constant 9.99999974E-6 : f32
      %328 = vector.broadcast %cst_169 : f32 to vector<1x1xf32>
      %329 = arith.addf %325, %328 : vector<1x1xf32>
      %330 = math.rsqrt %329 : vector<1x1xf32>
      %331 = vector.broadcast %330 : vector<1x1xf32> to vector<1x64xf32>
      %332 = arith.mulf %327, %331 : vector<1x64xf32>
      %333 = arith.mulf %332, %312 : vector<1x64xf32>
      %334 = arith.addf %333, %314 : vector<1x64xf32>
      %cst_170 = arith.constant 0.000000e+00 : f32
      %335 = vector.broadcast %cst_170 : f32 to vector<1x64xf32>
      %336 = arith.maximumf %334, %335 : vector<1x64xf32>
      %c0_171 = arith.constant 0 : index
      %c0_172 = arith.constant 0 : index
      %337 = vector.load %arg24[%c0_171, %c0_172] : memref<64x128xbf16, #tpu.memory_space<vmem>>, vector<64x128xbf16>
      %c0_173 = arith.constant 0 : index
      %c0_174 = arith.constant 0 : index
      %338 = vector.load %arg25[%c0_173, %c0_174] : memref<1x128xf32, #tpu.memory_space<vmem>>, vector<1x128xf32>
      %339 = arith.truncf %336 : vector<1x64xf32> to vector<1x64xbf16>
      %cst_175 = arith.constant dense<0.000000e+00> : vector<1x128xf32>
      %340 = tpu.matmul %339, %337, %cst_175 {dimension_numbers = #tpu.dot_dimension_numbers<[1], [0], [0], [1], [0, 0, 1, 1], [], []>} : vector<1x64xbf16>, vector<64x128xbf16>, vector<1x128xf32> -> vector<1x128xf32>
      %341 = arith.addf %340, %338 : vector<1x128xf32>
      %c0_176 = arith.constant 0 : index
      %c0_177 = arith.constant 0 : index
      %c0_178 = arith.constant 0 : index
      %342 = vector.load %arg33[%c0_176, %c0_177, %c0_178] : memref<1x1x128xf32, #tpu.memory_space<vmem>>, vector<1x1x128xf32>
      %343 = vector.shape_cast %342 : vector<1x1x128xf32> to vector<1x128xf32>
      %344 = vector.shape_cast %341 : vector<1x128xf32> to vector<1x1x128xf32>
      tpu.vector_store %arg33[%c0_176, %c0_177, %c0_178], %344 {strides = array<i32>} : memref<1x1x128xf32, #tpu.memory_space<vmem>>, vector<1x1x128xf32>,
      %c0_179 = arith.constant 0 : index
      %c0_180 = arith.constant 0 : index
      %c0_181 = arith.constant 0 : index
      %345 = vector.load %arg26[%c0_179, %c0_180, %c0_181] : memref<3x64x64xbf16, #tpu.memory_space<vmem>>, vector<1x64x64xbf16>
      %346 = vector.shape_cast %345 : vector<1x64x64xbf16> to vector<64x64xbf16>
      %c0_182 = arith.constant 0 : index
      %c0_183 = arith.constant 0 : index
      %c0_184 = arith.constant 0 : index
      %347 = vector.load %arg27[%c0_182, %c0_183, %c0_184] : memref<3x1x64xf32, #tpu.memory_space<vmem>>, vector<1x1x64xf32>
      %348 = vector.shape_cast %347 : vector<1x1x64xf32> to vector<1x64xf32>
      %349 = arith.truncf %237 : vector<1x64xf32> to vector<1x64xbf16>
      %cst_185 = arith.constant dense<0.000000e+00> : vector<1x64xf32>
      %350 = tpu.matmul %349, %346, %cst_185 {dimension_numbers = #tpu.dot_dimension_numbers<[1], [0], [0], [1], [0, 0, 1, 1], [], []>} : vector<1x64xbf16>, vector<64x64xbf16>, vector<1x64xf32> -> vector<1x64xf32>
      %351 = arith.addf %350, %348 : vector<1x64xf32>
      %c0_186 = arith.constant 0 : index
      %c0_187 = arith.constant 0 : index
      %c0_188 = arith.constant 0 : index
      %352 = vector.load %arg28[%c0_186, %c0_187, %c0_188] : memref<3x1x64xf32, #tpu.memory_space<vmem>>, vector<1x1x64xf32>
      %353 = vector.shape_cast %352 : vector<1x1x64xf32> to vector<1x64xf32>
      %c0_189 = arith.constant 0 : index
      %c0_190 = arith.constant 0 : index
      %c0_191 = arith.constant 0 : index
      %354 = vector.load %arg29[%c0_189, %c0_190, %c0_191] : memref<3x1x64xf32, #tpu.memory_space<vmem>>, vector<1x1x64xf32>
      %355 = vector.shape_cast %354 : vector<1x1x64xf32> to vector<1x64xf32>
      %cst_192 = arith.constant dense<0.000000e+00> : vector<1xf32>
      %356 = vector.multi_reduction <add>, %351, %cst_192 [1] : vector<1x64xf32> to vector<1xf32>
      %357 = vector.shape_cast %356 : vector<1xf32> to vector<1x1xf32>
      %cst_193 = arith.constant 6.400000e+01 : f32
      %358 = vector.broadcast %cst_193 : f32 to vector<1x1xf32>
      %359 = arith.divf %357, %358 : vector<1x1xf32>
      %360 = vector.broadcast %359 : vector<1x1xf32> to vector<1x64xf32>
      %361 = arith.subf %351, %360 : vector<1x64xf32>
      %362 = arith.mulf %361, %361 : vector<1x64xf32>
      %cst_194 = arith.constant dense<0.000000e+00> : vector<1xf32>
      %363 = vector.multi_reduction <add>, %362, %cst_194 [1] : vector<1x64xf32> to vector<1xf32>
      %364 = vector.shape_cast %363 : vector<1xf32> to vector<1x1xf32>
      %cst_195 = arith.constant 6.400000e+01 : f32
      %365 = vector.broadcast %cst_195 : f32 to vector<1x1xf32>
      %366 = arith.divf %364, %365 : vector<1x1xf32>
      %367 = vector.broadcast %359 : vector<1x1xf32> to vector<1x64xf32>
      %368 = arith.subf %351, %367 : vector<1x64xf32>
      %cst_196 = arith.constant 9.99999974E-6 : f32
      %369 = vector.broadcast %cst_196 : f32 to vector<1x1xf32>
      %370 = arith.addf %366, %369 : vector<1x1xf32>
      %371 = math.rsqrt %370 : vector<1x1xf32>
      %372 = vector.broadcast %371 : vector<1x1xf32> to vector<1x64xf32>
      %373 = arith.mulf %368, %372 : vector<1x64xf32>
      %374 = arith.mulf %373, %353 : vector<1x64xf32>
      %375 = arith.addf %374, %355 : vector<1x64xf32>
      %cst_197 = arith.constant 0.000000e+00 : f32
      %376 = vector.broadcast %cst_197 : f32 to vector<1x64xf32>
      %377 = arith.maximumf %375, %376 : vector<1x64xf32>
      %c1_198 = arith.constant 1 : index
      %c0_199 = arith.constant 0 : index
      %c0_200 = arith.constant 0 : index
      %378 = vector.load %arg26[%c1_198, %c0_199, %c0_200] : memref<3x64x64xbf16, #tpu.memory_space<vmem>>, vector<1x64x64xbf16>
      %379 = vector.shape_cast %378 : vector<1x64x64xbf16> to vector<64x64xbf16>
      %c1_201 = arith.constant 1 : index
      %c0_202 = arith.constant 0 : index
      %c0_203 = arith.constant 0 : index
      %380 = vector.load %arg27[%c1_201, %c0_202, %c0_203] : memref<3x1x64xf32, #tpu.memory_space<vmem>>, vector<1x1x64xf32>
      %381 = vector.shape_cast %380 : vector<1x1x64xf32> to vector<1x64xf32>
      %382 = arith.truncf %377 : vector<1x64xf32> to vector<1x64xbf16>
      %cst_204 = arith.constant dense<0.000000e+00> : vector<1x64xf32>
      %383 = tpu.matmul %382, %379, %cst_204 {dimension_numbers = #tpu.dot_dimension_numbers<[1], [0], [0], [1], [0, 0, 1, 1], [], []>} : vector<1x64xbf16>, vector<64x64xbf16>, vector<1x64xf32> -> vector<1x64xf32>
      %384 = arith.addf %383, %381 : vector<1x64xf32>
      %c1_205 = arith.constant 1 : index
      %c0_206 = arith.constant 0 : index
      %c0_207 = arith.constant 0 : index
      %385 = vector.load %arg28[%c1_205, %c0_206, %c0_207] : memref<3x1x64xf32, #tpu.memory_space<vmem>>, vector<1x1x64xf32>
      %386 = vector.shape_cast %385 : vector<1x1x64xf32> to vector<1x64xf32>
      %c1_208 = arith.constant 1 : index
      %c0_209 = arith.constant 0 : index
      %c0_210 = arith.constant 0 : index
      %387 = vector.load %arg29[%c1_208, %c0_209, %c0_210] : memref<3x1x64xf32, #tpu.memory_space<vmem>>, vector<1x1x64xf32>
      %388 = vector.shape_cast %387 : vector<1x1x64xf32> to vector<1x64xf32>
      %cst_211 = arith.constant dense<0.000000e+00> : vector<1xf32>
      %389 = vector.multi_reduction <add>, %384, %cst_211 [1] : vector<1x64xf32> to vector<1xf32>
      %390 = vector.shape_cast %389 : vector<1xf32> to vector<1x1xf32>
      %cst_212 = arith.constant 6.400000e+01 : f32
      %391 = vector.broadcast %cst_212 : f32 to vector<1x1xf32>
      %392 = arith.divf %390, %391 : vector<1x1xf32>
      %393 = vector.broadcast %392 : vector<1x1xf32> to vector<1x64xf32>
      %394 = arith.subf %384, %393 : vector<1x64xf32>
      %395 = arith.mulf %394, %394 : vector<1x64xf32>
      %cst_213 = arith.constant dense<0.000000e+00> : vector<1xf32>
      %396 = vector.multi_reduction <add>, %395, %cst_213 [1] : vector<1x64xf32> to vector<1xf32>
      %397 = vector.shape_cast %396 : vector<1xf32> to vector<1x1xf32>
      %cst_214 = arith.constant 6.400000e+01 : f32
      %398 = vector.broadcast %cst_214 : f32 to vector<1x1xf32>
      %399 = arith.divf %397, %398 : vector<1x1xf32>
      %400 = vector.broadcast %392 : vector<1x1xf32> to vector<1x64xf32>
      %401 = arith.subf %384, %400 : vector<1x64xf32>
      %cst_215 = arith.constant 9.99999974E-6 : f32
      %402 = vector.broadcast %cst_215 : f32 to vector<1x1xf32>
      %403 = arith.addf %399, %402 : vector<1x1xf32>
      %404 = math.rsqrt %403 : vector<1x1xf32>
      %405 = vector.broadcast %404 : vector<1x1xf32> to vector<1x64xf32>
      %406 = arith.mulf %401, %405 : vector<1x64xf32>
      %407 = arith.mulf %406, %386 : vector<1x64xf32>
      %408 = arith.addf %407, %388 : vector<1x64xf32>
      %cst_216 = arith.constant 0.000000e+00 : f32
      %409 = vector.broadcast %cst_216 : f32 to vector<1x64xf32>
      %410 = arith.maximumf %408, %409 : vector<1x64xf32>
      %c2_217 = arith.constant 2 : index
      %c0_218 = arith.constant 0 : index
      %c0_219 = arith.constant 0 : index
      %411 = vector.load %arg26[%c2_217, %c0_218, %c0_219] : memref<3x64x64xbf16, #tpu.memory_space<vmem>>, vector<1x64x64xbf16>
      %412 = vector.shape_cast %411 : vector<1x64x64xbf16> to vector<64x64xbf16>
      %c2_220 = arith.constant 2 : index
      %c0_221 = arith.constant 0 : index
      %c0_222 = arith.constant 0 : index
      %413 = vector.load %arg27[%c2_220, %c0_221, %c0_222] : memref<3x1x64xf32, #tpu.memory_space<vmem>>, vector<1x1x64xf32>
      %414 = vector.shape_cast %413 : vector<1x1x64xf32> to vector<1x64xf32>
      %415 = arith.truncf %410 : vector<1x64xf32> to vector<1x64xbf16>
      %cst_223 = arith.constant dense<0.000000e+00> : vector<1x64xf32>
      %416 = tpu.matmul %415, %412, %cst_223 {dimension_numbers = #tpu.dot_dimension_numbers<[1], [0], [0], [1], [0, 0, 1, 1], [], []>} : vector<1x64xbf16>, vector<64x64xbf16>, vector<1x64xf32> -> vector<1x64xf32>
      %417 = arith.addf %416, %414 : vector<1x64xf32>
      %c2_224 = arith.constant 2 : index
      %c0_225 = arith.constant 0 : index
      %c0_226 = arith.constant 0 : index
      %418 = vector.load %arg28[%c2_224, %c0_225, %c0_226] : memref<3x1x64xf32, #tpu.memory_space<vmem>>, vector<1x1x64xf32>
      %419 = vector.shape_cast %418 : vector<1x1x64xf32> to vector<1x64xf32>
      %c2_227 = arith.constant 2 : index
      %c0_228 = arith.constant 0 : index
      %c0_229 = arith.constant 0 : index
      %420 = vector.load %arg29[%c2_227, %c0_228, %c0_229] : memref<3x1x64xf32, #tpu.memory_space<vmem>>, vector<1x1x64xf32>
      %421 = vector.shape_cast %420 : vector<1x1x64xf32> to vector<1x64xf32>
      %cst_230 = arith.constant dense<0.000000e+00> : vector<1xf32>
      %422 = vector.multi_reduction <add>, %417, %cst_230 [1] : vector<1x64xf32> to vector<1xf32>
      %423 = vector.shape_cast %422 : vector<1xf32> to vector<1x1xf32>
      %cst_231 = arith.constant 6.400000e+01 : f32
      %424 = vector.broadcast %cst_231 : f32 to vector<1x1xf32>
      %425 = arith.divf %423, %424 : vector<1x1xf32>
      %426 = vector.broadcast %425 : vector<1x1xf32> to vector<1x64xf32>
      %427 = arith.subf %417, %426 : vector<1x64xf32>
      %428 = arith.mulf %427, %427 : vector<1x64xf32>
      %cst_232 = arith.constant dense<0.000000e+00> : vector<1xf32>
      %429 = vector.multi_reduction <add>, %428, %cst_232 [1] : vector<1x64xf32> to vector<1xf32>
      %430 = vector.shape_cast %429 : vector<1xf32> to vector<1x1xf32>
      %cst_233 = arith.constant 6.400000e+01 : f32
      %431 = vector.broadcast %cst_233 : f32 to vector<1x1xf32>
      %432 = arith.divf %430, %431 : vector<1x1xf32>
      %433 = vector.broadcast %425 : vector<1x1xf32> to vector<1x64xf32>
      %434 = arith.subf %417, %433 : vector<1x64xf32>
      %cst_234 = arith.constant 9.99999974E-6 : f32
      %435 = vector.broadcast %cst_234 : f32 to vector<1x1xf32>
      %436 = arith.addf %432, %435 : vector<1x1xf32>
      %437 = math.rsqrt %436 : vector<1x1xf32>
      %438 = vector.broadcast %437 : vector<1x1xf32> to vector<1x64xf32>
      %439 = arith.mulf %434, %438 : vector<1x64xf32>
      %440 = arith.mulf %439, %419 : vector<1x64xf32>
      %441 = arith.addf %440, %421 : vector<1x64xf32>
      %cst_235 = arith.constant 0.000000e+00 : f32
      %442 = vector.broadcast %cst_235 : f32 to vector<1x64xf32>
      %443 = arith.maximumf %441, %442 : vector<1x64xf32>
      %c0_236 = arith.constant 0 : index
      %c0_237 = arith.constant 0 : index
      %444 = vector.load %arg30[%c0_236, %c0_237] : memref<64x128xbf16, #tpu.memory_space<vmem>>, vector<64x128xbf16>
      %c0_238 = arith.constant 0 : index
      %c0_239 = arith.constant 0 : index
      %445 = vector.load %arg31[%c0_238, %c0_239] : memref<1x128xf32, #tpu.memory_space<vmem>>, vector<1x128xf32>
      %446 = arith.truncf %443 : vector<1x64xf32> to vector<1x64xbf16>
      %cst_240 = arith.constant dense<0.000000e+00> : vector<1x128xf32>
      %447 = tpu.matmul %446, %444, %cst_240 {dimension_numbers = #tpu.dot_dimension_numbers<[1], [0], [0], [1], [0, 0, 1, 1], [], []>} : vector<1x64xbf16>, vector<64x128xbf16>, vector<1x128xf32> -> vector<1x128xf32>
      %448 = arith.addf %447, %445 : vector<1x128xf32>
      %449 = tpu.iota {dimensions = array<i32: 1>} : vector<1x128xi32>
      %c3_i32 = arith.constant 3 : i32
      %450 = vector.broadcast %c3_i32 : i32 to vector<1x128xi32>
      %451 = arith.cmpi slt, %449, %450 : vector<1x128xi32>
      %cst_241 = arith.constant 0.000000e+00 : f32
      %452 = vector.broadcast %cst_241 : f32 to vector<1x128xf32>
      %453 = arith.select %451, %448, %452 : vector<1x128xi1>, vector<1x128xf32>
      %c0_242 = arith.constant 0 : index
      %c0_243 = arith.constant 0 : index
      %c0_244 = arith.constant 0 : index
      %454 = vector.load %arg34[%c0_242, %c0_243, %c0_244] : memref<1x1x128xf32, #tpu.memory_space<vmem>>, vector<1x1x128xf32>
      %455 = vector.shape_cast %454 : vector<1x1x128xf32> to vector<1x128xf32>
      %456 = vector.shape_cast %453 : vector<1x128xf32> to vector<1x1x128xf32>
      tpu.vector_store %arg34[%c0_242, %c0_243, %c0_244], %456 {strides = array<i32>} : memref<1x1x128xf32, #tpu.memory_space<vmem>>, vector<1x1x128xf32>,
    } else {
    }
    return
  }
  func.func @transform_0(%arg0: i32, %arg1: i32) -> (i32, i32, i32) {
    %c0_i32 = arith.constant 0 : i32
    %c0_i32_0 = arith.constant 0 : i32
    %c0_i32_1 = arith.constant 0 : i32
    return %arg0, %c0_i32, %c0_i32_0 : i32, i32, i32
  }
  func.func @transform_1(%arg0: i32, %arg1: i32) -> (i32, i32) {
    %c0_i32 = arith.constant 0 : i32
    %c0_i32_0 = arith.constant 0 : i32
    %c0_i32_1 = arith.constant 0 : i32
    return %c0_i32, %c0_i32_0 : i32, i32
  }
  func.func @transform_2(%arg0: i32, %arg1: i32) -> (i32, i32) {
    %c0_i32 = arith.constant 0 : i32
    %c0_i32_0 = arith.constant 0 : i32
    %c0_i32_1 = arith.constant 0 : i32
    return %c0_i32, %c0_i32_0 : i32, i32
  }
  func.func @transform_3(%arg0: i32, %arg1: i32) -> (i32, i32) {
    %c0_i32 = arith.constant 0 : i32
    %c0_i32_0 = arith.constant 0 : i32
    %c0_i32_1 = arith.constant 0 : i32
    return %c0_i32, %c0_i32_0 : i32, i32
  }
  func.func @transform_4(%arg0: i32, %arg1: i32) -> (i32, i32, i32, i32) {
    %c0_i32 = arith.constant 0 : i32
    %c0_i32_0 = arith.constant 0 : i32
    %c0_i32_1 = arith.constant 0 : i32
    %c0_i32_2 = arith.constant 0 : i32
    return %arg1, %c0_i32, %c0_i32_0, %c0_i32_1 : i32, i32, i32, i32
  }
  func.func @transform_5(%arg0: i32, %arg1: i32) -> (i32, i32, i32, i32) {
    %c0_i32 = arith.constant 0 : i32
    %c0_i32_0 = arith.constant 0 : i32
    %c0_i32_1 = arith.constant 0 : i32
    %c0_i32_2 = arith.constant 0 : i32
    return %arg1, %c0_i32, %c0_i32_0, %c0_i32_1 : i32, i32, i32, i32
  }
  func.func @transform_6(%arg0: i32, %arg1: i32) -> (i32, i32, i32) {
    %c0_i32 = arith.constant 0 : i32
    %c0_i32_0 = arith.constant 0 : i32
    %c0_i32_1 = arith.constant 0 : i32
    return %arg1, %c0_i32, %c0_i32_0 : i32, i32, i32
  }
  func.func @transform_7(%arg0: i32, %arg1: i32) -> (i32, i32, i32) {
    %c0_i32 = arith.constant 0 : i32
    %c0_i32_0 = arith.constant 0 : i32
    %c0_i32_1 = arith.constant 0 : i32
    return %arg1, %c0_i32, %c0_i32_0 : i32, i32, i32
  }
  func.func @transform_8(%arg0: i32, %arg1: i32) -> (i32, i32, i32) {
    %c0_i32 = arith.constant 0 : i32
    %c0_i32_0 = arith.constant 0 : i32
    %c0_i32_1 = arith.constant 0 : i32
    return %arg1, %c0_i32, %c0_i32_0 : i32, i32, i32
  }
  func.func @transform_9(%arg0: i32, %arg1: i32) -> (i32, i32, i32) {
    %c0_i32 = arith.constant 0 : i32
    %c0_i32_0 = arith.constant 0 : i32
    %c0_i32_1 = arith.constant 0 : i32
    return %arg1, %c0_i32, %c0_i32_0 : i32, i32, i32
  }
  func.func @transform_10(%arg0: i32, %arg1: i32) -> (i32, i32, i32) {
    %c0_i32 = arith.constant 0 : i32
    %c0_i32_0 = arith.constant 0 : i32
    %c0_i32_1 = arith.constant 0 : i32
    return %arg1, %c0_i32, %c0_i32_0 : i32, i32, i32
  }
  func.func @transform_11(%arg0: i32, %arg1: i32) -> (i32, i32, i32) {
    %c0_i32 = arith.constant 0 : i32
    %c0_i32_0 = arith.constant 0 : i32
    %c0_i32_1 = arith.constant 0 : i32
    return %arg1, %c0_i32, %c0_i32_0 : i32, i32, i32
  }
  func.func @transform_12(%arg0: i32, %arg1: i32) -> (i32, i32, i32) {
    %c0_i32 = arith.constant 0 : i32
    %c0_i32_0 = arith.constant 0 : i32
    %c0_i32_1 = arith.constant 0 : i32
    return %arg1, %c0_i32, %c0_i32_0 : i32, i32, i32
  }
  func.func @transform_13(%arg0: i32, %arg1: i32) -> (i32, i32, i32) {
    %c0_i32 = arith.constant 0 : i32
    %c0_i32_0 = arith.constant 0 : i32
    %c0_i32_1 = arith.constant 0 : i32
    return %arg1, %c0_i32, %c0_i32_0 : i32, i32, i32
  }
  func.func @transform_14(%arg0: i32, %arg1: i32) -> (i32, i32, i32) {
    %c0_i32 = arith.constant 0 : i32
    %c0_i32_0 = arith.constant 0 : i32
    %c0_i32_1 = arith.constant 0 : i32
    return %arg1, %c0_i32, %c0_i32_0 : i32, i32, i32
  }
  func.func @transform_15(%arg0: i32, %arg1: i32) -> (i32, i32, i32) {
    %c0_i32 = arith.constant 0 : i32
    %c0_i32_0 = arith.constant 0 : i32
    %c0_i32_1 = arith.constant 0 : i32
    return %arg1, %c0_i32, %c0_i32_0 : i32, i32, i32
  }
  func.func @transform_16(%arg0: i32, %arg1: i32) -> (i32, i32) {
    %c0_i32 = arith.constant 0 : i32
    %c0_i32_0 = arith.constant 0 : i32
    %c0_i32_1 = arith.constant 0 : i32
    return %c0_i32, %c0_i32_0 : i32, i32
  }
  func.func @transform_17(%arg0: i32, %arg1: i32) -> (i32, i32) {
    %c0_i32 = arith.constant 0 : i32
    %c0_i32_0 = arith.constant 0 : i32
    %c0_i32_1 = arith.constant 0 : i32
    return %c0_i32, %c0_i32_0 : i32, i32
  }
  func.func @transform_18(%arg0: i32, %arg1: i32) -> (i32, i32, i32) {
    %c0_i32 = arith.constant 0 : i32
    %c0_i32_0 = arith.constant 0 : i32
    %c0_i32_1 = arith.constant 0 : i32
    %c0_i32_2 = arith.constant 0 : i32
    return %c0_i32, %c0_i32_0, %c0_i32_1 : i32, i32, i32
  }
  func.func @transform_19(%arg0: i32, %arg1: i32) -> (i32, i32, i32) {
    %c0_i32 = arith.constant 0 : i32
    %c0_i32_0 = arith.constant 0 : i32
    %c0_i32_1 = arith.constant 0 : i32
    %c0_i32_2 = arith.constant 0 : i32
    return %c0_i32, %c0_i32_0, %c0_i32_1 : i32, i32, i32
  }
  func.func @transform_20(%arg0: i32, %arg1: i32) -> (i32, i32, i32) {
    %c0_i32 = arith.constant 0 : i32
    %c0_i32_0 = arith.constant 0 : i32
    %c0_i32_1 = arith.constant 0 : i32
    %c0_i32_2 = arith.constant 0 : i32
    return %c0_i32, %c0_i32_0, %c0_i32_1 : i32, i32, i32
  }
  func.func @transform_21(%arg0: i32, %arg1: i32) -> (i32, i32, i32) {
    %c0_i32 = arith.constant 0 : i32
    %c0_i32_0 = arith.constant 0 : i32
    %c0_i32_1 = arith.constant 0 : i32
    %c0_i32_2 = arith.constant 0 : i32
    return %c0_i32, %c0_i32_0, %c0_i32_1 : i32, i32, i32
  }
  func.func @transform_22(%arg0: i32, %arg1: i32) -> (i32, i32) {
    %c0_i32 = arith.constant 0 : i32
    %c0_i32_0 = arith.constant 0 : i32
    %c0_i32_1 = arith.constant 0 : i32
    return %c0_i32, %c0_i32_0 : i32, i32
  }
  func.func @transform_23(%arg0: i32, %arg1: i32) -> (i32, i32) {
    %c0_i32 = arith.constant 0 : i32
    %c0_i32_0 = arith.constant 0 : i32
    %c0_i32_1 = arith.constant 0 : i32
    return %c0_i32, %c0_i32_0 : i32, i32
  }
  func.func @transform_24(%arg0: i32, %arg1: i32) -> (i32, i32, i32) {
    %c0_i32 = arith.constant 0 : i32
    %c0_i32_0 = arith.constant 0 : i32
    %c0_i32_1 = arith.constant 0 : i32
    %c0_i32_2 = arith.constant 0 : i32
    return %c0_i32, %c0_i32_0, %c0_i32_1 : i32, i32, i32
  }
  func.func @transform_25(%arg0: i32, %arg1: i32) -> (i32, i32, i32) {
    %c0_i32 = arith.constant 0 : i32
    %c0_i32_0 = arith.constant 0 : i32
    %c0_i32_1 = arith.constant 0 : i32
    %c0_i32_2 = arith.constant 0 : i32
    return %c0_i32, %c0_i32_0, %c0_i32_1 : i32, i32, i32
  }
  func.func @transform_26(%arg0: i32, %arg1: i32) -> (i32, i32, i32) {
    %c0_i32 = arith.constant 0 : i32
    %c0_i32_0 = arith.constant 0 : i32
    %c0_i32_1 = arith.constant 0 : i32
    %c0_i32_2 = arith.constant 0 : i32
    return %c0_i32, %c0_i32_0, %c0_i32_1 : i32, i32, i32
  }
  func.func @transform_27(%arg0: i32, %arg1: i32) -> (i32, i32, i32) {
    %c0_i32 = arith.constant 0 : i32
    %c0_i32_0 = arith.constant 0 : i32
    %c0_i32_1 = arith.constant 0 : i32
    %c0_i32_2 = arith.constant 0 : i32
    return %c0_i32, %c0_i32_0, %c0_i32_1 : i32, i32, i32
  }
  func.func @transform_28(%arg0: i32, %arg1: i32) -> (i32, i32) {
    %c0_i32 = arith.constant 0 : i32
    %c0_i32_0 = arith.constant 0 : i32
    %c0_i32_1 = arith.constant 0 : i32
    return %c0_i32, %c0_i32_0 : i32, i32
  }
  func.func @transform_29(%arg0: i32, %arg1: i32) -> (i32, i32) {
    %c0_i32 = arith.constant 0 : i32
    %c0_i32_0 = arith.constant 0 : i32
    %c0_i32_1 = arith.constant 0 : i32
    return %c0_i32, %c0_i32_0 : i32, i32
  }
  func.func @transform_30(%arg0: i32, %arg1: i32) -> (i32, i32, i32) {
    %c0_i32 = arith.constant 0 : i32
    %c0_i32_0 = arith.constant 0 : i32
    %c0_i32_1 = arith.constant 0 : i32
    return %arg0, %c0_i32, %c0_i32_0 : i32, i32, i32
  }
  func.func @transform_31(%arg0: i32, %arg1: i32) -> (i32, i32, i32) {
    %c0_i32 = arith.constant 0 : i32
    %c0_i32_0 = arith.constant 0 : i32
    %c0_i32_1 = arith.constant 0 : i32
    return %arg0, %c0_i32, %c0_i32_0 : i32, i32, i32
  }
  func.func @transform_32(%arg0: i32, %arg1: i32) -> (i32, i32, i32) {
    %c0_i32 = arith.constant 0 : i32
    %c0_i32_0 = arith.constant 0 : i32
    %c0_i32_1 = arith.constant 0 : i32
    return %arg0, %c0_i32, %c0_i32_0 : i32, i32, i32
  }
}

</mosaic_0001>

<llo_original>
// kernel: tpu_custom_call.1
$region0: #{tpu_custom_call.1}
  #allocation0 [shape = 'u32[]', space=smem, size = 0x4, offset = 0x4, fixed_abs, tag = 'smem constant byte address 0x4 - core index']
  #allocation1 [shape = 'u32[144,128]{1,0:T(1,128)}', space=vmem, size = 0x12000, scoped, tag = 'internal scratch']
  #allocation2 [shape = 'f32[8,64]{1,0:T(8,128)}', space=vmem, size = 0x1000, scoped, tag = 'scratch operand']
  %s0 = inlined_call_operand.smem [shape: u32[33], index: -1, kind: input, shape index: {}]
  %s1 = sld [smem:[%s0]]
  %s2 = scalar_lea.smem %s0, 1
  %s3 = sld [smem:[%s2]]
  %s4 = scalar_lea.smem %s0, 2
  %s5 = sld [smem:[%s4]]
  %s6 = scalar_lea.smem %s0, 3
  %s7 = sld [smem:[%s6]]
  %s8 = scalar_lea.smem %s0, 4
  %s9 = sld [smem:[%s8]]
  %s10 = scalar_lea.smem %s0, 5
  %s11 = sld [smem:[%s10]]
  %s12 = scalar_lea.smem %s0, 6
  %s13 = sld [smem:[%s12]]
  %s14 = scalar_lea.smem %s0, 7
  %s15 = sld [smem:[%s14]]
  %s16 = scalar_lea.smem %s0, 8
  %s17 = sld [smem:[%s16]]
  %s18 = scalar_lea.smem %s0, 9
  %s19 = sld [smem:[%s18]]
  %s20 = scalar_lea.smem %s0, 10
  %s21 = sld [smem:[%s20]]
  %s22 = scalar_lea.smem %s0, 11
  %s23 = sld [smem:[%s22]]
  %s24 = scalar_lea.smem %s0, 12
  %s25 = sld [smem:[%s24]]
  %s26 = scalar_lea.smem %s0, 13
  %s27 = sld [smem:[%s26]]
  %s28 = scalar_lea.smem %s0, 14
  %s29 = sld [smem:[%s28]]
  %s30 = scalar_lea.smem %s0, 15
  %s31 = sld [smem:[%s30]]
  %s32 = scalar_lea.smem %s0, 16
  %s33 = sld [smem:[%s32]]
  %s34 = scalar_lea.smem %s0, 17
  %s35 = sld [smem:[%s34]]
  %s36 = scalar_lea.smem %s0, 18
  %s37 = sld [smem:[%s36]]
  %s38 = scalar_lea.smem %s0, 19
  %s39 = sld [smem:[%s38]]
  %s40 = scalar_lea.smem %s0, 20
  %s41 = sld [smem:[%s40]]
  %s42 = scalar_lea.smem %s0, 21
  %s43 = sld [smem:[%s42]]
  %s44 = scalar_lea.smem %s0, 22
  %s45 = sld [smem:[%s44]]
  %s46 = scalar_lea.smem %s0, 23
  %s47 = sld [smem:[%s46]]
  %s48 = scalar_lea.smem %s0, 24
  %s49 = sld [smem:[%s48]]
  %s50 = scalar_lea.smem %s0, 25
  %s51 = sld [smem:[%s50]]
  %s52 = scalar_lea.smem %s0, 26
  %s53 = sld [smem:[%s52]]
  %s54 = scalar_lea.smem %s0, 27
  %s55 = sld [smem:[%s54]]
  %s56 = scalar_lea.smem %s0, 28
  %s57 = sld [smem:[%s56]]
  %s58 = scalar_lea.smem %s0, 29
  %s59 = sld [smem:[%s58]]
  %s60 = scalar_lea.smem %s0, 30
  %s61 = sld [smem:[%s60]]
  %s62 = scalar_lea.smem %s0, 31
  %s63 = sld [smem:[%s62]]
  %s64 = scalar_lea.smem %s0, 32
  %s65 = sld [smem:[%s64]]
  %66 = xla_tuple %s61, %s63, %s65
  %s67 = sld [smem:[#allocation0]]
  $region265: #{tpu_custom_call.1} parent=0
    _
  %s69 = ssub.s32 1, %s67
  %s70 = scalar_select 0, %s69, %s67
  $region1: #{tpu_custom_call.1} parent=0
    #allocation3 [shape = 'u8[1024]{0}', space=vmem, size = 0x400, scoped, tag = 'input window, operand 1, single buffered']
    #allocation4 [shape = 's32[2]{0}', space=sflag, size = 0x8, scoped, tag = 'scoped memory for tpu_custom_call.1']
    #allocation5 [shape = 's32[2]{0}', space=sflag, size = 0x8, scoped, tag = 'scoped memory for tpu_custom_call.1']
    #allocation6 [shape = 'u8[4096]{0}', space=vmem, size = 0x1000, scoped, tag = 'input window, operand 3, single buffered']
    #allocation7 [shape = 's32[1]{0}', space=sflag, size = 0x4, scoped, tag = 'scoped memory for tpu_custom_call.1']
    #allocation8 [shape = 'u8[3072]{0}', space=vmem, size = 0xc00, scoped, tag = 'input window, operand 5']
    #allocation9 [shape = 'u8[1024]{0}', space=vmem, size = 0x400, scoped, tag = 'input window, operand 7']
    #allocation10 [shape = 'u8[2048]{0}', space=vmem, size = 0x800, scoped, tag = 'input window, operand 9']
    #allocation11 [shape = 'u8[1024]{0}', space=vmem, size = 0x400, scoped, tag = 'input window, operand 11']
    #allocation12 [shape = 'u8[1024]{0}', space=vmem, size = 0x400, scoped, tag = 'input window, operand 12']
    #allocation13 [shape = 'u8[1024]{0}', space=vmem, size = 0x400, scoped, tag = 'input window, operand 13']
    #allocation14 [shape = 'u8[1024]{0}', space=vmem, size = 0x400, scoped, tag = 'input window, operand 14']
    #allocation15 [shape = 'u8[1024]{0}', space=vmem, size = 0x400, scoped, tag = 'input window, operand 15']
    #allocation16 [shape = 'u8[32768]{0}', space=vmem, size = 0x8000, scoped, tag = 'input window, operand 16, single buffered']
    #allocation17 [shape = 'u8[1024]{0}', space=vmem, size = 0x400, scoped, tag = 'input window, operand 17, single buffered']
    #allocation18 [shape = 's32[1]{0}', space=sflag, size = 0x4, scoped, tag = 'scoped memory for tpu_custom_call.1']
    #allocation19 [shape = 'u8[49152]{0}', space=vmem, size = 0xc000, scoped, tag = 'input window, operand 18, single buffered']
    #allocation20 [shape = 'u8[1536]{0}', space=vmem, size = 0x800, scoped, tag = 'input window, operand 19, single buffered']
    #allocation21 [shape = 's32[1]{0}', space=sflag, size = 0x4, scoped, tag = 'scoped memory for tpu_custom_call.1']
    #allocation22 [shape = 'u8[1536]{0}', space=vmem, size = 0x800, scoped, tag = 'input window, operand 20, single buffered']
    #allocation23 [shape = 'u8[1536]{0}', space=vmem, size = 0x800, scoped, tag = 'input window, operand 21, single buffered']
    #allocation24 [shape = 's32[1]{0}', space=sflag, size = 0x4, scoped, tag = 'scoped memory for tpu_custom_call.1']
    #allocation25 [shape = 'u8[16384]{0}', space=vmem, size = 0x4000, scoped, tag = 'input window, operand 22, single buffered']
    #allocation26 [shape = 'u8[512]{0}', space=vmem, size = 0x400, scoped, tag = 'input window, operand 23, single buffered']
    #allocation27 [shape = 's32[1]{0}', space=sflag, size = 0x4, scoped, tag = 'scoped memory for tpu_custom_call.1']
    #allocation28 [shape = 'u8[1536]{0}', space=vmem, size = 0x800, scoped, tag = 'input window, operand 25, single buffered']
    #allocation29 [shape = 'u8[1536]{0}', space=vmem, size = 0x800, scoped, tag = 'input window, operand 26, single buffered']
    #allocation30 [shape = 's32[1]{0}', space=sflag, size = 0x4, scoped, tag = 'scoped memory for tpu_custom_call.1']
    #allocation31 [shape = 'u8[1536]{0}', space=vmem, size = 0x800, scoped, tag = 'input window, operand 27, single buffered']
    #allocation32 [shape = 'u8[512]{0}', space=vmem, size = 0x400, scoped, tag = 'input window, operand 29, single buffered']
    #allocation33 [shape = 's32[1]{0}', space=sflag, size = 0x4, scoped, tag = 'scoped memory for tpu_custom_call.1']
    #allocation34 [shape = 'u8[2048]{0}', space=vmem, size = 0x800, scoped, tag = 'output window, operand 0']
    #allocation35 [shape = 'u8[1024]{0}', space=vmem, size = 0x400, scoped, tag = 'output window, operand 1']
    #allocation36 [shape = 's32[2]{0}', space=sflag, size = 0x8, scoped, tag = 'scoped memory for tpu_custom_call.1']
    #allocation37 [shape = 'u8[1024]{0}', space=vmem, size = 0x400, scoped, tag = 'output window, operand 2']
    %71 = vsyncpa [#allocation4], 0
    %72 = vsyncpa [#allocation7], 0
    %73 = vsyncpa [#allocation18], 0
    %74 = vsyncpa [#allocation21], 0
    %75 = vsyncpa [#allocation24], 0
    %76 = vsyncpa [#allocation27], 0
    %77 = vsyncpa [#allocation30], 0
    %78 = vsyncpa [#allocation33], 0
    %79 = vsyncpa [#allocation5], 0
    %s80 = scalar_lea.sflag [#allocation5], 1
    %81 = vsyncpa %s80, 0
    %82 = vsyncpa [#allocation36], 0
    %s83 = scalar_lea.sflag [#allocation36], 1
    %84 = vsyncpa %s83, 0
    loop: start=0, step=1, limit=14
    $region2: #{tpu_custom_call.1} parent=1 // loop_pre_header
      _
    $region3: #{tpu_custom_call.1} parent=1 // loop_header
      %s86 = sphi 0, %s90
      %p87 = scmp.ge.s32.totalorder %s86, 14
      %s93 = sphi 0, %s105
      %s94 = sphi 0, %s101
      %s95 = sphi 0, %s93
      %s96 = sphi 0, %s94
      %s97 = sphi 0, %s95
      %s98 = sphi 0, %s96
      %s108 = sphi 0, %s110
      %s111 = sphi 0, %s108
      %s112 = sphi 0, %s111
      %s128 = sphi 0, %s112
      %s132 = sphi 0, %s132
      %s134 = sphi 0, %s132
      %s135 = sphi 0, %s134
      %s149 = sphi 0, %s135
      %s153 = sphi 0, %s153
      %s155 = sphi 0, %s153
      %s156 = sphi 0, %s155
      %s170 = sphi 0, %s156
      %s174 = sphi 0, %s174
      %s176 = sphi 0, %s174
      %s177 = sphi 0, %s176
      %s191 = sphi 0, %s177
      %s197 = sphi 0, %s199
      %s200 = sphi 0, %s197
      %s201 = sphi 0, %s200
      %s217 = sphi 0, %s201
      %s223 = sphi 0, %s225
      %s226 = sphi 0, %s223
      %s227 = sphi 0, %s226
      %s243 = sphi 0, %s227
      %s249 = sphi 0, %s251
      %s252 = sphi 0, %s249
      %s253 = sphi 0, %s252
      %s269 = sphi 0, %s253
      %s275 = sphi 0, %s277
      %s278 = sphi 0, %s275
      %s279 = sphi 0, %s278
      %s295 = sphi 0, %s279
      %s301 = sphi 0, %s303
      %s304 = sphi 0, %s301
      %s305 = sphi 0, %s304
      %s321 = sphi 0, %s305
      %s327 = sphi 0, %s329
      %s330 = sphi 0, %s327
      %s331 = sphi 0, %s330
      %s347 = sphi 0, %s331
      %s353 = sphi 0, %s355
      %s356 = sphi 0, %s353
      %s357 = sphi 0, %s356
      %s373 = sphi 0, %s357
      %s379 = sphi 0, %s381
      %s382 = sphi 0, %s379
      %s383 = sphi 0, %s382
      %s399 = sphi 0, %s383
      %s405 = sphi 0, %s407
      %s408 = sphi 0, %s405
      %s409 = sphi 0, %s408
      %s425 = sphi 0, %s409
      %s431 = sphi 0, %s433
      %s434 = sphi 0, %s431
      %s435 = sphi 0, %s434
      %s451 = sphi 0, %s435
      %s457 = sphi 0, %s459
      %s460 = sphi 0, %s457
      %s461 = sphi 0, %s460
      %s477 = sphi 0, %s461
      %s483 = sphi 0, %s485
      %s486 = sphi 0, %s483
      %s487 = sphi 0, %s486
      %s503 = sphi 0, %s487
      %s507 = sphi 0, %s507
      %s509 = sphi 0, %s507
      %s510 = sphi 0, %s509
      %s524 = sphi 0, %s510
      %s528 = sphi 0, %s528
      %s530 = sphi 0, %s528
      %s531 = sphi 0, %s530
      %s545 = sphi 0, %s531
      %s549 = sphi 0, %s549
      %s551 = sphi 0, %s549
      %s552 = sphi 0, %s551
      %s566 = sphi 0, %s552
      %s570 = sphi 0, %s570
      %s572 = sphi 0, %s570
      %s573 = sphi 0, %s572
      %s587 = sphi 0, %s573
      %s591 = sphi 0, %s591
      %s593 = sphi 0, %s591
      %s594 = sphi 0, %s593
      %s608 = sphi 0, %s594
      %s612 = sphi 0, %s612
      %s614 = sphi 0, %s612
      %s615 = sphi 0, %s614
      %s629 = sphi 0, %s615
      %s633 = sphi 0, %s633
      %s635 = sphi 0, %s633
      %s636 = sphi 0, %s635
      %s650 = sphi 0, %s636
      %s654 = sphi 0, %s654
      %s656 = sphi 0, %s654
      %s657 = sphi 0, %s656
      %s671 = sphi 0, %s657
      %s675 = sphi 0, %s675
      %s677 = sphi 0, %s675
      %s678 = sphi 0, %s677
      %s692 = sphi 0, %s678
      %s696 = sphi 0, %s696
      %s698 = sphi 0, %s696
      %s699 = sphi 0, %s698
      %s713 = sphi 0, %s699
      %s717 = sphi 0, %s717
      %s719 = sphi 0, %s717
      %s720 = sphi 0, %s719
      %s734 = sphi 0, %s720
      %s738 = sphi 0, %s738
      %s740 = sphi 0, %s738
      %s741 = sphi 0, %s740
      %s755 = sphi 0, %s741
      %s759 = sphi 0, %s759
      %s761 = sphi 0, %s759
      %s762 = sphi 0, %s761
      %s776 = sphi 0, %s762
      %s780 = sphi 0, %s780
      %s782 = sphi 0, %s780
      %s783 = sphi 0, %s782
      %s797 = sphi 0, %s783
      %s803 = sphi 0, %s805
      %s806 = sphi 0, %s803
      %s807 = sphi 0, %s806
      %s823 = sphi 0, %s807
      %s829 = sphi 0, %s831
      %s832 = sphi 0, %s829
      %s833 = sphi 0, %s832
      %s849 = sphi 0, %s833
      %s855 = sphi 0, %s857
      %s858 = sphi 0, %s855
      %s859 = sphi 0, %s858
      %s875 = sphi 0, %s859
    $region4: #{tpu_custom_call.1} parent=1 // loop_header_branch
      %89 = sbr.rel (%p87) target = $region8
    $region5: #{tpu_custom_call.1} parent=1 // loop_body
      %s91 = ssub.s32 %s86, 1
      %s92 = ssub.s32 %s86, 2
      %s99 = sadd.s32 1, %s94
      %p100 = scmp.ge.s32.totalorder %s99, 6
      %s101 = scalar_select %p100, 0, %s99
      %s102 = sadd.s32 1, %s93
      %s103 = scalar_select %p100, %s102, %s93
      %p104 = scmp.ge.s32.totalorder %s103, 2
      %s105 = scalar_select %p104, 0, %s103
      %s106 = ssub.s32 %s93, %s105
      %p107 = scmp.eq.s32.totalorder %s106, 0
      %s109 = sadd.s32 %s108, 1
      %s110 = scalar_select %p107, %s108, %s109
      %p113 = pneg %p107
      %p114 = scmp.eq.s32.totalorder %s86, 11
      %p115 = por %p113, %p114
      %p116 = scmp.ne.s32.totalorder %s108, %s111
      %p117 = scmp.eq.s32.totalorder %s86, 0
      %p118 = por %p116, %p117
      %p119 = scmp.ne.s32.totalorder %s108, %s111
      %p120 = scmp.eq.s32.totalorder %s91, 11
      %p121 = por %p119, %p120
      %p122 = scmp.ne.s32.totalorder %s111, %s112
      %p123 = scmp.eq.s32.totalorder %s91, 0
      %p124 = por %p122, %p123
      %p125 = scmp.ne.s32.totalorder %s111, %s112
      %p126 = scmp.eq.s32.totalorder %s92, 11
      %p127 = por %p125, %p126
      %p129 = scmp.ne.s32.totalorder %s112, %s128
      %p130 = scmp.eq.s32.totalorder %s92, 0
      %p131 = por %p129, %p130
      %s133 = sadd.s32 %s132, 1
      %p136 = scmp.eq.s32.totalorder %s86, 11
      %p137 = scmp.ne.s32.totalorder %s132, %s134
      %p138 = scmp.eq.s32.totalorder %s86, 0
      %p139 = por %p137, %p138
      %p140 = scmp.ne.s32.totalorder %s132, %s134
      %p141 = scmp.eq.s32.totalorder %s91, 11
      %p142 = por %p140, %p141
      %p143 = scmp.ne.s32.totalorder %s134, %s135
      %p144 = scmp.eq.s32.totalorder %s91, 0
      %p145 = por %p143, %p144
      %p146 = scmp.ne.s32.totalorder %s134, %s135
      %p147 = scmp.eq.s32.totalorder %s92, 11
      %p148 = por %p146, %p147
      %p150 = scmp.ne.s32.totalorder %s135, %s149
      %p151 = scmp.eq.s32.totalorder %s92, 0
      %p152 = por %p150, %p151
      %s154 = sadd.s32 %s153, 1
      %p157 = scmp.eq.s32.totalorder %s86, 11
      %p158 = scmp.ne.s32.totalorder %s153, %s155
      %p159 = scmp.eq.s32.totalorder %s86, 0
      %p160 = por %p158, %p159
      %p161 = scmp.ne.s32.totalorder %s153, %s155
      %p162 = scmp.eq.s32.totalorder %s91, 11
      %p163 = por %p161, %p162
      %p164 = scmp.ne.s32.totalorder %s155, %s156
      %p165 = scmp.eq.s32.totalorder %s91, 0
      %p166 = por %p164, %p165
      %p167 = scmp.ne.s32.totalorder %s155, %s156
      %p168 = scmp.eq.s32.totalorder %s92, 11
      %p169 = por %p167, %p168
      %p171 = scmp.ne.s32.totalorder %s156, %s170
      %p172 = scmp.eq.s32.totalorder %s92, 0
      %p173 = por %p171, %p172
      %s175 = sadd.s32 %s174, 1
      %p178 = scmp.eq.s32.totalorder %s86, 11
      %p179 = scmp.ne.s32.totalorder %s174, %s176
      %p180 = scmp.eq.s32.totalorder %s86, 0
      %p181 = por %p179, %p180
      %p182 = scmp.ne.s32.totalorder %s174, %s176
      %p183 = scmp.eq.s32.totalorder %s91, 11
      %p184 = por %p182, %p183
      %p185 = scmp.ne.s32.totalorder %s176, %s177
      %p186 = scmp.eq.s32.totalorder %s91, 0
      %p187 = por %p185, %p186
      %p188 = scmp.ne.s32.totalorder %s176, %s177
      %p189 = scmp.eq.s32.totalorder %s92, 11
      %p190 = por %p188, %p189
      %p192 = scmp.ne.s32.totalorder %s177, %s191
      %p193 = scmp.eq.s32.totalorder %s92, 0
      %p194 = por %p192, %p193
      %s195 = ssub.s32 %s94, %s101
      %p196 = scmp.eq.s32.totalorder %s195, 0
      %s198 = sadd.s32 %s197, 1
      %s199 = scalar_select %p196, %s197, %s198
      %p202 = pneg %p196
      %p203 = scmp.eq.s32.totalorder %s86, 11
      %p204 = por %p202, %p203
      %p205 = scmp.ne.s32.totalorder %s197, %s200
      %p206 = scmp.eq.s32.totalorder %s86, 0
      %p207 = por %p205, %p206
      %p208 = scmp.ne.s32.totalorder %s197, %s200
      %p209 = scmp.eq.s32.totalorder %s91, 11
      %p210 = por %p208, %p209
      %p211 = scmp.ne.s32.totalorder %s200, %s201
      %p212 = scmp.eq.s32.totalorder %s91, 0
      %p213 = por %p211, %p212
      %p214 = scmp.ne.s32.totalorder %s200, %s201
      %p215 = scmp.eq.s32.totalorder %s92, 11
      %p216 = por %p214, %p215
      %p218 = scmp.ne.s32.totalorder %s201, %s217
      %p219 = scmp.eq.s32.totalorder %s92, 0
      %p220 = por %p218, %p219
      %s221 = ssub.s32 %s94, %s101
      %p222 = scmp.eq.s32.totalorder %s221, 0
      %s224 = sadd.s32 %s223, 1
      %s225 = scalar_select %p222, %s223, %s224
      %p228 = pneg %p222
      %p229 = scmp.eq.s32.totalorder %s86, 11
      %p230 = por %p228, %p229
      %p231 = scmp.ne.s32.totalorder %s223, %s226
      %p232 = scmp.eq.s32.totalorder %s86, 0
      %p233 = por %p231, %p232
      %p234 = scmp.ne.s32.totalorder %s223, %s226
      %p235 = scmp.eq.s32.totalorder %s91, 11
      %p236 = por %p234, %p235
      %p237 = scmp.ne.s32.totalorder %s226, %s227
      %p238 = scmp.eq.s32.totalorder %s91, 0
      %p239 = por %p237, %p238
      %p240 = scmp.ne.s32.totalorder %s226, %s227
      %p241 = scmp.eq.s32.totalorder %s92, 11
      %p242 = por %p240, %p241
      %p244 = scmp.ne.s32.totalorder %s227, %s243
      %p245 = scmp.eq.s32.totalorder %s92, 0
      %p246 = por %p244, %p245
      %s247 = ssub.s32 %s94, %s101
      %p248 = scmp.eq.s32.totalorder %s247, 0
      %s250 = sadd.s32 %s249, 1
      %s251 = scalar_select %p248, %s249, %s250
      %p254 = pneg %p248
      %p255 = scmp.eq.s32.totalorder %s86, 11
      %p256 = por %p254, %p255
      %p257 = scmp.ne.s32.totalorder %s249, %s252
      %p258 = scmp.eq.s32.totalorder %s86, 0
      %p259 = por %p257, %p258
      %p260 = scmp.ne.s32.totalorder %s249, %s252
      %p261 = scmp.eq.s32.totalorder %s91, 11
      %p262 = por %p260, %p261
      %p263 = scmp.ne.s32.totalorder %s252, %s253
      %p264 = scmp.eq.s32.totalorder %s91, 0
      %p265 = por %p263, %p264
      %p266 = scmp.ne.s32.totalorder %s252, %s253
      %p267 = scmp.eq.s32.totalorder %s92, 11
      %p268 = por %p266, %p267
      %p270 = scmp.ne.s32.totalorder %s253, %s269
      %p271 = scmp.eq.s32.totalorder %s92, 0
      %p272 = por %p270, %p271
      %s273 = ssub.s32 %s94, %s101
      %p274 = scmp.eq.s32.totalorder %s273, 0
      %s276 = sadd.s32 %s275, 1
      %s277 = scalar_select %p274, %s275, %s276
      %p280 = pneg %p274
      %p281 = scmp.eq.s32.totalorder %s86, 11
      %p282 = por %p280, %p281
      %p283 = scmp.ne.s32.totalorder %s275, %s278
      %p284 = scmp.eq.s32.totalorder %s86, 0
      %p285 = por %p283, %p284
      %p286 = scmp.ne.s32.totalorder %s275, %s278
      %p287 = scmp.eq.s32.totalorder %s91, 11
      %p288 = por %p286, %p287
      %p289 = scmp.ne.s32.totalorder %s278, %s279
      %p290 = scmp.eq.s32.totalorder %s91, 0
      %p291 = por %p289, %p290
      %p292 = scmp.ne.s32.totalorder %s278, %s279
      %p293 = scmp.eq.s32.totalorder %s92, 11
      %p294 = por %p292, %p293
      %p296 = scmp.ne.s32.totalorder %s279, %s295
      %p297 = scmp.eq.s32.totalorder %s92, 0
      %p298 = por %p296, %p297
      %s299 = ssub.s32 %s94, %s101
      %p300 = scmp.eq.s32.totalorder %s299, 0
      %s302 = sadd.s32 %s301, 1
      %s303 = scalar_select %p300, %s301, %s302
      %p306 = pneg %p300
      %p307 = scmp.eq.s32.totalorder %s86, 11
      %p308 = por %p306, %p307
      %p309 = scmp.ne.s32.totalorder %s301, %s304
      %p310 = scmp.eq.s32.totalorder %s86, 0
      %p311 = por %p309, %p310
      %p312 = scmp.ne.s32.totalorder %s301, %s304
      %p313 = scmp.eq.s32.totalorder %s91, 11
      %p314 = por %p312, %p313
      %p315 = scmp.ne.s32.totalorder %s304, %s305
      %p316 = scmp.eq.s32.totalorder %s91, 0
      %p317 = por %p315, %p316
      %p318 = scmp.ne.s32.totalorder %s304, %s305
      %p319 = scmp.eq.s32.totalorder %s92, 11
      %p320 = por %p318, %p319
      %p322 = scmp.ne.s32.totalorder %s305, %s321
      %p323 = scmp.eq.s32.totalorder %s92, 0
      %p324 = por %p322, %p323
      %s325 = ssub.s32 %s94, %s101
      %p326 = scmp.eq.s32.totalorder %s325, 0
      %s328 = sadd.s32 %s327, 1
      %s329 = scalar_select %p326, %s327, %s328
      %p332 = pneg %p326
      %p333 = scmp.eq.s32.totalorder %s86, 11
      %p334 = por %p332, %p333
      %p335 = scmp.ne.s32.totalorder %s327, %s330
      %p336 = scmp.eq.s32.totalorder %s86, 0
      %p337 = por %p335, %p336
      %p338 = scmp.ne.s32.totalorder %s327, %s330
      %p339 = scmp.eq.s32.totalorder %s91, 11
      %p340 = por %p338, %p339
      %p341 = scmp.ne.s32.totalorder %s330, %s331
      %p342 = scmp.eq.s32.totalorder %s91, 0
      %p343 = por %p341, %p342
      %p344 = scmp.ne.s32.totalorder %s330, %s331
      %p345 = scmp.eq.s32.totalorder %s92, 11
      %p346 = por %p344, %p345
      %p348 = scmp.ne.s32.totalorder %s331, %s347
      %p349 = scmp.eq.s32.totalorder %s92, 0
      %p350 = por %p348, %p349
      %s351 = ssub.s32 %s94, %s101
      %p352 = scmp.eq.s32.totalorder %s351, 0
      %s354 = sadd.s32 %s353, 1
      %s355 = scalar_select %p352, %s353, %s354
      %p358 = pneg %p352
      %p359 = scmp.eq.s32.totalorder %s86, 11
      %p360 = por %p358, %p359
      %p361 = scmp.ne.s32.totalorder %s353, %s356
      %p362 = scmp.eq.s32.totalorder %s86, 0
      %p363 = por %p361, %p362
      %p364 = scmp.ne.s32.totalorder %s353, %s356
      %p365 = scmp.eq.s32.totalorder %s91, 11
      %p366 = por %p364, %p365
      %p367 = scmp.ne.s32.totalorder %s356, %s357
      %p368 = scmp.eq.s32.totalorder %s91, 0
      %p369 = por %p367, %p368
      %p370 = scmp.ne.s32.totalorder %s356, %s357
      %p371 = scmp.eq.s32.totalorder %s92, 11
      %p372 = por %p370, %p371
      %p374 = scmp.ne.s32.totalorder %s357, %s373
      %p375 = scmp.eq.s32.totalorder %s92, 0
      %p376 = por %p374, %p375
      %s377 = ssub.s32 %s94, %s101
      %p378 = scmp.eq.s32.totalorder %s377, 0
      %s380 = sadd.s32 %s379, 1
      %s381 = scalar_select %p378, %s379, %s380
      %p384 = pneg %p378
      %p385 = scmp.eq.s32.totalorder %s86, 11
      %p386 = por %p384, %p385
      %p387 = scmp.ne.s32.totalorder %s379, %s382
      %p388 = scmp.eq.s32.totalorder %s86, 0
      %p389 = por %p387, %p388
      %p390 = scmp.ne.s32.totalorder %s379, %s382
      %p391 = scmp.eq.s32.totalorder %s91, 11
      %p392 = por %p390, %p391
      %p393 = scmp.ne.s32.totalorder %s382, %s383
      %p394 = scmp.eq.s32.totalorder %s91, 0
      %p395 = por %p393, %p394
      %p396 = scmp.ne.s32.totalorder %s382, %s383
      %p397 = scmp.eq.s32.totalorder %s92, 11
      %p398 = por %p396, %p397
      %p400 = scmp.ne.s32.totalorder %s383, %s399
      %p401 = scmp.eq.s32.totalorder %s92, 0
      %p402 = por %p400, %p401
      %s403 = ssub.s32 %s94, %s101
      %p404 = scmp.eq.s32.totalorder %s403, 0
      %s406 = sadd.s32 %s405, 1
      %s407 = scalar_select %p404, %s405, %s406
      %p410 = pneg %p404
      %p411 = scmp.eq.s32.totalorder %s86, 11
      %p412 = por %p410, %p411
      %p413 = scmp.ne.s32.totalorder %s405, %s408
      %p414 = scmp.eq.s32.totalorder %s86, 0
      %p415 = por %p413, %p414
      %p416 = scmp.ne.s32.totalorder %s405, %s408
      %p417 = scmp.eq.s32.totalorder %s91, 11
      %p418 = por %p416, %p417
      %p419 = scmp.ne.s32.totalorder %s408, %s409
      %p420 = scmp.eq.s32.totalorder %s91, 0
      %p421 = por %p419, %p420
      %p422 = scmp.ne.s32.totalorder %s408, %s409
      %p423 = scmp.eq.s32.totalorder %s92, 11
      %p424 = por %p422, %p423
      %p426 = scmp.ne.s32.totalorder %s409, %s425
      %p427 = scmp.eq.s32.totalorder %s92, 0
      %p428 = por %p426, %p427
      %s429 = ssub.s32 %s94, %s101
      %p430 = scmp.eq.s32.totalorder %s429, 0
      %s432 = sadd.s32 %s431, 1
      %s433 = scalar_select %p430, %s431, %s432
      %p436 = pneg %p430
      %p437 = scmp.eq.s32.totalorder %s86, 11
      %p438 = por %p436, %p437
      %p439 = scmp.ne.s32.totalorder %s431, %s434
      %p440 = scmp.eq.s32.totalorder %s86, 0
      %p441 = por %p439, %p440
      %p442 = scmp.ne.s32.totalorder %s431, %s434
      %p443 = scmp.eq.s32.totalorder %s91, 11
      %p444 = por %p442, %p443
      %p445 = scmp.ne.s32.totalorder %s434, %s435
      %p446 = scmp.eq.s32.totalorder %s91, 0
      %p447 = por %p445, %p446
      %p448 = scmp.ne.s32.totalorder %s434, %s435
      %p449 = scmp.eq.s32.totalorder %s92, 11
      %p450 = por %p448, %p449
      %p452 = scmp.ne.s32.totalorder %s435, %s451
      %p453 = scmp.eq.s32.totalorder %s92, 0
      %p454 = por %p452, %p453
      %s455 = ssub.s32 %s94, %s101
      %p456 = scmp.eq.s32.totalorder %s455, 0
      %s458 = sadd.s32 %s457, 1
      %s459 = scalar_select %p456, %s457, %s458
      %p462 = pneg %p456
      %p463 = scmp.eq.s32.totalorder %s86, 11
      %p464 = por %p462, %p463
      %p465 = scmp.ne.s32.totalorder %s457, %s460
      %p466 = scmp.eq.s32.totalorder %s86, 0
      %p467 = por %p465, %p466
      %p468 = scmp.ne.s32.totalorder %s457, %s460
      %p469 = scmp.eq.s32.totalorder %s91, 11
      %p470 = por %p468, %p469
      %p471 = scmp.ne.s32.totalorder %s460, %s461
      %p472 = scmp.eq.s32.totalorder %s91, 0
      %p473 = por %p471, %p472
      %p474 = scmp.ne.s32.totalorder %s460, %s461
      %p475 = scmp.eq.s32.totalorder %s92, 11
      %p476 = por %p474, %p475
      %p478 = scmp.ne.s32.totalorder %s461, %s477
      %p479 = scmp.eq.s32.totalorder %s92, 0
      %p480 = por %p478, %p479
      %s481 = ssub.s32 %s94, %s101
      %p482 = scmp.eq.s32.totalorder %s481, 0
      %s484 = sadd.s32 %s483, 1
      %s485 = scalar_select %p482, %s483, %s484
      %p488 = pneg %p482
      %p489 = scmp.eq.s32.totalorder %s86, 11
      %p490 = por %p488, %p489
      %p491 = scmp.ne.s32.totalorder %s483, %s486
      %p492 = scmp.eq.s32.totalorder %s86, 0
      %p493 = por %p491, %p492
      %p494 = scmp.ne.s32.totalorder %s483, %s486
      %p495 = scmp.eq.s32.totalorder %s91, 11
      %p496 = por %p494, %p495
      %p497 = scmp.ne.s32.totalorder %s486, %s487
      %p498 = scmp.eq.s32.totalorder %s91, 0
      %p499 = por %p497, %p498
      %p500 = scmp.ne.s32.totalorder %s486, %s487
      %p501 = scmp.eq.s32.totalorder %s92, 11
      %p502 = por %p500, %p501
      %p504 = scmp.ne.s32.totalorder %s487, %s503
      %p505 = scmp.eq.s32.totalorder %s92, 0
      %p506 = por %p504, %p505
      %s508 = sadd.s32 %s507, 1
      %p511 = scmp.eq.s32.totalorder %s86, 11
      %p512 = scmp.ne.s32.totalorder %s507, %s509
      %p513 = scmp.eq.s32.totalorder %s86, 0
      %p514 = por %p512, %p513
      %p515 = scmp.ne.s32.totalorder %s507, %s509
      %p516 = scmp.eq.s32.totalorder %s91, 11
      %p517 = por %p515, %p516
      %p518 = scmp.ne.s32.totalorder %s509, %s510
      %p519 = scmp.eq.s32.totalorder %s91, 0
      %p520 = por %p518, %p519
      %p521 = scmp.ne.s32.totalorder %s509, %s510
      %p522 = scmp.eq.s32.totalorder %s92, 11
      %p523 = por %p521, %p522
      %p525 = scmp.ne.s32.totalorder %s510, %s524
      %p526 = scmp.eq.s32.totalorder %s92, 0
      %p527 = por %p525, %p526
      %s529 = sadd.s32 %s528, 1
      %p532 = scmp.eq.s32.totalorder %s86, 11
      %p533 = scmp.ne.s32.totalorder %s528, %s530
      %p534 = scmp.eq.s32.totalorder %s86, 0
      %p535 = por %p533, %p534
      %p536 = scmp.ne.s32.totalorder %s528, %s530
      %p537 = scmp.eq.s32.totalorder %s91, 11
      %p538 = por %p536, %p537
      %p539 = scmp.ne.s32.totalorder %s530, %s531
      %p540 = scmp.eq.s32.totalorder %s91, 0
      %p541 = por %p539, %p540
      %p542 = scmp.ne.s32.totalorder %s530, %s531
      %p543 = scmp.eq.s32.totalorder %s92, 11
      %p544 = por %p542, %p543
      %p546 = scmp.ne.s32.totalorder %s531, %s545
      %p547 = scmp.eq.s32.totalorder %s92, 0
      %p548 = por %p546, %p547
      %s550 = sadd.s32 %s549, 1
      %p553 = scmp.eq.s32.totalorder %s86, 11
      %p554 = scmp.ne.s32.totalorder %s549, %s551
      %p555 = scmp.eq.s32.totalorder %s86, 0
      %p556 = por %p554, %p555
      %p557 = scmp.ne.s32.totalorder %s549, %s551
      %p558 = scmp.eq.s32.totalorder %s91, 11
      %p559 = por %p557, %p558
      %p560 = scmp.ne.s32.totalorder %s551, %s552
      %p561 = scmp.eq.s32.totalorder %s91, 0
      %p562 = por %p560, %p561
      %p563 = scmp.ne.s32.totalorder %s551, %s552
      %p564 = scmp.eq.s32.totalorder %s92, 11
      %p565 = por %p563, %p564
      %p567 = scmp.ne.s32.totalorder %s552, %s566
      %p568 = scmp.eq.s32.totalorder %s92, 0
      %p569 = por %p567, %p568
      %s571 = sadd.s32 %s570, 1
      %p574 = scmp.eq.s32.totalorder %s86, 11
      %p575 = scmp.ne.s32.totalorder %s570, %s572
      %p576 = scmp.eq.s32.totalorder %s86, 0
      %p577 = por %p575, %p576
      %p578 = scmp.ne.s32.totalorder %s570, %s572
      %p579 = scmp.eq.s32.totalorder %s91, 11
      %p580 = por %p578, %p579
      %p581 = scmp.ne.s32.totalorder %s572, %s573
      %p582 = scmp.eq.s32.totalorder %s91, 0
      %p583 = por %p581, %p582
      %p584 = scmp.ne.s32.totalorder %s572, %s573
      %p585 = scmp.eq.s32.totalorder %s92, 11
      %p586 = por %p584, %p585
      %p588 = scmp.ne.s32.totalorder %s573, %s587
      %p589 = scmp.eq.s32.totalorder %s92, 0
      %p590 = por %p588, %p589
      %s592 = sadd.s32 %s591, 1
      %p595 = scmp.eq.s32.totalorder %s86, 11
      %p596 = scmp.ne.s32.totalorder %s591, %s593
      %p597 = scmp.eq.s32.totalorder %s86, 0
      %p598 = por %p596, %p597
      %p599 = scmp.ne.s32.totalorder %s591, %s593
      %p600 = scmp.eq.s32.totalorder %s91, 11
      %p601 = por %p599, %p600
      %p602 = scmp.ne.s32.totalorder %s593, %s594
      %p603 = scmp.eq.s32.totalorder %s91, 0
      %p604 = por %p602, %p603
      %p605 = scmp.ne.s32.totalorder %s593, %s594
      %p606 = scmp.eq.s32.totalorder %s92, 11
      %p607 = por %p605, %p606
      %p609 = scmp.ne.s32.totalorder %s594, %s608
      %p610 = scmp.eq.s32.totalorder %s92, 0
      %p611 = por %p609, %p610
      %s613 = sadd.s32 %s612, 1
      %p616 = scmp.eq.s32.totalorder %s86, 11
      %p617 = scmp.ne.s32.totalorder %s612, %s614
      %p618 = scmp.eq.s32.totalorder %s86, 0
      %p619 = por %p617, %p618
      %p620 = scmp.ne.s32.totalorder %s612, %s614
      %p621 = scmp.eq.s32.totalorder %s91, 11
      %p622 = por %p620, %p621
      %p623 = scmp.ne.s32.totalorder %s614, %s615
      %p624 = scmp.eq.s32.totalorder %s91, 0
      %p625 = por %p623, %p624
      %p626 = scmp.ne.s32.totalorder %s614, %s615
      %p627 = scmp.eq.s32.totalorder %s92, 11
      %p628 = por %p626, %p627
      %p630 = scmp.ne.s32.totalorder %s615, %s629
      %p631 = scmp.eq.s32.totalorder %s92, 0
      %p632 = por %p630, %p631
      %s634 = sadd.s32 %s633, 1
      %p637 = scmp.eq.s32.totalorder %s86, 11
      %p638 = scmp.ne.s32.totalorder %s633, %s635
      %p639 = scmp.eq.s32.totalorder %s86, 0
      %p640 = por %p638, %p639
      %p641 = scmp.ne.s32.totalorder %s633, %s635
      %p642 = scmp.eq.s32.totalorder %s91, 11
      %p643 = por %p641, %p642
      %p644 = scmp.ne.s32.totalorder %s635, %s636
      %p645 = scmp.eq.s32.totalorder %s91, 0
      %p646 = por %p644, %p645
      %p647 = scmp.ne.s32.totalorder %s635, %s636
      %p648 = scmp.eq.s32.totalorder %s92, 11
      %p649 = por %p647, %p648
      %p651 = scmp.ne.s32.totalorder %s636, %s650
      %p652 = scmp.eq.s32.totalorder %s92, 0
      %p653 = por %p651, %p652
      %s655 = sadd.s32 %s654, 1
      %p658 = scmp.eq.s32.totalorder %s86, 11
      %p659 = scmp.ne.s32.totalorder %s654, %s656
      %p660 = scmp.eq.s32.totalorder %s86, 0
      %p661 = por %p659, %p660
      %p662 = scmp.ne.s32.totalorder %s654, %s656
      %p663 = scmp.eq.s32.totalorder %s91, 11
      %p664 = por %p662, %p663
      %p665 = scmp.ne.s32.totalorder %s656, %s657
      %p666 = scmp.eq.s32.totalorder %s91, 0
      %p667 = por %p665, %p666
      %p668 = scmp.ne.s32.totalorder %s656, %s657
      %p669 = scmp.eq.s32.totalorder %s92, 11
      %p670 = por %p668, %p669
      %p672 = scmp.ne.s32.totalorder %s657, %s671
      %p673 = scmp.eq.s32.totalorder %s92, 0
      %p674 = por %p672, %p673
      %s676 = sadd.s32 %s675, 1
      %p679 = scmp.eq.s32.totalorder %s86, 11
      %p680 = scmp.ne.s32.totalorder %s675, %s677
      %p681 = scmp.eq.s32.totalorder %s86, 0
      %p682 = por %p680, %p681
      %p683 = scmp.ne.s32.totalorder %s675, %s677
      %p684 = scmp.eq.s32.totalorder %s91, 11
      %p685 = por %p683, %p684
      %p686 = scmp.ne.s32.totalorder %s677, %s678
      %p687 = scmp.eq.s32.totalorder %s91, 0
      %p688 = por %p686, %p687
      %p689 = scmp.ne.s32.totalorder %s677, %s678
      %p690 = scmp.eq.s32.totalorder %s92, 11
      %p691 = por %p689, %p690
      %p693 = scmp.ne.s32.totalorder %s678, %s692
      %p694 = scmp.eq.s32.totalorder %s92, 0
      %p695 = por %p693, %p694
      %s697 = sadd.s32 %s696, 1
      %p700 = scmp.eq.s32.totalorder %s86, 11
      %p701 = scmp.ne.s32.totalorder %s696, %s698
      %p702 = scmp.eq.s32.totalorder %s86, 0
      %p703 = por %p701, %p702
      %p704 = scmp.ne.s32.totalorder %s696, %s698
      %p705 = scmp.eq.s32.totalorder %s91, 11
      %p706 = por %p704, %p705
      %p707 = scmp.ne.s32.totalorder %s698, %s699
      %p708 = scmp.eq.s32.totalorder %s91, 0
      %p709 = por %p707, %p708
      %p710 = scmp.ne.s32.totalorder %s698, %s699
      %p711 = scmp.eq.s32.totalorder %s92, 11
      %p712 = por %p710, %p711
      %p714 = scmp.ne.s32.totalorder %s699, %s713
      %p715 = scmp.eq.s32.totalorder %s92, 0
      %p716 = por %p714, %p715
      %s718 = sadd.s32 %s717, 1
      %p721 = scmp.eq.s32.totalorder %s86, 11
      %p722 = scmp.ne.s32.totalorder %s717, %s719
      %p723 = scmp.eq.s32.totalorder %s86, 0
      %p724 = por %p722, %p723
      %p725 = scmp.ne.s32.totalorder %s717, %s719
      %p726 = scmp.eq.s32.totalorder %s91, 11
      %p727 = por %p725, %p726
      %p728 = scmp.ne.s32.totalorder %s719, %s720
      %p729 = scmp.eq.s32.totalorder %s91, 0
      %p730 = por %p728, %p729
      %p731 = scmp.ne.s32.totalorder %s719, %s720
      %p732 = scmp.eq.s32.totalorder %s92, 11
      %p733 = por %p731, %p732
      %p735 = scmp.ne.s32.totalorder %s720, %s734
      %p736 = scmp.eq.s32.totalorder %s92, 0
      %p737 = por %p735, %p736
      %s739 = sadd.s32 %s738, 1
      %p742 = scmp.eq.s32.totalorder %s86, 11
      %p743 = scmp.ne.s32.totalorder %s738, %s740
      %p744 = scmp.eq.s32.totalorder %s86, 0
      %p745 = por %p743, %p744
      %p746 = scmp.ne.s32.totalorder %s738, %s740
      %p747 = scmp.eq.s32.totalorder %s91, 11
      %p748 = por %p746, %p747
      %p749 = scmp.ne.s32.totalorder %s740, %s741
      %p750 = scmp.eq.s32.totalorder %s91, 0
      %p751 = por %p749, %p750
      %p752 = scmp.ne.s32.totalorder %s740, %s741
      %p753 = scmp.eq.s32.totalorder %s92, 11
      %p754 = por %p752, %p753
      %p756 = scmp.ne.s32.totalorder %s741, %s755
      %p757 = scmp.eq.s32.totalorder %s92, 0
      %p758 = por %p756, %p757
      %s760 = sadd.s32 %s759, 1
      %p763 = scmp.eq.s32.totalorder %s86, 11
      %p764 = scmp.ne.s32.totalorder %s759, %s761
      %p765 = scmp.eq.s32.totalorder %s86, 0
      %p766 = por %p764, %p765
      %p767 = scmp.ne.s32.totalorder %s759, %s761
      %p768 = scmp.eq.s32.totalorder %s91, 11
      %p769 = por %p767, %p768
      %p770 = scmp.ne.s32.totalorder %s761, %s762
      %p771 = scmp.eq.s32.totalorder %s91, 0
      %p772 = por %p770, %p771
      %p773 = scmp.ne.s32.totalorder %s761, %s762
      %p774 = scmp.eq.s32.totalorder %s92, 11
      %p775 = por %p773, %p774
      %p777 = scmp.ne.s32.totalorder %s762, %s776
      %p778 = scmp.eq.s32.totalorder %s92, 0
      %p779 = por %p777, %p778
      %s781 = sadd.s32 %s780, 1
      %p784 = scmp.eq.s32.totalorder %s86, 11
      %p785 = scmp.ne.s32.totalorder %s780, %s782
      %p786 = scmp.eq.s32.totalorder %s86, 0
      %p787 = por %p785, %p786
      %p788 = scmp.ne.s32.totalorder %s780, %s782
      %p789 = scmp.eq.s32.totalorder %s91, 11
      %p790 = por %p788, %p789
      %p791 = scmp.ne.s32.totalorder %s782, %s783
      %p792 = scmp.eq.s32.totalorder %s91, 0
      %p793 = por %p791, %p792
      %p794 = scmp.ne.s32.totalorder %s782, %s783
      %p795 = scmp.eq.s32.totalorder %s92, 11
      %p796 = por %p794, %p795
      %p798 = scmp.ne.s32.totalorder %s783, %s797
      %p799 = scmp.eq.s32.totalorder %s92, 0
      %p800 = por %p798, %p799
      %s801 = ssub.s32 %s93, %s105
      %p802 = scmp.eq.s32.totalorder %s801, 0
      %s804 = sadd.s32 %s803, 1
      %s805 = scalar_select %p802, %s803, %s804
      %p808 = pneg %p802
      %p809 = scmp.eq.s32.totalorder %s86, 11
      %p810 = por %p808, %p809
      %p811 = scmp.ne.s32.totalorder %s803, %s806
      %p812 = scmp.eq.s32.totalorder %s86, 0
      %p813 = por %p811, %p812
      %p814 = scmp.ne.s32.totalorder %s803, %s806
      %p815 = scmp.eq.s32.totalorder %s91, 11
      %p816 = por %p814, %p815
      %p817 = scmp.ne.s32.totalorder %s806, %s807
      %p818 = scmp.eq.s32.totalorder %s91, 0
      %p819 = por %p817, %p818
      %p820 = scmp.ne.s32.totalorder %s806, %s807
      %p821 = scmp.eq.s32.totalorder %s92, 11
      %p822 = por %p820, %p821
      %p824 = scmp.ne.s32.totalorder %s807, %s823
      %p825 = scmp.eq.s32.totalorder %s92, 0
      %p826 = por %p824, %p825
      %s827 = ssub.s32 %s93, %s105
      %p828 = scmp.eq.s32.totalorder %s827, 0
      %s830 = sadd.s32 %s829, 1
      %s831 = scalar_select %p828, %s829, %s830
      %p834 = pneg %p828
      %p835 = scmp.eq.s32.totalorder %s86, 11
      %p836 = por %p834, %p835
      %p837 = scmp.ne.s32.totalorder %s829, %s832
      %p838 = scmp.eq.s32.totalorder %s86, 0
      %p839 = por %p837, %p838
      %p840 = scmp.ne.s32.totalorder %s829, %s832
      %p841 = scmp.eq.s32.totalorder %s91, 11
      %p842 = por %p840, %p841
      %p843 = scmp.ne.s32.totalorder %s832, %s833
      %p844 = scmp.eq.s32.totalorder %s91, 0
      %p845 = por %p843, %p844
      %p846 = scmp.ne.s32.totalorder %s832, %s833
      %p847 = scmp.eq.s32.totalorder %s92, 11
      %p848 = por %p846, %p847
      %p850 = scmp.ne.s32.totalorder %s833, %s849
      %p851 = scmp.eq.s32.totalorder %s92, 0
      %p852 = por %p850, %p851
      %s853 = ssub.s32 %s93, %s105
      %p854 = scmp.eq.s32.totalorder %s853, 0
      %s856 = sadd.s32 %s855, 1
      %s857 = scalar_select %p854, %s855, %s856
      %p860 = pneg %p854
      %p861 = scmp.eq.s32.totalorder %s86, 11
      %p862 = por %p860, %p861
      %p863 = scmp.ne.s32.totalorder %s855, %s858
      %p864 = scmp.eq.s32.totalorder %s86, 0
      %p865 = por %p863, %p864
      %p866 = scmp.ne.s32.totalorder %s855, %s858
      %p867 = scmp.eq.s32.totalorder %s91, 11
      %p868 = por %p866, %p867
      %p869 = scmp.ne.s32.totalorder %s858, %s859
      %p870 = scmp.eq.s32.totalorder %s91, 0
      %p871 = por %p869, %p870
      %p872 = scmp.ne.s32.totalorder %s858, %s859
      %p873 = scmp.eq.s32.totalorder %s92, 11
      %p874 = por %p872, %p873
      %p876 = scmp.ne.s32.totalorder %s859, %s875
      %p877 = scmp.eq.s32.totalorder %s92, 0
      %p878 = por %p876, %p877
      %p879 = scmp.le.s32.totalorder 1, %s86
      %p880 = scmp.lt.s32.totalorder %s86, 13
      %p881 = pnand %p879, %p880
      %p882 = pneg %p881
      // Predicated region
      $region9: #{tpu_custom_call.1} parent=5 // pred_check
        _
      $region10: #{tpu_custom_call.1} parent=5 // pred_check_branch
        %884 = sbr.rel (%p881) target = $region12
      $region11: #{tpu_custom_call.1} parent=5 // pred_region
        %s885 = ssub.s32 %s86, 1
        // Predicated region
        $region13: #{tpu_custom_call.1} parent=11 // pred_check
          %p886 = pneg %p145
        $region14: #{tpu_custom_call.1} parent=11 // pred_check_branch
          %888 = sbr.rel (%p886) target = $region16
        $region15: #{tpu_custom_call.1} parent=11 // pred_region
          %s890 = ssub.s32 32, 32
          %891 = vsyncadd [#allocation4], %s890
          %s893 = sshll.u32 [#allocation3], 4
          %s894 = int_to_ptr.vmem [resolvable:$true] %s893
          %896 = dma.hbm_to_vmem [thread:$0]  %s3, 32, %s894, [#allocation4]
        $region16: #{tpu_custom_call.1} parent=11 // pred_fallthru
          _
        // Predicated region
        $region17: #{tpu_custom_call.1} parent=11 // pred_check
          %p897 = pneg %p166
        $region18: #{tpu_custom_call.1} parent=11 // pred_check_branch
          %899 = sbr.rel (%p897) target = $region20
        $region19: #{tpu_custom_call.1} parent=11 // pred_region
          _
        $region20: #{tpu_custom_call.1} parent=11 // pred_fallthru
          _
        // Predicated region
        $region21: #{tpu_custom_call.1} parent=11 // pred_check
          %p900 = pneg %p187
        $region22: #{tpu_custom_call.1} parent=11 // pred_check_branch
          %902 = sbr.rel (%p900) target = $region24
        $region23: #{tpu_custom_call.1} parent=11 // pred_region
          %s904 = ssub.s32 128, 128
          %905 = vsyncadd [#allocation7], %s904
          %s907 = sshll.u32 [#allocation6], 4
          %s908 = int_to_ptr.vmem [resolvable:$true] %s907
          %910 = dma.hbm_to_vmem [thread:$0]  %s7, 128, %s908, [#allocation7]
        $region24: #{tpu_custom_call.1} parent=11 // pred_fallthru
          _
        // Predicated region
        $region25: #{tpu_custom_call.1} parent=11 // pred_check
          %p911 = pneg %p520
        $region26: #{tpu_custom_call.1} parent=11 // pred_check_branch
          %913 = sbr.rel (%p911) target = $region28
        $region27: #{tpu_custom_call.1} parent=11 // pred_region
          %s915 = ssub.s32 1024, 1024
          %916 = vsyncadd [#allocation7], %s915
          %s917 = sshll.u32 [#allocation16], 4
          %s918 = int_to_ptr.vmem [resolvable:$true] %s917
          %923 = dma.hbm_to_vmem [thread:$0]  %s33, 1024, %s918, [#allocation7], 128, 128, 8
        $region28: #{tpu_custom_call.1} parent=11 // pred_fallthru
          _
        // Predicated region
        $region29: #{tpu_custom_call.1} parent=11 // pred_check
          %p924 = pneg %p541
        $region30: #{tpu_custom_call.1} parent=11 // pred_check_branch
          %926 = sbr.rel (%p924) target = $region32
        $region31: #{tpu_custom_call.1} parent=11 // pred_region
          %s928 = ssub.s32 32, 32
          %929 = vsyncadd [#allocation18], %s928
          %s931 = sshll.u32 [#allocation17], 4
          %s932 = int_to_ptr.vmem [resolvable:$true] %s931
          %934 = dma.hbm_to_vmem [thread:$0]  %s35, 32, %s932, [#allocation18]
        $region32: #{tpu_custom_call.1} parent=11 // pred_fallthru
          _
        // Predicated region
        $region33: #{tpu_custom_call.1} parent=11 // pred_check
          %p935 = pneg %p562
        $region34: #{tpu_custom_call.1} parent=11 // pred_check_branch
          %937 = sbr.rel (%p935) target = $region36
        $region35: #{tpu_custom_call.1} parent=11 // pred_region
          %s939 = ssub.s32 1536, 1536
          %940 = vsyncadd [#allocation18], %s939
          %s941 = sshll.u32 [#allocation19], 4
          %s942 = int_to_ptr.vmem [resolvable:$true] %s941
          %947 = dma.hbm_to_vmem [thread:$0]  %s37, 1536, %s942, [#allocation18], 64, 64, 4
        $region36: #{tpu_custom_call.1} parent=11 // pred_fallthru
          _
        // Predicated region
        $region37: #{tpu_custom_call.1} parent=11 // pred_check
          %p948 = pneg %p583
        $region38: #{tpu_custom_call.1} parent=11 // pred_check_branch
          %950 = sbr.rel (%p948) target = $region40
        $region39: #{tpu_custom_call.1} parent=11 // pred_region
          %s952 = ssub.s32 48, 48
          %953 = vsyncadd [#allocation21], %s952
          %s954 = sshll.u32 [#allocation20], 4
          %s955 = int_to_ptr.vmem [resolvable:$true] %s954
          %960 = dma.hbm_to_vmem [thread:$0]  %s39, 48, %s955, [#allocation21], 16, 16, 1
        $region40: #{tpu_custom_call.1} parent=11 // pred_fallthru
          _
        // Predicated region
        $region41: #{tpu_custom_call.1} parent=11 // pred_check
          %p961 = pneg %p604
        $region42: #{tpu_custom_call.1} parent=11 // pred_check_branch
          %963 = sbr.rel (%p961) target = $region44
        $region43: #{tpu_custom_call.1} parent=11 // pred_region
          %s965 = ssub.s32 48, 48
          %966 = vsyncadd [#allocation21], %s965
          %s967 = sshll.u32 [#allocation22], 4
          %s968 = int_to_ptr.vmem [resolvable:$true] %s967
          %973 = dma.hbm_to_vmem [thread:$0]  %s41, 48, %s968, [#allocation21], 16, 16, 1
        $region44: #{tpu_custom_call.1} parent=11 // pred_fallthru
          _
        // Predicated region
        $region45: #{tpu_custom_call.1} parent=11 // pred_check
          %p974 = pneg %p625
        $region46: #{tpu_custom_call.1} parent=11 // pred_check_branch
          %976 = sbr.rel (%p974) target = $region48
        $region47: #{tpu_custom_call.1} parent=11 // pred_region
          %s978 = ssub.s32 48, 48
          %979 = vsyncadd [#allocation24], %s978
          %s980 = sshll.u32 [#allocation23], 4
          %s981 = int_to_ptr.vmem [resolvable:$true] %s980
          %986 = dma.hbm_to_vmem [thread:$0]  %s43, 48, %s981, [#allocation24], 16, 16, 1
        $region48: #{tpu_custom_call.1} parent=11 // pred_fallthru
          _
        // Predicated region
        $region49: #{tpu_custom_call.1} parent=11 // pred_check
          %p987 = pneg %p646
        $region50: #{tpu_custom_call.1} parent=11 // pred_check_branch
          %989 = sbr.rel (%p987) target = $region52
        $region51: #{tpu_custom_call.1} parent=11 // pred_region
          %s991 = ssub.s32 512, 512
          %992 = vsyncadd [#allocation24], %s991
          %s993 = sshll.u32 [#allocation25], 4
          %s994 = int_to_ptr.vmem [resolvable:$true] %s993
          %999 = dma.hbm_to_vmem [thread:$0]  %s45, 512, %s994, [#allocation24], 64, 64, 4
        $region52: #{tpu_custom_call.1} parent=11 // pred_fallthru
          _
        // Predicated region
        $region53: #{tpu_custom_call.1} parent=11 // pred_check
          %p1000 = pneg %p667
        $region54: #{tpu_custom_call.1} parent=11 // pred_check_branch
          %1002 = sbr.rel (%p1000) target = $region56
        $region55: #{tpu_custom_call.1} parent=11 // pred_region
          %s1004 = ssub.s32 16, 16
          %1005 = vsyncadd [#allocation27], %s1004
          %s1007 = sshll.u32 [#allocation26], 4
          %s1008 = int_to_ptr.vmem [resolvable:$true] %s1007
          %1010 = dma.hbm_to_vmem [thread:$0]  %s47, 16, %s1008, [#allocation27]
        $region56: #{tpu_custom_call.1} parent=11 // pred_fallthru
          _
        // Predicated region
        $region57: #{tpu_custom_call.1} parent=11 // pred_check
          %p1011 = pneg %p688
        $region58: #{tpu_custom_call.1} parent=11 // pred_check_branch
          %1013 = sbr.rel (%p1011) target = $region60
        $region59: #{tpu_custom_call.1} parent=11 // pred_region
          _
        $region60: #{tpu_custom_call.1} parent=11 // pred_fallthru
          _
        // Predicated region
        $region61: #{tpu_custom_call.1} parent=11 // pred_check
          %p1014 = pneg %p709
        $region62: #{tpu_custom_call.1} parent=11 // pred_check_branch
          %1016 = sbr.rel (%p1014) target = $region64
        $region63: #{tpu_custom_call.1} parent=11 // pred_region
          %s1018 = ssub.s32 48, 48
          %1019 = vsyncadd [#allocation27], %s1018
          %s1020 = sshll.u32 [#allocation28], 4
          %s1021 = int_to_ptr.vmem [resolvable:$true] %s1020
          %1026 = dma.hbm_to_vmem [thread:$0]  %s51, 48, %s1021, [#allocation27], 16, 16, 1
        $region64: #{tpu_custom_call.1} parent=11 // pred_fallthru
          _
        // Predicated region
        $region65: #{tpu_custom_call.1} parent=11 // pred_check
          %p1027 = pneg %p730
        $region66: #{tpu_custom_call.1} parent=11 // pred_check_branch
          %1029 = sbr.rel (%p1027) target = $region68
        $region67: #{tpu_custom_call.1} parent=11 // pred_region
          %s1031 = ssub.s32 48, 48
          %1032 = vsyncadd [#allocation30], %s1031
          %s1033 = sshll.u32 [#allocation29], 4
          %s1034 = int_to_ptr.vmem [resolvable:$true] %s1033
          %1039 = dma.hbm_to_vmem [thread:$0]  %s53, 48, %s1034, [#allocation30], 16, 16, 1
        $region68: #{tpu_custom_call.1} parent=11 // pred_fallthru
          _
        // Predicated region
        $region69: #{tpu_custom_call.1} parent=11 // pred_check
          %p1040 = pneg %p751
        $region70: #{tpu_custom_call.1} parent=11 // pred_check_branch
          %1042 = sbr.rel (%p1040) target = $region72
        $region71: #{tpu_custom_call.1} parent=11 // pred_region
          %s1044 = ssub.s32 48, 48
          %1045 = vsyncadd [#allocation30], %s1044
          %s1046 = sshll.u32 [#allocation31], 4
          %s1047 = int_to_ptr.vmem [resolvable:$true] %s1046
          %1052 = dma.hbm_to_vmem [thread:$0]  %s55, 48, %s1047, [#allocation30], 16, 16, 1
        $region72: #{tpu_custom_call.1} parent=11 // pred_fallthru
          _
        // Predicated region
        $region73: #{tpu_custom_call.1} parent=11 // pred_check
          %p1053 = pneg %p772
        $region74: #{tpu_custom_call.1} parent=11 // pred_check_branch
          %1055 = sbr.rel (%p1053) target = $region76
        $region75: #{tpu_custom_call.1} parent=11 // pred_region
          _
        $region76: #{tpu_custom_call.1} parent=11 // pred_fallthru
          _
        // Predicated region
        $region77: #{tpu_custom_call.1} parent=11 // pred_check
          %p1056 = pneg %p793
        $region78: #{tpu_custom_call.1} parent=11 // pred_check_branch
          %1058 = sbr.rel (%p1056) target = $region80
        $region79: #{tpu_custom_call.1} parent=11 // pred_region
          %s1060 = ssub.s32 16, 16
          %1061 = vsyncadd [#allocation33], %s1060
          %s1063 = sshll.u32 [#allocation32], 4
          %s1064 = int_to_ptr.vmem [resolvable:$true] %s1063
          %1066 = dma.hbm_to_vmem [thread:$0]  %s59, 16, %s1064, [#allocation33]
        $region80: #{tpu_custom_call.1} parent=11 // pred_fallthru
          _
      $region12: #{tpu_custom_call.1} parent=5 // pred_fallthru
        _
      %p1067 = scmp.lt.s32.totalorder %s86, 12
      // Predicated region
      $region81: #{tpu_custom_call.1} parent=5 // pred_check
        %p1068 = pneg %p1067
      $region82: #{tpu_custom_call.1} parent=5 // pred_check_branch
        %1070 = sbr.rel (%p1068) target = $region84
      $region83: #{tpu_custom_call.1} parent=5 // pred_region
        // Predicated region
        $region85: #{tpu_custom_call.1} parent=83 // pred_check
          %p1071 = pneg %p118
        $region86: #{tpu_custom_call.1} parent=83 // pred_check_branch
          %1073 = sbr.rel (%p1071) target = $region88
        $region87: #{tpu_custom_call.1} parent=83 // pred_region
          %p1074 = scmp.lt.s32.totalorder %s93, 1
          %s1075 = scalar_select %p1074, %s93, 1
          %s1076 = smul.addr %s1075, 8
          %s1077 = scalar_lea.vmem %s1, %s1076
        $region88: #{tpu_custom_call.1} parent=83 // pred_fallthru
          _
        // Predicated region
        $region89: #{tpu_custom_call.1} parent=83 // pred_check
          %p1078 = pneg %p207
        $region90: #{tpu_custom_call.1} parent=83 // pred_check_branch
          %1080 = sbr.rel (%p1078) target = $region92
        $region91: #{tpu_custom_call.1} parent=83 // pred_region
          %p1081 = scmp.lt.s32.totalorder %s94, 5
          %s1082 = scalar_select %p1081, %s94, 5
          %s1083 = smul.addr %s1082, 24
          %s1084 = smul.addr %s1083, 4
          %s1085 = scalar_lea.vmem %s9, %s1084
        $region92: #{tpu_custom_call.1} parent=83 // pred_fallthru
          _
        // Predicated region
        $region93: #{tpu_custom_call.1} parent=83 // pred_check
          %p1086 = pneg %p233
        $region94: #{tpu_custom_call.1} parent=83 // pred_check_branch
          %1088 = sbr.rel (%p1086) target = $region96
        $region95: #{tpu_custom_call.1} parent=83 // pred_region
          %s1089 = sand.u32 %s86, 1
          %s1090 = scalar_lea.sflag [#allocation4], %s1089
          %s1091 = sand.u32 %s223, 1
          %s1092 = smul.addr %s1091, 3
          %s1093 = scalar_lea.vmem [#allocation8], %s1092
          %s1095 = ssub.s32 48, 48
          %1096 = vsyncadd %s1090, %s1095
          %s1097 = smul.addr %s94, 3
          %s1098 = smul.addr %s1097, 16
          %s1099 = scalar_lea.hbm %s11, %s1098
          %s1100 = sshll.u32 %s1093, 4
          %s1101 = int_to_ptr.vmem [resolvable:$true] %s1100
          %1106 = dma.hbm_to_vmem [thread:$0]  %s1099, 48, %s1101, %s1090, 16, 16, 1
        $region96: #{tpu_custom_call.1} parent=83 // pred_fallthru
          _
        // Predicated region
        $region97: #{tpu_custom_call.1} parent=83 // pred_check
          %p1107 = pneg %p259
        $region98: #{tpu_custom_call.1} parent=83 // pred_check_branch
          %1109 = sbr.rel (%p1107) target = $region100
        $region99: #{tpu_custom_call.1} parent=83 // pred_region
          %p1110 = scmp.lt.s32.totalorder %s94, 5
          %s1111 = scalar_select %p1110, %s94, 5
          %s1112 = smul.addr %s1111, 8
          %s1113 = smul.addr %s1112, 4
          %s1114 = scalar_lea.vmem %s13, %s1113
        $region100: #{tpu_custom_call.1} parent=83 // pred_fallthru
          _
        // Predicated region
        $region101: #{tpu_custom_call.1} parent=83 // pred_check
          %p1115 = pneg %p285
        $region102: #{tpu_custom_call.1} parent=83 // pred_check_branch
          %1117 = sbr.rel (%p1115) target = $region104
        $region103: #{tpu_custom_call.1} parent=83 // pred_region
          %s1118 = sand.u32 %s86, 1
          %s1119 = scalar_lea.sflag [#allocation4], %s1118
          %s1120 = sand.u32 %s275, 1
          %s1121 = scalar_lea.vmem [#allocation9], %s1120
          %s1123 = ssub.s32 16, 16
          %1124 = vsyncadd %s1119, %s1123
          %s1125 = smul.addr %s94, 16
          %s1126 = scalar_lea.hbm %s15, %s1125
          %s1128 = sshll.u32 %s1121, 4
          %s1129 = int_to_ptr.vmem [resolvable:$true] %s1128
          %1131 = dma.hbm_to_vmem [thread:$0]  %s1126, 16, %s1129, %s1119
        $region104: #{tpu_custom_call.1} parent=83 // pred_fallthru
          _
        // Predicated region
        $region105: #{tpu_custom_call.1} parent=83 // pred_check
          %p1132 = pneg %p311
        $region106: #{tpu_custom_call.1} parent=83 // pred_check_branch
          %1134 = sbr.rel (%p1132) target = $region108
        $region107: #{tpu_custom_call.1} parent=83 // pred_region
          %p1135 = scmp.lt.s32.totalorder %s94, 5
          %s1136 = scalar_select %p1135, %s94, 5
          %s1137 = smul.addr %s1136, 16
          %s1138 = smul.addr %s1137, 4
          %s1139 = scalar_lea.vmem %s17, %s1138
        $region108: #{tpu_custom_call.1} parent=83 // pred_fallthru
          _
        // Predicated region
        $region109: #{tpu_custom_call.1} parent=83 // pred_check
          %p1140 = pneg %p337
        $region110: #{tpu_custom_call.1} parent=83 // pred_check_branch
          %1142 = sbr.rel (%p1140) target = $region112
        $region111: #{tpu_custom_call.1} parent=83 // pred_region
          %s1143 = sand.u32 %s86, 1
          %s1144 = scalar_lea.sflag [#allocation4], %s1143
          %s1145 = sand.u32 %s327, 1
          %s1146 = smul.addr %s1145, 2
          %s1147 = scalar_lea.vmem [#allocation10], %s1146
          %s1149 = ssub.s32 32, 32
          %1150 = vsyncadd %s1144, %s1149
          %s1151 = smul.addr %s94, 2
          %s1152 = smul.addr %s1151, 16
          %s1153 = scalar_lea.hbm %s19, %s1152
          %s1155 = sshll.u32 %s1147, 4
          %s1156 = int_to_ptr.vmem [resolvable:$true] %s1155
          %1158 = dma.hbm_to_vmem [thread:$0]  %s1153, 32, %s1156, %s1144
        $region112: #{tpu_custom_call.1} parent=83 // pred_fallthru
          _
        // Predicated region
        $region113: #{tpu_custom_call.1} parent=83 // pred_check
          %p1159 = pneg %p363
        $region114: #{tpu_custom_call.1} parent=83 // pred_check_branch
          %1161 = sbr.rel (%p1159) target = $region116
        $region115: #{tpu_custom_call.1} parent=83 // pred_region
          %p1162 = scmp.lt.s32.totalorder %s94, 5
          %s1163 = scalar_select %p1162, %s94, 5
          %s1164 = smul.addr %s1163, 32
          %s1165 = smul.addr %s1164, 4
          %s1166 = scalar_lea.vmem %s21, %s1165
        $region116: #{tpu_custom_call.1} parent=83 // pred_fallthru
          _
        // Predicated region
        $region117: #{tpu_custom_call.1} parent=83 // pred_check
          %p1167 = pneg %p389
        $region118: #{tpu_custom_call.1} parent=83 // pred_check_branch
          %1169 = sbr.rel (%p1167) target = $region120
        $region119: #{tpu_custom_call.1} parent=83 // pred_region
          %s1170 = sand.u32 %s86, 1
          %s1171 = scalar_lea.sflag [#allocation4], %s1170
          %s1172 = sand.u32 %s379, 1
          %s1173 = scalar_lea.vmem [#allocation11], %s1172
          %s1175 = ssub.s32 16, 16
          %1176 = vsyncadd %s1171, %s1175
          %s1177 = smul.addr %s94, 16
          %s1178 = scalar_lea.hbm %s23, %s1177
          %s1180 = sshll.u32 %s1173, 4
          %s1181 = int_to_ptr.vmem [resolvable:$true] %s1180
          %1183 = dma.hbm_to_vmem [thread:$0]  %s1178, 16, %s1181, %s1171
        $region120: #{tpu_custom_call.1} parent=83 // pred_fallthru
          _
        // Predicated region
        $region121: #{tpu_custom_call.1} parent=83 // pred_check
          %p1184 = pneg %p415
        $region122: #{tpu_custom_call.1} parent=83 // pred_check_branch
          %1186 = sbr.rel (%p1184) target = $region124
        $region123: #{tpu_custom_call.1} parent=83 // pred_region
          %s1187 = sand.u32 %s86, 1
          %s1188 = scalar_lea.sflag [#allocation4], %s1187
          %s1189 = sand.u32 %s405, 1
          %s1190 = scalar_lea.vmem [#allocation12], %s1189
          %s1192 = ssub.s32 16, 16
          %1193 = vsyncadd %s1188, %s1192
          %s1194 = smul.addr %s94, 16
          %s1195 = scalar_lea.hbm %s25, %s1194
          %s1197 = sshll.u32 %s1190, 4
          %s1198 = int_to_ptr.vmem [resolvable:$true] %s1197
          %1200 = dma.hbm_to_vmem [thread:$0]  %s1195, 16, %s1198, %s1188
        $region124: #{tpu_custom_call.1} parent=83 // pred_fallthru
          _
        // Predicated region
        $region125: #{tpu_custom_call.1} parent=83 // pred_check
          %p1201 = pneg %p441
        $region126: #{tpu_custom_call.1} parent=83 // pred_check_branch
          %1203 = sbr.rel (%p1201) target = $region128
        $region127: #{tpu_custom_call.1} parent=83 // pred_region
          %s1204 = sand.u32 %s86, 1
          %s1205 = scalar_lea.sflag [#allocation4], %s1204
          %s1206 = sand.u32 %s431, 1
          %s1207 = scalar_lea.vmem [#allocation13], %s1206
          %s1209 = ssub.s32 16, 16
          %1210 = vsyncadd %s1205, %s1209
          %s1211 = smul.addr %s94, 16
          %s1212 = scalar_lea.hbm %s27, %s1211
          %s1214 = sshll.u32 %s1207, 4
          %s1215 = int_to_ptr.vmem [resolvable:$true] %s1214
          %1217 = dma.hbm_to_vmem [thread:$0]  %s1212, 16, %s1215, %s1205
        $region128: #{tpu_custom_call.1} parent=83 // pred_fallthru
          _
        // Predicated region
        $region129: #{tpu_custom_call.1} parent=83 // pred_check
          %p1218 = pneg %p467
        $region130: #{tpu_custom_call.1} parent=83 // pred_check_branch
          %1220 = sbr.rel (%p1218) target = $region132
        $region131: #{tpu_custom_call.1} parent=83 // pred_region
          %s1221 = sand.u32 %s86, 1
          %s1222 = scalar_lea.sflag [#allocation4], %s1221
          %s1223 = sand.u32 %s457, 1
          %s1224 = scalar_lea.vmem [#allocation14], %s1223
          %s1226 = ssub.s32 16, 16
          %1227 = vsyncadd %s1222, %s1226
          %s1228 = smul.addr %s94, 16
          %s1229 = scalar_lea.hbm %s29, %s1228
          %s1231 = sshll.u32 %s1224, 4
          %s1232 = int_to_ptr.vmem [resolvable:$true] %s1231
          %1234 = dma.hbm_to_vmem [thread:$0]  %s1229, 16, %s1232, %s1222
        $region132: #{tpu_custom_call.1} parent=83 // pred_fallthru
          _
        // Predicated region
        $region133: #{tpu_custom_call.1} parent=83 // pred_check
          %p1235 = pneg %p493
        $region134: #{tpu_custom_call.1} parent=83 // pred_check_branch
          %1237 = sbr.rel (%p1235) target = $region136
        $region135: #{tpu_custom_call.1} parent=83 // pred_region
          %s1238 = sand.u32 %s86, 1
          %s1239 = scalar_lea.sflag [#allocation4], %s1238
          %s1240 = sand.u32 %s483, 1
          %s1241 = scalar_lea.vmem [#allocation15], %s1240
          %s1243 = ssub.s32 16, 16
          %1244 = vsyncadd %s1239, %s1243
          %s1245 = smul.addr %s94, 16
          %s1246 = scalar_lea.hbm %s31, %s1245
          %s1248 = sshll.u32 %s1241, 4
          %s1249 = int_to_ptr.vmem [resolvable:$true] %s1248
          %1251 = dma.hbm_to_vmem [thread:$0]  %s1246, 16, %s1249, %s1239
        $region136: #{tpu_custom_call.1} parent=83 // pred_fallthru
          _
      $region84: #{tpu_custom_call.1} parent=5 // pred_fallthru
        _
      %p1252 = scmp.le.s32.totalorder 1, %s86
      %p1253 = scmp.lt.s32.totalorder %s86, 13
      %p1254 = pnand %p1252, %p1253
      %p1255 = pneg %p1254
      // Predicated region
      $region137: #{tpu_custom_call.1} parent=5 // pred_check
        _
      $region138: #{tpu_custom_call.1} parent=5 // pred_check_branch
        %1257 = sbr.rel (%p1254) target = $region140
      $region139: #{tpu_custom_call.1} parent=5 // pred_region
        %s1258 = ssub.s32 %s86, 1
        // Predicated region
        $region141: #{tpu_custom_call.1} parent=139 // pred_check
          %p1259 = pneg %p145
        $region142: #{tpu_custom_call.1} parent=139 // pred_check_branch
          %1261 = sbr.rel (%p1259) target = $region144
        $region143: #{tpu_custom_call.1} parent=139 // pred_region
          %1262 = dma.done [#allocation4], 32
        $region144: #{tpu_custom_call.1} parent=139 // pred_fallthru
          _
        // Predicated region
        $region145: #{tpu_custom_call.1} parent=139 // pred_check
          %p1263 = pneg %p187
        $region146: #{tpu_custom_call.1} parent=139 // pred_check_branch
          %1265 = sbr.rel (%p1263) target = $region148
        $region147: #{tpu_custom_call.1} parent=139 // pred_region
          %1266 = dma.done [#allocation7], 128
        $region148: #{tpu_custom_call.1} parent=139 // pred_fallthru
          _
        %s1267 = sand.u32 %s91, 1
        %s1268 = scalar_lea.sflag [#allocation4], %s1267
        %s1269 = sand.u32 %s226, 1
        %s1270 = smul.addr %s1269, 3
        %s1271 = scalar_lea.vmem [#allocation8], %s1270
        // Predicated region
        $region149: #{tpu_custom_call.1} parent=139 // pred_check
          %p1272 = pneg %p239
        $region150: #{tpu_custom_call.1} parent=139 // pred_check_branch
          %1274 = sbr.rel (%p1272) target = $region152
        $region151: #{tpu_custom_call.1} parent=139 // pred_region
          %1275 = dma.done %s1268, 48
        $region152: #{tpu_custom_call.1} parent=139 // pred_fallthru
          _
        %s1276 = sand.u32 %s91, 1
        %s1277 = scalar_lea.sflag [#allocation4], %s1276
        %s1278 = sand.u32 %s278, 1
        %s1279 = scalar_lea.vmem [#allocation9], %s1278
        // Predicated region
        $region153: #{tpu_custom_call.1} parent=139 // pred_check
          %p1280 = pneg %p291
        $region154: #{tpu_custom_call.1} parent=139 // pred_check_branch
          %1282 = sbr.rel (%p1280) target = $region156
        $region155: #{tpu_custom_call.1} parent=139 // pred_region
          %1283 = dma.done %s1277, 16
        $region156: #{tpu_custom_call.1} parent=139 // pred_fallthru
          _
        %s1284 = sand.u32 %s91, 1
        %s1285 = scalar_lea.sflag [#allocation4], %s1284
        %s1286 = sand.u32 %s330, 1
        %s1287 = smul.addr %s1286, 2
        %s1288 = scalar_lea.vmem [#allocation10], %s1287
        // Predicated region
        $region157: #{tpu_custom_call.1} parent=139 // pred_check
          %p1289 = pneg %p343
        $region158: #{tpu_custom_call.1} parent=139 // pred_check_branch
          %1291 = sbr.rel (%p1289) target = $region160
        $region159: #{tpu_custom_call.1} parent=139 // pred_region
          %1292 = dma.done %s1285, 32
        $region160: #{tpu_custom_call.1} parent=139 // pred_fallthru
          _
        %s1293 = sand.u32 %s91, 1
        %s1294 = scalar_lea.sflag [#allocation4], %s1293
        %s1295 = sand.u32 %s382, 1
        %s1296 = scalar_lea.vmem [#allocation11], %s1295
        // Predicated region
        $region161: #{tpu_custom_call.1} parent=139 // pred_check
          %p1297 = pneg %p395
        $region162: #{tpu_custom_call.1} parent=139 // pred_check_branch
          %1299 = sbr.rel (%p1297) target = $region164
        $region163: #{tpu_custom_call.1} parent=139 // pred_region
          %1300 = dma.done %s1294, 16
        $region164: #{tpu_custom_call.1} parent=139 // pred_fallthru
          _
        %s1301 = sand.u32 %s91, 1
        %s1302 = scalar_lea.sflag [#allocation4], %s1301
        %s1303 = sand.u32 %s408, 1
        %s1304 = scalar_lea.vmem [#allocation12], %s1303
        // Predicated region
        $region165: #{tpu_custom_call.1} parent=139 // pred_check
          %p1305 = pneg %p421
        $region166: #{tpu_custom_call.1} parent=139 // pred_check_branch
          %1307 = sbr.rel (%p1305) target = $region168
        $region167: #{tpu_custom_call.1} parent=139 // pred_region
          %1308 = dma.done %s1302, 16
        $region168: #{tpu_custom_call.1} parent=139 // pred_fallthru
          _
        %s1309 = sand.u32 %s91, 1
        %s1310 = scalar_lea.sflag [#allocation4], %s1309
        %s1311 = sand.u32 %s434, 1
        %s1312 = scalar_lea.vmem [#allocation13], %s1311
        // Predicated region
        $region169: #{tpu_custom_call.1} parent=139 // pred_check
          %p1313 = pneg %p447
        $region170: #{tpu_custom_call.1} parent=139 // pred_check_branch
          %1315 = sbr.rel (%p1313) target = $region172
        $region171: #{tpu_custom_call.1} parent=139 // pred_region
          %1316 = dma.done %s1310, 16
        $region172: #{tpu_custom_call.1} parent=139 // pred_fallthru
          _
        %s1317 = sand.u32 %s91, 1
        %s1318 = scalar_lea.sflag [#allocation4], %s1317
        %s1319 = sand.u32 %s460, 1
        %s1320 = scalar_lea.vmem [#allocation14], %s1319
        // Predicated region
        $region173: #{tpu_custom_call.1} parent=139 // pred_check
          %p1321 = pneg %p473
        $region174: #{tpu_custom_call.1} parent=139 // pred_check_branch
          %1323 = sbr.rel (%p1321) target = $region176
        $region175: #{tpu_custom_call.1} parent=139 // pred_region
          %1324 = dma.done %s1318, 16
        $region176: #{tpu_custom_call.1} parent=139 // pred_fallthru
          _
        %s1325 = sand.u32 %s91, 1
        %s1326 = scalar_lea.sflag [#allocation4], %s1325
        %s1327 = sand.u32 %s486, 1
        %s1328 = scalar_lea.vmem [#allocation15], %s1327
        // Predicated region
        $region177: #{tpu_custom_call.1} parent=139 // pred_check
          %p1329 = pneg %p499
        $region178: #{tpu_custom_call.1} parent=139 // pred_check_branch
          %1331 = sbr.rel (%p1329) target = $region180
        $region179: #{tpu_custom_call.1} parent=139 // pred_region
          %1332 = dma.done %s1326, 16
        $region180: #{tpu_custom_call.1} parent=139 // pred_fallthru
          _
        // Predicated region
        $region181: #{tpu_custom_call.1} parent=139 // pred_check
          %p1333 = pneg %p520
        $region182: #{tpu_custom_call.1} parent=139 // pred_check_branch
          %1335 = sbr.rel (%p1333) target = $region184
        $region183: #{tpu_custom_call.1} parent=139 // pred_region
          %1336 = dma.done [#allocation7], 1024
        $region184: #{tpu_custom_call.1} parent=139 // pred_fallthru
          _
        // Predicated region
        $region185: #{tpu_custom_call.1} parent=139 // pred_check
          %p1337 = pneg %p541
        $region186: #{tpu_custom_call.1} parent=139 // pred_check_branch
          %1339 = sbr.rel (%p1337) target = $region188
        $region187: #{tpu_custom_call.1} parent=139 // pred_region
          %1340 = dma.done [#allocation18], 32
        $region188: #{tpu_custom_call.1} parent=139 // pred_fallthru
          _
        // Predicated region
        $region189: #{tpu_custom_call.1} parent=139 // pred_check
          %p1341 = pneg %p562
        $region190: #{tpu_custom_call.1} parent=139 // pred_check_branch
          %1343 = sbr.rel (%p1341) target = $region192
        $region191: #{tpu_custom_call.1} parent=139 // pred_region
          %1344 = dma.done [#allocation18], 1536
        $region192: #{tpu_custom_call.1} parent=139 // pred_fallthru
          _
        // Predicated region
        $region193: #{tpu_custom_call.1} parent=139 // pred_check
          %p1345 = pneg %p583
        $region194: #{tpu_custom_call.1} parent=139 // pred_check_branch
          %1347 = sbr.rel (%p1345) target = $region196
        $region195: #{tpu_custom_call.1} parent=139 // pred_region
          %1348 = dma.done [#allocation21], 48
        $region196: #{tpu_custom_call.1} parent=139 // pred_fallthru
          _
        // Predicated region
        $region197: #{tpu_custom_call.1} parent=139 // pred_check
          %p1349 = pneg %p604
        $region198: #{tpu_custom_call.1} parent=139 // pred_check_branch
          %1351 = sbr.rel (%p1349) target = $region200
        $region199: #{tpu_custom_call.1} parent=139 // pred_region
          %1352 = dma.done [#allocation21], 48
        $region200: #{tpu_custom_call.1} parent=139 // pred_fallthru
          _
        // Predicated region
        $region201: #{tpu_custom_call.1} parent=139 // pred_check
          %p1353 = pneg %p625
        $region202: #{tpu_custom_call.1} parent=139 // pred_check_branch
          %1355 = sbr.rel (%p1353) target = $region204
        $region203: #{tpu_custom_call.1} parent=139 // pred_region
          %1356 = dma.done [#allocation24], 48
        $region204: #{tpu_custom_call.1} parent=139 // pred_fallthru
          _
        // Predicated region
        $region205: #{tpu_custom_call.1} parent=139 // pred_check
          %p1357 = pneg %p646
        $region206: #{tpu_custom_call.1} parent=139 // pred_check_branch
          %1359 = sbr.rel (%p1357) target = $region208
        $region207: #{tpu_custom_call.1} parent=139 // pred_region
          %1360 = dma.done [#allocation24], 512
        $region208: #{tpu_custom_call.1} parent=139 // pred_fallthru
          _
        // Predicated region
        $region209: #{tpu_custom_call.1} parent=139 // pred_check
          %p1361 = pneg %p667
        $region210: #{tpu_custom_call.1} parent=139 // pred_check_branch
          %1363 = sbr.rel (%p1361) target = $region212
        $region211: #{tpu_custom_call.1} parent=139 // pred_region
          %1364 = dma.done [#allocation27], 16
        $region212: #{tpu_custom_call.1} parent=139 // pred_fallthru
          _
        // Predicated region
        $region213: #{tpu_custom_call.1} parent=139 // pred_check
          %p1365 = pneg %p709
        $region214: #{tpu_custom_call.1} parent=139 // pred_check_branch
          %1367 = sbr.rel (%p1365) target = $region216
        $region215: #{tpu_custom_call.1} parent=139 // pred_region
          %1368 = dma.done [#allocation27], 48
        $region216: #{tpu_custom_call.1} parent=139 // pred_fallthru
          _
        // Predicated region
        $region217: #{tpu_custom_call.1} parent=139 // pred_check
          %p1369 = pneg %p730
        $region218: #{tpu_custom_call.1} parent=139 // pred_check_branch
          %1371 = sbr.rel (%p1369) target = $region220
        $region219: #{tpu_custom_call.1} parent=139 // pred_region
          %1372 = dma.done [#allocation30], 48
        $region220: #{tpu_custom_call.1} parent=139 // pred_fallthru
          _
        // Predicated region
        $region221: #{tpu_custom_call.1} parent=139 // pred_check
          %p1373 = pneg %p751
        $region222: #{tpu_custom_call.1} parent=139 // pred_check_branch
          %1375 = sbr.rel (%p1373) target = $region224
        $region223: #{tpu_custom_call.1} parent=139 // pred_region
          %1376 = dma.done [#allocation30], 48
        $region224: #{tpu_custom_call.1} parent=139 // pred_fallthru
          _
        // Predicated region
        $region225: #{tpu_custom_call.1} parent=139 // pred_check
          %p1377 = pneg %p793
        $region226: #{tpu_custom_call.1} parent=139 // pred_check_branch
          %1379 = sbr.rel (%p1377) target = $region228
        $region227: #{tpu_custom_call.1} parent=139 // pred_region
          %1380 = dma.done [#allocation33], 16
        $region228: #{tpu_custom_call.1} parent=139 // pred_fallthru
          _
        %p1381 = scmp.lt.s32.totalorder %s95, 1
        %s1382 = scalar_select %p1381, %s95, 1
        %s1383 = smul.addr %s1382, 8
        %s1384 = scalar_lea.vmem %s1, %s1383
        %p1385 = pneg %p124
        %p1386 = pneg %p121
        %p1387 = pneg %p145
        %p1388 = pneg %p142
        %p1389 = pneg %p166
        %p1390 = pneg %p163
        %p1391 = pneg %p187
        %p1392 = pneg %p184
        %p1393 = scmp.lt.s32.totalorder %s96, 5
        %s1394 = scalar_select %p1393, %s96, 5
        %s1395 = smul.addr %s1394, 24
        %s1396 = smul.addr %s1395, 4
        %s1397 = scalar_lea.vmem %s9, %s1396
        %p1398 = pneg %p213
        %p1399 = pneg %p210
        %s1400 = sand.u32 %s91, 1
        %s1401 = scalar_lea.sflag [#allocation4], %s1400
        %s1402 = sand.u32 %s226, 1
        %s1403 = smul.addr %s1402, 3
        %s1404 = scalar_lea.vmem [#allocation8], %s1403
        %p1405 = pneg %p239
        %p1406 = pneg %p236
        %p1407 = scmp.lt.s32.totalorder %s96, 5
        %s1408 = scalar_select %p1407, %s96, 5
        %s1409 = smul.addr %s1408, 8
        %s1410 = smul.addr %s1409, 4
        %s1411 = scalar_lea.vmem %s13, %s1410
        %p1412 = pneg %p265
        %p1413 = pneg %p262
        %s1414 = sand.u32 %s91, 1
        %s1415 = scalar_lea.sflag [#allocation4], %s1414
        %s1416 = sand.u32 %s278, 1
        %s1417 = scalar_lea.vmem [#allocation9], %s1416
        %p1418 = pneg %p291
        %p1419 = pneg %p288
        %p1420 = scmp.lt.s32.totalorder %s96, 5
        %s1421 = scalar_select %p1420, %s96, 5
        %s1422 = smul.addr %s1421, 16
        %s1423 = smul.addr %s1422, 4
        %s1424 = scalar_lea.vmem %s17, %s1423
        %p1425 = pneg %p317
        %p1426 = pneg %p314
        %s1427 = sand.u32 %s91, 1
        %s1428 = scalar_lea.sflag [#allocation4], %s1427
        %s1429 = sand.u32 %s330, 1
        %s1430 = smul.addr %s1429, 2
        %s1431 = scalar_lea.vmem [#allocation10], %s1430
        %p1432 = pneg %p343
        %p1433 = pneg %p340
        %p1434 = scmp.lt.s32.totalorder %s96, 5
        %s1435 = scalar_select %p1434, %s96, 5
        %s1436 = smul.addr %s1435, 32
        %s1437 = smul.addr %s1436, 4
        %s1438 = scalar_lea.vmem %s21, %s1437
        %p1439 = pneg %p369
        %p1440 = pneg %p366
        %s1441 = sand.u32 %s91, 1
        %s1442 = scalar_lea.sflag [#allocation4], %s1441
        %s1443 = sand.u32 %s382, 1
        %s1444 = scalar_lea.vmem [#allocation11], %s1443
        %p1445 = pneg %p395
        %p1446 = pneg %p392
        %s1447 = sand.u32 %s91, 1
        %s1448 = scalar_lea.sflag [#allocation4], %s1447
        %s1449 = sand.u32 %s408, 1
        %s1450 = scalar_lea.vmem [#allocation12], %s1449
        %p1451 = pneg %p421
        %p1452 = pneg %p418
        %s1453 = sand.u32 %s91, 1
        %s1454 = scalar_lea.sflag [#allocation4], %s1453
        %s1455 = sand.u32 %s434, 1
        %s1456 = scalar_lea.vmem [#allocation13], %s1455
        %p1457 = pneg %p447
        %p1458 = pneg %p444
        %s1459 = sand.u32 %s91, 1
        %s1460 = scalar_lea.sflag [#allocation4], %s1459
        %s1461 = sand.u32 %s460, 1
        %s1462 = scalar_lea.vmem [#allocation14], %s1461
        %p1463 = pneg %p473
        %p1464 = pneg %p470
        %s1465 = sand.u32 %s91, 1
        %s1466 = scalar_lea.sflag [#allocation4], %s1465
        %s1467 = sand.u32 %s486, 1
        %s1468 = scalar_lea.vmem [#allocation15], %s1467
        %p1469 = pneg %p499
        %p1470 = pneg %p496
        %p1471 = pneg %p520
        %p1472 = pneg %p517
        %p1473 = pneg %p541
        %p1474 = pneg %p538
        %p1475 = pneg %p562
        %p1476 = pneg %p559
        %p1477 = pneg %p583
        %p1478 = pneg %p580
        %p1479 = pneg %p604
        %p1480 = pneg %p601
        %p1481 = pneg %p625
        %p1482 = pneg %p622
        %p1483 = pneg %p646
        %p1484 = pneg %p643
        %p1485 = pneg %p667
        %p1486 = pneg %p664
        %p1487 = pneg %p688
        %p1488 = pneg %p685
        %p1489 = pneg %p709
        %p1490 = pneg %p706
        %p1491 = pneg %p730
        %p1492 = pneg %p727
        %p1493 = pneg %p751
        %p1494 = pneg %p748
        %p1495 = pneg %p772
        %p1496 = pneg %p769
        %p1497 = pneg %p793
        %p1498 = pneg %p790
        %p1499 = pneg %p819
        %p1500 = pneg %p816
        %s1501 = sand.u32 %s806, 1
        %s1502 = scalar_lea.sflag [#allocation5], %s1501
        %s1503 = sand.u32 %s806, 1
        %s1504 = smul.addr %s1503, 2
        %s1505 = scalar_lea.vmem [#allocation34], %s1504
        %p1506 = pneg %p845
        %p1507 = pneg %p842
        %s1508 = sand.u32 %s91, 1
        %s1509 = scalar_lea.sflag [#allocation36], %s1508
        %s1510 = sand.u32 %s832, 1
        %s1511 = scalar_lea.vmem [#allocation35], %s1510
        %p1512 = pneg %p871
        %p1513 = pneg %p868
        %s1514 = sand.u32 %s91, 1
        %s1515 = scalar_lea.sflag [#allocation36], %s1514
        %s1516 = sand.u32 %s858, 1
        %s1517 = scalar_lea.vmem [#allocation37], %s1516
        %p1518 = scmp.lt.s32.totalorder %s95, 1
        %s1519 = scalar_select %p1518, %s95, 1
        %s1520 = smul.addr %s1519, 8
        %s1521 = scalar_lea.vmem %s1, %s1520
        %p1522 = scmp.lt.s32.totalorder %s96, 5
        %s1523 = scalar_select %p1522, %s96, 5
        %s1524 = smul.addr %s1523, 24
        %s1525 = smul.addr %s1524, 4
        %s1526 = scalar_lea.vmem %s9, %s1525
        %p1527 = scmp.lt.s32.totalorder %s96, 5
        %s1528 = scalar_select %p1527, %s96, 5
        %s1529 = smul.addr %s1528, 8
        %s1530 = smul.addr %s1529, 4
        %s1531 = scalar_lea.vmem %s13, %s1530
        %p1532 = scmp.lt.s32.totalorder %s96, 5
        %s1533 = scalar_select %p1532, %s96, 5
        %s1534 = smul.addr %s1533, 16
        %s1535 = smul.addr %s1534, 4
        %s1536 = scalar_lea.vmem %s17, %s1535
        %p1537 = scmp.lt.s32.totalorder %s96, 5
        %s1538 = scalar_select %p1537, %s96, 5
        %s1539 = smul.addr %s1538, 32
        %s1540 = smul.addr %s1539, 4
        %s1541 = scalar_lea.vmem %s21, %s1540
        %p1543 = scmp.eq.s32.totalorder %s96, 0
        // Predicated region
        $region229: #{tpu_custom_call.1} parent=139 // pred_check
          %p1544 = pneg %p1543
        $region230: #{tpu_custom_call.1} parent=139 // pred_check_branch
          %1546 = sbr.rel (%p1544) target = $region232
        $region231: #{tpu_custom_call.1} parent=139 // pred_region
          %v1547 = vld [vmem:[%s1521] sm:$0xff]
          %v1548 = vld [vmem:[#allocation3] sm:$0x3]
          %v1549 = vld [vmem:[%s5] sm:$0x1]
          %v1550 = vpack.c.bf16 %v1547, %v1547
          %v1552 = vlaneseq
          %v1553 = vshrl.u32 %v1552, 7
          %v1554 = vsub.s32 0, %v1553
          %v1555 = vrot.slane %v1549, %v1554
          %vm1557 = vcmask 31744
          %v1559 = vsel %vm1557, %v1550, 0
          %vm1561 = vcmask 1041408
          %v1563 = vsel %vm1561, %v1548, 0
          %1565 = vmatprep.subr.bf16.mxu0 0
          %1566 = vmatpush1.bf16.msra.mxu0 %v1563
          %1567 = vmatprep.subr.bf16.mxu0 0
          %1568 = vmatpush1.bf16.msra.mxu0 0
          %1569 = vmatprep.subr.bf16.mxu0 0
          %1570 = vmatpush1.bf16.msra.mxu0 0
          %1571 = vmatprep.subr.bf16.mxu0 0
          %1572 = vmatpush1.bf16.msra.mxu0 0
          %1573 = vmatprep.subr.bf16.mxu0 0
          %1574 = vmatpush1.bf16.msra.mxu0 0
          %1575 = vmatprep.subr.bf16.mxu0 0
          %1576 = vmatpush1.bf16.msra.mxu0 0
          %1577 = vmatprep.subr.bf16.mxu0 0
          %1578 = vmatpush1.bf16.msra.mxu0 0
          %1579 = vmatprep.subr.bf16.mxu0 0
          %1580 = vmatpush1.bf16.msra.mxu0 0
          %1581 = vmatprep.subr.bf16.mxu0 0
          %1582 = vmatpush1.bf16.msra.mxu0 0
          %1583 = vmatprep.subr.bf16.mxu0 0
          %1584 = vmatpush1.bf16.msra.mxu0 0
          %1585 = vmatprep.subr.bf16.mxu0 0
          %1586 = vmatpush1.bf16.msra.mxu0 0
          %1587 = vmatprep.subr.bf16.mxu0 0
          %1588 = vmatpush1.bf16.msra.mxu0 0
          %1589 = vmatprep.subr.bf16.mxu0 0
          %1590 = vmatpush1.bf16.msra.mxu0 0
          %1591 = vmatprep.subr.bf16.mxu0 0
          %1592 = vmatpush1.bf16.msra.mxu0 0
          %1593 = vmatprep.subr.bf16.mxu0 0
          %1594 = vmatpush1.bf16.msra.mxu0 0
          %1595 = vmatprep.subr.bf16.mxu0 0
          %1596 = vmatpush1.bf16.msra.mxu0 0
          %1597 = vmatprep.mubr.bf16.mxu0 0
          %1598 = vmatmul.mubr.bf16.gmra.mrb[0].mxu0 %v1559
          %v1599 = vpop.f32.mrb[0].mxu0
          %v1600 = vadd.f32 %v1555, %v1599
          %v1601 = vpop.f32.mrb[0].mxu0
          %v1602 = vpop.f32.mrb[0].mxu0
          %v1603 = vpop.f32.mrb[0].mxu0
          %1604 = vdwg.mxu0
          %v1605 = vld [vmem:[#allocation6] sm:$0xff]
          %v1606 = vadd.f32 %v1600, %v1605
          %vm1607 = vcmask 523264
          %1608 = vst.msk [vmem:[#allocation2] sm:$0xff] %vm1607, %v1606
        $region232: #{tpu_custom_call.1} parent=139 // pred_fallthru
          _
        %v1609 = vld [vmem:[#allocation2] sm:$0xff]
        %v1610 = vld [vmem:[%s1526] sm:$0xf]
        %v1611 = vld [vmem:[%s1526 + $0x4] sm:$0xf]
        %v1612 = vld [vmem:[%s1526 + $0x8] sm:$0xf]
        %v1613 = vld [vmem:[%s1526 + $0xc] sm:$0xf]
        %v1614 = vld [vmem:[%s1526 + $0x10] sm:$0xf]
        %v1615 = vld [vmem:[%s1526 + $0x14] sm:$0xf]
        %v1616 = vld [vmem:[%s1526 + $0x18] sm:$0xf]
        %v1617 = vld [vmem:[%s1526 + $0x1c] sm:$0xf]
        %v1618 = vpack.c.bf16 %v1609, %v1609
        %v1619 = vld [vmem:[%s1271] sm:$0x1]
        %v1621 = vlaneseq
        %v1622 = vshrl.u32 %v1621, 7
        %v1623 = vsub.s32 0, %v1622
        %v1624 = vrot.slane %v1619, %v1623
        %v1634 = vunpack.c.l.b16 %v1610
        %v1635 = vunpack.c.l.b16 %v1611
        %v1636 = vunpack.c.l.b16 %v1612
        %v1637 = vunpack.c.l.b16 %v1613
        %v1638 = vunpack.c.l.b16 %v1614
        %v1639 = vunpack.c.l.b16 %v1615
        %v1640 = vunpack.c.l.b16 %v1616
        %v1641 = vunpack.c.l.b16 %v1617
        %v1642 = vpack.c.b16 %v1635, %v1634
        %v1643 = vpack.c.b16 %v1637, %v1636
        %v1644 = vpack.c.b16 %v1639, %v1638
        %v1645 = vpack.c.b16 %v1641, %v1640
        %vm1650 = vcmask 523264
        %v1652 = vsel %vm1650, %v1618, 0
        %1654 = vmatprep.subr.bf16.mxu0 0
        %1655 = vmatpush1.bf16.msra.mxu0 %v1642
        %1656 = vmatprep.subr.bf16.mxu0 0
        %1657 = vmatpush1.bf16.msra.mxu0 %v1643
        %1658 = vmatprep.subr.bf16.mxu0 0
        %1659 = vmatpush1.bf16.msra.mxu0 %v1644
        %1660 = vmatprep.subr.bf16.mxu0 0
        %1661 = vmatpush1.bf16.msra.mxu0 %v1645
        %1662 = vmatprep.subr.bf16.mxu0 0
        %1663 = vmatpush1.bf16.msra.mxu0 0
        %1664 = vmatprep.subr.bf16.mxu0 0
        %1665 = vmatpush1.bf16.msra.mxu0 0
        %1666 = vmatprep.subr.bf16.mxu0 0
        %1667 = vmatpush1.bf16.msra.mxu0 0
        %1668 = vmatprep.subr.bf16.mxu0 0
        %1669 = vmatpush1.bf16.msra.mxu0 0
        %1670 = vmatprep.subr.bf16.mxu0 0
        %1671 = vmatpush1.bf16.msra.mxu0 0
        %1672 = vmatprep.subr.bf16.mxu0 0
        %1673 = vmatpush1.bf16.msra.mxu0 0
        %1674 = vmatprep.subr.bf16.mxu0 0
        %1675 = vmatpush1.bf16.msra.mxu0 0
        %1676 = vmatprep.subr.bf16.mxu0 0
        %1677 = vmatpush1.bf16.msra.mxu0 0
        %1678 = vmatprep.subr.bf16.mxu0 0
        %1679 = vmatpush1.bf16.msra.mxu0 0
        %1680 = vmatprep.subr.bf16.mxu0 0
        %1681 = vmatpush1.bf16.msra.mxu0 0
        %1682 = vmatprep.subr.bf16.mxu0 0
        %1683 = vmatpush1.bf16.msra.mxu0 0
        %1684 = vmatprep.subr.bf16.mxu0 0
        %1685 = vmatpush1.bf16.msra.mxu0 0
        %1686 = vmatprep.mubr.bf16.mxu0 0
        %1687 = vmatmul.mubr.bf16.gmra.mrb[0].mxu0 %v1652
        %v1688 = vpop.f32.mrb[0].mxu0
        %v1689 = vadd.f32 %v1624, %v1688
        %v1690 = vpop.f32.mrb[0].mxu0
        %v1691 = vpop.f32.mrb[0].mxu0
        %v1692 = vpop.f32.mrb[0].mxu0
        %1693 = vdwg.mxu0
        %v1694 = vmul.f32 %v1689, 0.35355338
        %s1695 = scalar_lea.vmem %s1526, 32
        %v1696 = vld [vmem:[%s1695] sm:$0xf]
        %v1697 = vld [vmem:[%s1695 + $0x4] sm:$0xf]
        %v1698 = vld [vmem:[%s1695 + $0x8] sm:$0xf]
        %v1699 = vld [vmem:[%s1695 + $0xc] sm:$0xf]
        %v1700 = vld [vmem:[%s1695 + $0x10] sm:$0xf]
        %v1701 = vld [vmem:[%s1695 + $0x14] sm:$0xf]
        %v1702 = vld [vmem:[%s1695 + $0x18] sm:$0xf]
        %v1703 = vld [vmem:[%s1695 + $0x1c] sm:$0xf]
        %s1704 = scalar_lea.vmem %s1271, 1 [#allocation8]
        %v1705 = vld [vmem:[%s1704] sm:$0x1]
        %v1707 = vlaneseq
        %v1708 = vshrl.u32 %v1707, 7
        %v1709 = vsub.s32 0, %v1708
        %v1710 = vrot.slane %v1705, %v1709
        %v1720 = vunpack.c.l.b16 %v1696
        %v1721 = vunpack.c.l.b16 %v1697
        %v1722 = vunpack.c.l.b16 %v1698
        %v1723 = vunpack.c.l.b16 %v1699
        %v1724 = vunpack.c.l.b16 %v1700
        %v1725 = vunpack.c.l.b16 %v1701
        %v1726 = vunpack.c.l.b16 %v1702
        %v1727 = vunpack.c.l.b16 %v1703
        %v1728 = vpack.c.b16 %v1721, %v1720
        %v1729 = vpack.c.b16 %v1723, %v1722
        %v1730 = vpack.c.b16 %v1725, %v1724
        %v1731 = vpack.c.b16 %v1727, %v1726
        %1736 = vmatprep.subr.bf16.mxu0 0
        %1737 = vmatpush1.bf16.msra.mxu0 %v1728
        %1738 = vmatprep.subr.bf16.mxu0 0
        %1739 = vmatpush1.bf16.msra.mxu0 %v1729
        %1740 = vmatprep.subr.bf16.mxu0 0
        %1741 = vmatpush1.bf16.msra.mxu0 %v1730
        %1742 = vmatprep.subr.bf16.mxu0 0
        %1743 = vmatpush1.bf16.msra.mxu0 %v1731
        %1744 = vmatprep.subr.bf16.mxu0 0
        %1745 = vmatpush1.bf16.msra.mxu0 0
        %1746 = vmatprep.subr.bf16.mxu0 0
        %1747 = vmatpush1.bf16.msra.mxu0 0
        %1748 = vmatprep.subr.bf16.mxu0 0
        %1749 = vmatpush1.bf16.msra.mxu0 0
        %1750 = vmatprep.subr.bf16.mxu0 0
        %1751 = vmatpush1.bf16.msra.mxu0 0
        %1752 = vmatprep.subr.bf16.mxu0 0
        %1753 = vmatpush1.bf16.msra.mxu0 0
        %1754 = vmatprep.subr.bf16.mxu0 0
        %1755 = vmatpush1.bf16.msra.mxu0 0
        %1756 = vmatprep.subr.bf16.mxu0 0
        %1757 = vmatpush1.bf16.msra.mxu0 0
        %1758 = vmatprep.subr.bf16.mxu0 0
        %1759 = vmatpush1.bf16.msra.mxu0 0
        %1760 = vmatprep.subr.bf16.mxu0 0
        %1761 = vmatpush1.bf16.msra.mxu0 0
        %1762 = vmatprep.subr.bf16.mxu0 0
        %1763 = vmatpush1.bf16.msra.mxu0 0
        %1764 = vmatprep.subr.bf16.mxu0 0
        %1765 = vmatpush1.bf16.msra.mxu0 0
        %1766 = vmatprep.subr.bf16.mxu0 0
        %1767 = vmatpush1.bf16.msra.mxu0 0
        %1768 = vmatprep.mubr.bf16.mxu0 0
        %1769 = vmatmul.mubr.bf16.gmra.mrb[0].mxu0 %v1652
        %v1770 = vpop.f32.mrb[0].mxu0
        %v1771 = vadd.f32 %v1710, %v1770
        %v1772 = vpop.f32.mrb[0].mxu0
        %v1773 = vpop.f32.mrb[0].mxu0
        %v1774 = vpop.f32.mrb[0].mxu0
        %1775 = vdwg.mxu0
        %s1776 = scalar_lea.vmem %s1526, 64
        %v1777 = vld [vmem:[%s1776] sm:$0xf]
        %v1778 = vld [vmem:[%s1776 + $0x4] sm:$0xf]
        %v1779 = vld [vmem:[%s1776 + $0x8] sm:$0xf]
        %v1780 = vld [vmem:[%s1776 + $0xc] sm:$0xf]
        %v1781 = vld [vmem:[%s1776 + $0x10] sm:$0xf]
        %v1782 = vld [vmem:[%s1776 + $0x14] sm:$0xf]
        %v1783 = vld [vmem:[%s1776 + $0x18] sm:$0xf]
        %v1784 = vld [vmem:[%s1776 + $0x1c] sm:$0xf]
        %s1785 = scalar_lea.vmem %s1271, 2 [#allocation8]
        %v1786 = vld [vmem:[%s1785] sm:$0x1]
        %v1788 = vlaneseq
        %v1789 = vshrl.u32 %v1788, 7
        %v1790 = vsub.s32 0, %v1789
        %v1791 = vrot.slane %v1786, %v1790
        %v1801 = vunpack.c.l.b16 %v1777
        %v1802 = vunpack.c.l.b16 %v1778
        %v1803 = vunpack.c.l.b16 %v1779
        %v1804 = vunpack.c.l.b16 %v1780
        %v1805 = vunpack.c.l.b16 %v1781
        %v1806 = vunpack.c.l.b16 %v1782
        %v1807 = vunpack.c.l.b16 %v1783
        %v1808 = vunpack.c.l.b16 %v1784
        %v1809 = vpack.c.b16 %v1802, %v1801
        %v1810 = vpack.c.b16 %v1804, %v1803
        %v1811 = vpack.c.b16 %v1806, %v1805
        %v1812 = vpack.c.b16 %v1808, %v1807
        %1817 = vmatprep.subr.bf16.mxu0 0
        %1818 = vmatpush1.bf16.msra.mxu0 %v1809
        %1819 = vmatprep.subr.bf16.mxu0 0
        %1820 = vmatpush1.bf16.msra.mxu0 %v1810
        %1821 = vmatprep.subr.bf16.mxu0 0
        %1822 = vmatpush1.bf16.msra.mxu0 %v1811
        %1823 = vmatprep.subr.bf16.mxu0 0
        %1824 = vmatpush1.bf16.msra.mxu0 %v1812
        %1825 = vmatprep.subr.bf16.mxu0 0
        %1826 = vmatpush1.bf16.msra.mxu0 0
        %1827 = vmatprep.subr.bf16.mxu0 0
        %1828 = vmatpush1.bf16.msra.mxu0 0
        %1829 = vmatprep.subr.bf16.mxu0 0
        %1830 = vmatpush1.bf16.msra.mxu0 0
        %1831 = vmatprep.subr.bf16.mxu0 0
        %1832 = vmatpush1.bf16.msra.mxu0 0
        %1833 = vmatprep.subr.bf16.mxu0 0
        %1834 = vmatpush1.bf16.msra.mxu0 0
        %1835 = vmatprep.subr.bf16.mxu0 0
        %1836 = vmatpush1.bf16.msra.mxu0 0
        %1837 = vmatprep.subr.bf16.mxu0 0
        %1838 = vmatpush1.bf16.msra.mxu0 0
        %1839 = vmatprep.subr.bf16.mxu0 0
        %1840 = vmatpush1.bf16.msra.mxu0 0
        %1841 = vmatprep.subr.bf16.mxu0 0
        %1842 = vmatpush1.bf16.msra.mxu0 0
        %1843 = vmatprep.subr.bf16.mxu0 0
        %1844 = vmatpush1.bf16.msra.mxu0 0
        %1845 = vmatprep.subr.bf16.mxu0 0
        %1846 = vmatpush1.bf16.msra.mxu0 0
        %1847 = vmatprep.subr.bf16.mxu0 0
        %1848 = vmatpush1.bf16.msra.mxu0 0
        %1849 = vmatprep.mubr.bf16.mxu0 0
        %1850 = vmatmul.mubr.bf16.gmra.mrb[0].mxu0 %v1652
        %v1851 = vpop.f32.mrb[0].mxu0
        %v1852 = vadd.f32 %v1791, %v1851
        %v1853 = vpop.f32.mrb[0].mxu0
        %v1854 = vpop.f32.mrb[0].mxu0
        %v1855 = vpop.f32.mrb[0].mxu0
        %1856 = vdwg.mxu0
        %vm1857 = vcmask 64512
        %v1859 = vsel %vm1857, %v1694, 0
        %v1862 = vsel %vm1857, %v1771, 0
        %1864 = vmatprep.subr.mxu0 0.0
        %1865 = vmatpush1.xpose.msra.mxu0 %v1862
        %1866 = vmatprep.subr.mxu0 0.0
        %1867 = vmatpush1.xpose.msra.mxu0 0.0
        %1868 = vmatprep.subr.mxu0 0.0
        %1869 = vmatpush1.xpose.msra.mxu0 0.0
        %1870 = vmatprep.subr.mxu0 0.0
        %1871 = vmatpush1.xpose.msra.mxu0 0.0
        %1872 = vmatprep.subr.mxu0 0.0
        %1873 = vmatpush1.xpose.msra.mxu0 0.0
        %1874 = vmatprep.subr.mxu0 0.0
        %1875 = vmatpush1.xpose.msra.mxu0 0.0
        %1876 = vmatprep.subr.mxu0 0.0
        %1877 = vmatpush1.xpose.msra.mxu0 0.0
        %1878 = vmatprep.subr.mxu0 0.0
        %1879 = vmatpush1.xpose.msra.mxu0 0.0
        %1880 = vmatprep.subr.mxu0 0.0
        %1881 = vmatpush1.xpose.msra.mxu0 0.0
        %1882 = vmatprep.subr.mxu0 0.0
        %1883 = vmatpush1.xpose.msra.mxu0 0.0
        %1884 = vmatprep.subr.mxu0 0.0
        %1885 = vmatpush1.xpose.msra.mxu0 0.0
        %1886 = vmatprep.subr.mxu0 0.0
        %1887 = vmatpush1.xpose.msra.mxu0 0.0
        %1888 = vmatprep.subr.mxu0 0.0
        %1889 = vmatpush1.xpose.msra.mxu0 0.0
        %1890 = vmatprep.subr.mxu0 0.0
        %1891 = vmatpush1.xpose.msra.mxu0 0.0
        %1892 = vmatprep.subr.mxu0 0.0
        %1893 = vmatpush1.xpose.msra.mxu0 0.0
        %1894 = vmatprep.subr.mxu0 0.0
        %1895 = vmatpush1.xpose.msra.mxu0 0.0
        %1896 = vmatprep.subr.mxu0 0.0
        %1897 = vmatpush1.xpose.msra.mxu0 0.0
        %1898 = vmatprep.subr.mxu0 0.0
        %1899 = vmatpush1.xpose.msra.mxu0 0.0
        %1900 = vmatprep.subr.mxu0 0.0
        %1901 = vmatpush1.xpose.msra.mxu0 0.0
        %1902 = vmatprep.subr.mxu0 0.0
        %1903 = vmatpush1.xpose.msra.mxu0 0.0
        %1904 = vmatprep.subr.mxu0 0.0
        %1905 = vmatpush1.xpose.msra.mxu0 0.0
        %1906 = vmatprep.subr.mxu0 0.0
        %1907 = vmatpush1.xpose.msra.mxu0 0.0
        %1908 = vmatprep.subr.mxu0 0.0
        %1909 = vmatpush1.xpose.msra.mxu0 0.0
        %1910 = vmatprep.subr.mxu0 0.0
        %1911 = vmatpush1.xpose.msra.mxu0 0.0
        %1912 = vmatprep.subr.mxu0 0.0
        %1913 = vmatpush1.xpose.msra.mxu0 0.0
        %1914 = vmatprep.subr.mxu0 0.0
        %1915 = vmatpush1.xpose.msra.mxu0 0.0
        %1916 = vmatprep.subr.mxu0 0.0
        %1917 = vmatpush1.xpose.msra.mxu0 0.0
        %1918 = vmatprep.subr.mxu0 0.0
        %1919 = vmatpush1.xpose.msra.mxu0 0.0
        %1920 = vmatprep.subr.mxu0 0.0
        %1921 = vmatpush1.xpose.msra.mxu0 0.0
        %1922 = vmatprep.subr.mxu0 0.0
        %1923 = vmatpush1.xpose.msra.mxu0 0.0
        %1924 = vmatprep.subr.mxu0 0.0
        %1925 = vmatpush1.xpose.msra.mxu0 0.0
        %1926 = vmatprep.subr.mxu0 0.0
        %1927 = vmatpush1.xpose.msra.mxu0 0.0
        %1928 = vmatprep.mubr.f32.mxu0 0.0
        %1929 = vmatmul.mubr.f32.gmra.mrb[0].mxu0 %v1859
        %v1930 = vpop.f32.mrb[0].mxu0
        %v1931 = vadd.f32 0.0, %v1930
        %v1932 = vpop.f32.mrb[0].mxu0
        %1933 = vdwg.mxu0
        %v1934 = vsel %vm1857, %v1931, -inf
        %1935 = vmax.xlane.f32.xlu0 %v1934
        %v1936 = vpop.xlane.xlu0 %1935
        %v1937 = vsub.f32 %v1931, %v1936
        %v1938 = vmul.f32 %v1937, 1.442695
        %v1939 = vpow.pop %v1938
        %v1940 = vsel %vm1857, %v1939, 0.0
        %1941 = vadd.xlane.f32.xlu0 %v1940
        %v1942 = vpop.xlane.xlu0 %1941
        %v1943 = vrcp.pop %v1942
        %v1944 = vmul.f32 %v1939, %v1943
        %v1946 = vsel %vm1857, %v1944, 0
        %1948 = vmatprep.subr.mxu0 0.0
        %1949 = vmatpush1.msra.mxu0 %v1852
        %1950 = vmatprep.subr.mxu0 0.0
        %1951 = vmatpush1.msra.mxu0 0.0
        %1952 = vmatprep.subr.mxu0 0.0
        %1953 = vmatpush1.msra.mxu0 0.0
        %1954 = vmatprep.subr.mxu0 0.0
        %1955 = vmatpush1.msra.mxu0 0.0
        %1956 = vmatprep.subr.mxu0 0.0
        %1957 = vmatpush1.msra.mxu0 0.0
        %1958 = vmatprep.subr.mxu0 0.0
        %1959 = vmatpush1.msra.mxu0 0.0
        %1960 = vmatprep.subr.mxu0 0.0
        %1961 = vmatpush1.msra.mxu0 0.0
        %1962 = vmatprep.subr.mxu0 0.0
        %1963 = vmatpush1.msra.mxu0 0.0
        %1964 = vmatprep.subr.mxu0 0.0
        %1965 = vmatpush1.msra.mxu0 0.0
        %1966 = vmatprep.subr.mxu0 0.0
        %1967 = vmatpush1.msra.mxu0 0.0
        %1968 = vmatprep.subr.mxu0 0.0
        %1969 = vmatpush1.msra.mxu0 0.0
        %1970 = vmatprep.subr.mxu0 0.0
        %1971 = vmatpush1.msra.mxu0 0.0
        %1972 = vmatprep.subr.mxu0 0.0
        %1973 = vmatpush1.msra.mxu0 0.0
        %1974 = vmatprep.subr.mxu0 0.0
        %1975 = vmatpush1.msra.mxu0 0.0
        %1976 = vmatprep.subr.mxu0 0.0
        %1977 = vmatpush1.msra.mxu0 0.0
        %1978 = vmatprep.subr.mxu0 0.0
        %1979 = vmatpush1.msra.mxu0 0.0
        %1980 = vmatprep.subr.mxu0 0.0
        %1981 = vmatpush1.msra.mxu0 0.0
        %1982 = vmatprep.subr.mxu0 0.0
        %1983 = vmatpush1.msra.mxu0 0.0
        %1984 = vmatprep.subr.mxu0 0.0
        %1985 = vmatpush1.msra.mxu0 0.0
        %1986 = vmatprep.subr.mxu0 0.0
        %1987 = vmatpush1.msra.mxu0 0.0
        %1988 = vmatprep.subr.mxu0 0.0
        %1989 = vmatpush1.msra.mxu0 0.0
        %1990 = vmatprep.subr.mxu0 0.0
        %1991 = vmatpush1.msra.mxu0 0.0
        %1992 = vmatprep.subr.mxu0 0.0
        %1993 = vmatpush1.msra.mxu0 0.0
        %1994 = vmatprep.subr.mxu0 0.0
        %1995 = vmatpush1.msra.mxu0 0.0
        %1996 = vmatprep.subr.mxu0 0.0
        %1997 = vmatpush1.msra.mxu0 0.0
        %1998 = vmatprep.subr.mxu0 0.0
        %1999 = vmatpush1.msra.mxu0 0.0
        %2000 = vmatprep.subr.mxu0 0.0
        %2001 = vmatpush1.msra.mxu0 0.0
        %2002 = vmatprep.subr.mxu0 0.0
        %2003 = vmatpush1.msra.mxu0 0.0
        %2004 = vmatprep.subr.mxu0 0.0
        %2005 = vmatpush1.msra.mxu0 0.0
        %2006 = vmatprep.subr.mxu0 0.0
        %2007 = vmatpush1.msra.mxu0 0.0
        %2008 = vmatprep.subr.mxu0 0.0
        %2009 = vmatpush1.msra.mxu0 0.0
        %2010 = vmatprep.subr.mxu0 0.0
        %2011 = vmatpush1.msra.mxu0 0.0
        %2012 = vmatprep.mubr.f32.mxu0 0.0
        %2013 = vmatmul.mubr.f32.gmra.mrb[0].mxu0 %v1946
        %v2014 = vpop.f32.mrb[0].mxu0
        %v2015 = vadd.f32 0.0, %v2014
        %v2016 = vpop.f32.mrb[0].mxu0
        %2017 = vdwg.mxu0
        %2018 = vrot.lane.b32.xlu0 %v1694, 120
        %v2019 = vpop.permute.xlu0 %2018
        %2020 = vrot.lane.b32.xlu0 %v1771, 120
        %v2021 = vpop.permute.xlu0 %2020
        %v2022 = vsel %vm1857, %v2019, 0
        %v2024 = vsel %vm1857, %v2021, 0
        %2026 = vmatprep.subr.mxu0 0.0
        %2027 = vmatpush1.xpose.msra.mxu0 %v2024
        %2028 = vmatprep.subr.mxu0 0.0
        %2029 = vmatpush1.xpose.msra.mxu0 0.0
        %2030 = vmatprep.subr.mxu0 0.0
        %2031 = vmatpush1.xpose.msra.mxu0 0.0
        %2032 = vmatprep.subr.mxu0 0.0
        %2033 = vmatpush1.xpose.msra.mxu0 0.0
        %2034 = vmatprep.subr.mxu0 0.0
        %2035 = vmatpush1.xpose.msra.mxu0 0.0
        %2036 = vmatprep.subr.mxu0 0.0
        %2037 = vmatpush1.xpose.msra.mxu0 0.0
        %2038 = vmatprep.subr.mxu0 0.0
        %2039 = vmatpush1.xpose.msra.mxu0 0.0
        %2040 = vmatprep.subr.mxu0 0.0
        %2041 = vmatpush1.xpose.msra.mxu0 0.0
        %2042 = vmatprep.subr.mxu0 0.0
        %2043 = vmatpush1.xpose.msra.mxu0 0.0
        %2044 = vmatprep.subr.mxu0 0.0
        %2045 = vmatpush1.xpose.msra.mxu0 0.0
        %2046 = vmatprep.subr.mxu0 0.0
        %2047 = vmatpush1.xpose.msra.mxu0 0.0
        %2048 = vmatprep.subr.mxu0 0.0
        %2049 = vmatpush1.xpose.msra.mxu0 0.0
        %2050 = vmatprep.subr.mxu0 0.0
        %2051 = vmatpush1.xpose.msra.mxu0 0.0
        %2052 = vmatprep.subr.mxu0 0.0
        %2053 = vmatpush1.xpose.msra.mxu0 0.0
        %2054 = vmatprep.subr.mxu0 0.0
        %2055 = vmatpush1.xpose.msra.mxu0 0.0
        %2056 = vmatprep.subr.mxu0 0.0
        %2057 = vmatpush1.xpose.msra.mxu0 0.0
        %2058 = vmatprep.subr.mxu0 0.0
        %2059 = vmatpush1.xpose.msra.mxu0 0.0
        %2060 = vmatprep.subr.mxu0 0.0
        %2061 = vmatpush1.xpose.msra.mxu0 0.0
        %2062 = vmatprep.subr.mxu0 0.0
        %2063 = vmatpush1.xpose.msra.mxu0 0.0
        %2064 = vmatprep.subr.mxu0 0.0
        %2065 = vmatpush1.xpose.msra.mxu0 0.0
        %2066 = vmatprep.subr.mxu0 0.0
        %2067 = vmatpush1.xpose.msra.mxu0 0.0
        %2068 = vmatprep.subr.mxu0 0.0
        %2069 = vmatpush1.xpose.msra.mxu0 0.0
        %2070 = vmatprep.subr.mxu0 0.0
        %2071 = vmatpush1.xpose.msra.mxu0 0.0
        %2072 = vmatprep.subr.mxu0 0.0
        %2073 = vmatpush1.xpose.msra.mxu0 0.0
        %2074 = vmatprep.subr.mxu0 0.0
        %2075 = vmatpush1.xpose.msra.mxu0 0.0
        %2076 = vmatprep.subr.mxu0 0.0
        %2077 = vmatpush1.xpose.msra.mxu0 0.0
        %2078 = vmatprep.subr.mxu0 0.0
        %2079 = vmatpush1.xpose.msra.mxu0 0.0
        %2080 = vmatprep.subr.mxu0 0.0
        %2081 = vmatpush1.xpose.msra.mxu0 0.0
        %2082 = vmatprep.subr.mxu0 0.0
        %2083 = vmatpush1.xpose.msra.mxu0 0.0
        %2084 = vmatprep.subr.mxu0 0.0
        %2085 = vmatpush1.xpose.msra.mxu0 0.0
        %2086 = vmatprep.subr.mxu0 0.0
        %2087 = vmatpush1.xpose.msra.mxu0 0.0
        %2088 = vmatprep.subr.mxu0 0.0
        %2089 = vmatpush1.xpose.msra.mxu0 0.0
        %2090 = vmatprep.mubr.f32.mxu0 0.0
        %2091 = vmatmul.mubr.f32.gmra.mrb[0].mxu0 %v2022
        %v2092 = vpop.f32.mrb[0].mxu0
        %v2093 = vadd.f32 0.0, %v2092
        %v2094 = vpop.f32.mrb[0].mxu0
        %2095 = vdwg.mxu0
        %v2096 = vsel %vm1857, %v2093, -inf
        %2097 = vmax.xlane.f32.xlu0 %v2096
        %v2098 = vpop.xlane.xlu0 %2097
        %v2099 = vsub.f32 %v2093, %v2098
        %v2100 = vmul.f32 %v2099, 1.442695
        %v2101 = vpow.pop %v2100
        %v2102 = vsel %vm1857, %v2101, 0.0
        %2103 = vadd.xlane.f32.xlu0 %v2102
        %v2104 = vpop.xlane.xlu0 %2103
        %v2105 = vrcp.pop %v2104
        %v2106 = vmul.f32 %v2101, %v2105
        %2108 = vrot.lane.b32.xlu0 %v1852, 120
        %v2109 = vpop.permute.xlu0 %2108
        %v2112 = vsel %vm1857, %v2106, 0
        %2114 = vmatprep.subr.mxu0 0.0
        %2115 = vmatpush1.msra.mxu0 %v2109
        %2116 = vmatprep.subr.mxu0 0.0
        %2117 = vmatpush1.msra.mxu0 0.0
        %2118 = vmatprep.subr.mxu0 0.0
        %2119 = vmatpush1.msra.mxu0 0.0
        %2120 = vmatprep.subr.mxu0 0.0
        %2121 = vmatpush1.msra.mxu0 0.0
        %2122 = vmatprep.subr.mxu0 0.0
        %2123 = vmatpush1.msra.mxu0 0.0
        %2124 = vmatprep.subr.mxu0 0.0
        %2125 = vmatpush1.msra.mxu0 0.0
        %2126 = vmatprep.subr.mxu0 0.0
        %2127 = vmatpush1.msra.mxu0 0.0
        %2128 = vmatprep.subr.mxu0 0.0
        %2129 = vmatpush1.msra.mxu0 0.0
        %2130 = vmatprep.subr.mxu0 0.0
        %2131 = vmatpush1.msra.mxu0 0.0
        %2132 = vmatprep.subr.mxu0 0.0
        %2133 = vmatpush1.msra.mxu0 0.0
        %2134 = vmatprep.subr.mxu0 0.0
        %2135 = vmatpush1.msra.mxu0 0.0
        %2136 = vmatprep.subr.mxu0 0.0
        %2137 = vmatpush1.msra.mxu0 0.0
        %2138 = vmatprep.subr.mxu0 0.0
        %2139 = vmatpush1.msra.mxu0 0.0
        %2140 = vmatprep.subr.mxu0 0.0
        %2141 = vmatpush1.msra.mxu0 0.0
        %2142 = vmatprep.subr.mxu0 0.0
        %2143 = vmatpush1.msra.mxu0 0.0
        %2144 = vmatprep.subr.mxu0 0.0
        %2145 = vmatpush1.msra.mxu0 0.0
        %2146 = vmatprep.subr.mxu0 0.0
        %2147 = vmatpush1.msra.mxu0 0.0
        %2148 = vmatprep.subr.mxu0 0.0
        %2149 = vmatpush1.msra.mxu0 0.0
        %2150 = vmatprep.subr.mxu0 0.0
        %2151 = vmatpush1.msra.mxu0 0.0
        %2152 = vmatprep.subr.mxu0 0.0
        %2153 = vmatpush1.msra.mxu0 0.0
        %2154 = vmatprep.subr.mxu0 0.0
        %2155 = vmatpush1.msra.mxu0 0.0
        %2156 = vmatprep.subr.mxu0 0.0
        %2157 = vmatpush1.msra.mxu0 0.0
        %2158 = vmatprep.subr.mxu0 0.0
        %2159 = vmatpush1.msra.mxu0 0.0
        %2160 = vmatprep.subr.mxu0 0.0
        %2161 = vmatpush1.msra.mxu0 0.0
        %2162 = vmatprep.subr.mxu0 0.0
        %2163 = vmatpush1.msra.mxu0 0.0
        %2164 = vmatprep.subr.mxu0 0.0
        %2165 = vmatpush1.msra.mxu0 0.0
        %2166 = vmatprep.subr.mxu0 0.0
        %2167 = vmatpush1.msra.mxu0 0.0
        %2168 = vmatprep.subr.mxu0 0.0
        %2169 = vmatpush1.msra.mxu0 0.0
        %2170 = vmatprep.subr.mxu0 0.0
        %2171 = vmatpush1.msra.mxu0 0.0
        %2172 = vmatprep.subr.mxu0 0.0
        %2173 = vmatpush1.msra.mxu0 0.0
        %2174 = vmatprep.subr.mxu0 0.0
        %2175 = vmatpush1.msra.mxu0 0.0
        %2176 = vmatprep.subr.mxu0 0.0
        %2177 = vmatpush1.msra.mxu0 0.0
        %2178 = vmatprep.mubr.f32.mxu0 0.0
        %2179 = vmatmul.mubr.f32.gmra.mrb[0].mxu0 %v2112
        %v2180 = vpop.f32.mrb[0].mxu0
        %v2181 = vadd.f32 0.0, %v2180
        %v2182 = vpop.f32.mrb[0].mxu0
        %2183 = vdwg.mxu0
        %2184 = vrot.lane.b32.xlu0 %v1694, 112
        %v2185 = vpop.permute.xlu0 %2184
        %2186 = vrot.lane.b32.xlu0 %v1771, 112
        %v2187 = vpop.permute.xlu0 %2186
        %v2188 = vsel %vm1857, %v2185, 0
        %v2190 = vsel %vm1857, %v2187, 0
        %2192 = vmatprep.subr.mxu0 0.0
        %2193 = vmatpush1.xpose.msra.mxu0 %v2190
        %2194 = vmatprep.subr.mxu0 0.0
        %2195 = vmatpush1.xpose.msra.mxu0 0.0
        %2196 = vmatprep.subr.mxu0 0.0
        %2197 = vmatpush1.xpose.msra.mxu0 0.0
        %2198 = vmatprep.subr.mxu0 0.0
        %2199 = vmatpush1.xpose.msra.mxu0 0.0
        %2200 = vmatprep.subr.mxu0 0.0
        %2201 = vmatpush1.xpose.msra.mxu0 0.0
        %2202 = vmatprep.subr.mxu0 0.0
        %2203 = vmatpush1.xpose.msra.mxu0 0.0
        %2204 = vmatprep.subr.mxu0 0.0
        %2205 = vmatpush1.xpose.msra.mxu0 0.0
        %2206 = vmatprep.subr.mxu0 0.0
        %2207 = vmatpush1.xpose.msra.mxu0 0.0
        %2208 = vmatprep.subr.mxu0 0.0
        %2209 = vmatpush1.xpose.msra.mxu0 0.0
        %2210 = vmatprep.subr.mxu0 0.0
        %2211 = vmatpush1.xpose.msra.mxu0 0.0
        %2212 = vmatprep.subr.mxu0 0.0
        %2213 = vmatpush1.xpose.msra.mxu0 0.0
        %2214 = vmatprep.subr.mxu0 0.0
        %2215 = vmatpush1.xpose.msra.mxu0 0.0
        %2216 = vmatprep.subr.mxu0 0.0
        %2217 = vmatpush1.xpose.msra.mxu0 0.0
        %2218 = vmatprep.subr.mxu0 0.0
        %2219 = vmatpush1.xpose.msra.mxu0 0.0
        %2220 = vmatprep.subr.mxu0 0.0
        %2221 = vmatpush1.xpose.msra.mxu0 0.0
        %2222 = vmatprep.subr.mxu0 0.0
        %2223 = vmatpush1.xpose.msra.mxu0 0.0
        %2224 = vmatprep.subr.mxu0 0.0
        %2225 = vmatpush1.xpose.msra.mxu0 0.0
        %2226 = vmatprep.subr.mxu0 0.0
        %2227 = vmatpush1.xpose.msra.mxu0 0.0
        %2228 = vmatprep.subr.mxu0 0.0
        %2229 = vmatpush1.xpose.msra.mxu0 0.0
        %2230 = vmatprep.subr.mxu0 0.0
        %2231 = vmatpush1.xpose.msra.mxu0 0.0
        %2232 = vmatprep.subr.mxu0 0.0
        %2233 = vmatpush1.xpose.msra.mxu0 0.0
        %2234 = vmatprep.subr.mxu0 0.0
        %2235 = vmatpush1.xpose.msra.mxu0 0.0
        %2236 = vmatprep.subr.mxu0 0.0
        %2237 = vmatpush1.xpose.msra.mxu0 0.0
        %2238 = vmatprep.subr.mxu0 0.0
        %2239 = vmatpush1.xpose.msra.mxu0 0.0
        %2240 = vmatprep.subr.mxu0 0.0
        %2241 = vmatpush1.xpose.msra.mxu0 0.0
        %2242 = vmatprep.subr.mxu0 0.0
        %2243 = vmatpush1.xpose.msra.mxu0 0.0
        %2244 = vmatprep.subr.mxu0 0.0
        %2245 = vmatpush1.xpose.msra.mxu0 0.0
        %2246 = vmatprep.subr.mxu0 0.0
        %2247 = vmatpush1.xpose.msra.mxu0 0.0
        %2248 = vmatprep.subr.mxu0 0.0
        %2249 = vmatpush1.xpose.msra.mxu0 0.0
        %2250 = vmatprep.subr.mxu0 0.0
        %2251 = vmatpush1.xpose.msra.mxu0 0.0
        %2252 = vmatprep.subr.mxu0 0.0
        %2253 = vmatpush1.xpose.msra.mxu0 0.0
        %2254 = vmatprep.subr.mxu0 0.0
        %2255 = vmatpush1.xpose.msra.mxu0 0.0
        %2256 = vmatprep.mubr.f32.mxu0 0.0
        %2257 = vmatmul.mubr.f32.gmra.mrb[0].mxu0 %v2188
        %v2258 = vpop.f32.mrb[0].mxu0
        %v2259 = vadd.f32 0.0, %v2258
        %v2260 = vpop.f32.mrb[0].mxu0
        %2261 = vdwg.mxu0
        %v2262 = vsel %vm1857, %v2259, -inf
        %2263 = vmax.xlane.f32.xlu0 %v2262
        %v2264 = vpop.xlane.xlu0 %2263
        %v2265 = vsub.f32 %v2259, %v2264
        %v2266 = vmul.f32 %v2265, 1.442695
        %v2267 = vpow.pop %v2266
        %v2268 = vsel %vm1857, %v2267, 0.0
        %2269 = vadd.xlane.f32.xlu0 %v2268
        %v2270 = vpop.xlane.xlu0 %2269
        %v2271 = vrcp.pop %v2270
        %v2272 = vmul.f32 %v2267, %v2271
        %2273 = vrot.lane.b32.xlu0 %v1852, 112
        %v2274 = vpop.permute.xlu0 %2273
        %v2277 = vsel %vm1857, %v2272, 0
        %2279 = vmatprep.subr.mxu0 0.0
        %2280 = vmatpush1.msra.mxu0 %v2274
        %2281 = vmatprep.subr.mxu0 0.0
        %2282 = vmatpush1.msra.mxu0 0.0
        %2283 = vmatprep.subr.mxu0 0.0
        %2284 = vmatpush1.msra.mxu0 0.0
        %2285 = vmatprep.subr.mxu0 0.0
        %2286 = vmatpush1.msra.mxu0 0.0
        %2287 = vmatprep.subr.mxu0 0.0
        %2288 = vmatpush1.msra.mxu0 0.0
        %2289 = vmatprep.subr.mxu0 0.0
        %2290 = vmatpush1.msra.mxu0 0.0
        %2291 = vmatprep.subr.mxu0 0.0
        %2292 = vmatpush1.msra.mxu0 0.0
        %2293 = vmatprep.subr.mxu0 0.0
        %2294 = vmatpush1.msra.mxu0 0.0
        %2295 = vmatprep.subr.mxu0 0.0
        %2296 = vmatpush1.msra.mxu0 0.0
        %2297 = vmatprep.subr.mxu0 0.0
        %2298 = vmatpush1.msra.mxu0 0.0
        %2299 = vmatprep.subr.mxu0 0.0
        %2300 = vmatpush1.msra.mxu0 0.0
        %2301 = vmatprep.subr.mxu0 0.0
        %2302 = vmatpush1.msra.mxu0 0.0
        %2303 = vmatprep.subr.mxu0 0.0
        %2304 = vmatpush1.msra.mxu0 0.0
        %2305 = vmatprep.subr.mxu0 0.0
        %2306 = vmatpush1.msra.mxu0 0.0
        %2307 = vmatprep.subr.mxu0 0.0
        %2308 = vmatpush1.msra.mxu0 0.0
        %2309 = vmatprep.subr.mxu0 0.0
        %2310 = vmatpush1.msra.mxu0 0.0
        %2311 = vmatprep.subr.mxu0 0.0
        %2312 = vmatpush1.msra.mxu0 0.0
        %2313 = vmatprep.subr.mxu0 0.0
        %2314 = vmatpush1.msra.mxu0 0.0
        %2315 = vmatprep.subr.mxu0 0.0
        %2316 = vmatpush1.msra.mxu0 0.0
        %2317 = vmatprep.subr.mxu0 0.0
        %2318 = vmatpush1.msra.mxu0 0.0
        %2319 = vmatprep.subr.mxu0 0.0
        %2320 = vmatpush1.msra.mxu0 0.0
        %2321 = vmatprep.subr.mxu0 0.0
        %2322 = vmatpush1.msra.mxu0 0.0
        %2323 = vmatprep.subr.mxu0 0.0
        %2324 = vmatpush1.msra.mxu0 0.0
        %2325 = vmatprep.subr.mxu0 0.0
        %2326 = vmatpush1.msra.mxu0 0.0
        %2327 = vmatprep.subr.mxu0 0.0
        %2328 = vmatpush1.msra.mxu0 0.0
        %2329 = vmatprep.subr.mxu0 0.0
        %2330 = vmatpush1.msra.mxu0 0.0
        %2331 = vmatprep.subr.mxu0 0.0
        %2332 = vmatpush1.msra.mxu0 0.0
        %2333 = vmatprep.subr.mxu0 0.0
        %2334 = vmatpush1.msra.mxu0 0.0
        %2335 = vmatprep.subr.mxu0 0.0
        %2336 = vmatpush1.msra.mxu0 0.0
        %2337 = vmatprep.subr.mxu0 0.0
        %2338 = vmatpush1.msra.mxu0 0.0
        %2339 = vmatprep.subr.mxu0 0.0
        %2340 = vmatpush1.msra.mxu0 0.0
        %2341 = vmatprep.subr.mxu0 0.0
        %2342 = vmatpush1.msra.mxu0 0.0
        %2343 = vmatprep.mubr.f32.mxu0 0.0
        %2344 = vmatmul.mubr.f32.gmra.mrb[0].mxu0 %v2277
        %v2345 = vpop.f32.mrb[0].mxu0
        %v2346 = vadd.f32 0.0, %v2345
        %v2347 = vpop.f32.mrb[0].mxu0
        %2348 = vdwg.mxu0
        %2349 = vrot.lane.b32.xlu0 %v1694, 104
        %v2350 = vpop.permute.xlu0 %2349
        %2351 = vrot.lane.b32.xlu0 %v1771, 104
        %v2352 = vpop.permute.xlu0 %2351
        %v2353 = vsel %vm1857, %v2350, 0
        %v2355 = vsel %vm1857, %v2352, 0
        %2357 = vmatprep.subr.mxu0 0.0
        %2358 = vmatpush1.xpose.msra.mxu0 %v2355
        %2359 = vmatprep.subr.mxu0 0.0
        %2360 = vmatpush1.xpose.msra.mxu0 0.0
        %2361 = vmatprep.subr.mxu0 0.0
        %2362 = vmatpush1.xpose.msra.mxu0 0.0
        %2363 = vmatprep.subr.mxu0 0.0
        %2364 = vmatpush1.xpose.msra.mxu0 0.0
        %2365 = vmatprep.subr.mxu0 0.0
        %2366 = vmatpush1.xpose.msra.mxu0 0.0
        %2367 = vmatprep.subr.mxu0 0.0
        %2368 = vmatpush1.xpose.msra.mxu0 0.0
        %2369 = vmatprep.subr.mxu0 0.0
        %2370 = vmatpush1.xpose.msra.mxu0 0.0
        %2371 = vmatprep.subr.mxu0 0.0
        %2372 = vmatpush1.xpose.msra.mxu0 0.0
        %2373 = vmatprep.subr.mxu0 0.0
        %2374 = vmatpush1.xpose.msra.mxu0 0.0
        %2375 = vmatprep.subr.mxu0 0.0
        %2376 = vmatpush1.xpose.msra.mxu0 0.0
        %2377 = vmatprep.subr.mxu0 0.0
        %2378 = vmatpush1.xpose.msra.mxu0 0.0
        %2379 = vmatprep.subr.mxu0 0.0
        %2380 = vmatpush1.xpose.msra.mxu0 0.0
        %2381 = vmatprep.subr.mxu0 0.0
        %2382 = vmatpush1.xpose.msra.mxu0 0.0
        %2383 = vmatprep.subr.mxu0 0.0
        %2384 = vmatpush1.xpose.msra.mxu0 0.0
        %2385 = vmatprep.subr.mxu0 0.0
        %2386 = vmatpush1.xpose.msra.mxu0 0.0
        %2387 = vmatprep.subr.mxu0 0.0
        %2388 = vmatpush1.xpose.msra.mxu0 0.0
        %2389 = vmatprep.subr.mxu0 0.0
        %2390 = vmatpush1.xpose.msra.mxu0 0.0
        %2391 = vmatprep.subr.mxu0 0.0
        %2392 = vmatpush1.xpose.msra.mxu0 0.0
        %2393 = vmatprep.subr.mxu0 0.0
        %2394 = vmatpush1.xpose.msra.mxu0 0.0
        %2395 = vmatprep.subr.mxu0 0.0
        %2396 = vmatpush1.xpose.msra.mxu0 0.0
        %2397 = vmatprep.subr.mxu0 0.0
        %2398 = vmatpush1.xpose.msra.mxu0 0.0
        %2399 = vmatprep.subr.mxu0 0.0
        %2400 = vmatpush1.xpose.msra.mxu0 0.0
        %2401 = vmatprep.subr.mxu0 0.0
        %2402 = vmatpush1.xpose.msra.mxu0 0.0
        %2403 = vmatprep.subr.mxu0 0.0
        %2404 = vmatpush1.xpose.msra.mxu0 0.0
        %2405 = vmatprep.subr.mxu0 0.0
        %2406 = vmatpush1.xpose.msra.mxu0 0.0
        %2407 = vmatprep.subr.mxu0 0.0
        %2408 = vmatpush1.xpose.msra.mxu0 0.0
        %2409 = vmatprep.subr.mxu0 0.0
        %2410 = vmatpush1.xpose.msra.mxu0 0.0
        %2411 = vmatprep.subr.mxu0 0.0
        %2412 = vmatpush1.xpose.msra.mxu0 0.0
        %2413 = vmatprep.subr.mxu0 0.0
        %2414 = vmatpush1.xpose.msra.mxu0 0.0
        %2415 = vmatprep.subr.mxu0 0.0
        %2416 = vmatpush1.xpose.msra.mxu0 0.0
        %2417 = vmatprep.subr.mxu0 0.0
        %2418 = vmatpush1.xpose.msra.mxu0 0.0
        %2419 = vmatprep.subr.mxu0 0.0
        %2420 = vmatpush1.xpose.msra.mxu0 0.0
        %2421 = vmatprep.mubr.f32.mxu0 0.0
        %2422 = vmatmul.mubr.f32.gmra.mrb[0].mxu0 %v2353
        %v2423 = vpop.f32.mrb[0].mxu0
        %v2424 = vadd.f32 0.0, %v2423
        %v2425 = vpop.f32.mrb[0].mxu0
        %2426 = vdwg.mxu0
        %v2427 = vsel %vm1857, %v2424, -inf
        %2428 = vmax.xlane.f32.xlu0 %v2427
        %v2429 = vpop.xlane.xlu0 %2428
        %v2430 = vsub.f32 %v2424, %v2429
        %v2431 = vmul.f32 %v2430, 1.442695
        %v2432 = vpow.pop %v2431
        %v2433 = vsel %vm1857, %v2432, 0.0
        %2434 = vadd.xlane.f32.xlu0 %v2433
        %v2435 = vpop.xlane.xlu0 %2434
        %v2436 = vrcp.pop %v2435
        %v2437 = vmul.f32 %v2432, %v2436
        %2438 = vrot.lane.b32.xlu0 %v1852, 104
        %v2439 = vpop.permute.xlu0 %2438
        %v2442 = vsel %vm1857, %v2437, 0
        %2444 = vmatprep.subr.mxu0 0.0
        %2445 = vmatpush1.msra.mxu0 %v2439
        %2446 = vmatprep.subr.mxu0 0.0
        %2447 = vmatpush1.msra.mxu0 0.0
        %2448 = vmatprep.subr.mxu0 0.0
        %2449 = vmatpush1.msra.mxu0 0.0
        %2450 = vmatprep.subr.mxu0 0.0
        %2451 = vmatpush1.msra.mxu0 0.0
        %2452 = vmatprep.subr.mxu0 0.0
        %2453 = vmatpush1.msra.mxu0 0.0
        %2454 = vmatprep.subr.mxu0 0.0
        %2455 = vmatpush1.msra.mxu0 0.0
        %2456 = vmatprep.subr.mxu0 0.0
        %2457 = vmatpush1.msra.mxu0 0.0
        %2458 = vmatprep.subr.mxu0 0.0
        %2459 = vmatpush1.msra.mxu0 0.0
        %2460 = vmatprep.subr.mxu0 0.0
        %2461 = vmatpush1.msra.mxu0 0.0
        %2462 = vmatprep.subr.mxu0 0.0
        %2463 = vmatpush1.msra.mxu0 0.0
        %2464 = vmatprep.subr.mxu0 0.0
        %2465 = vmatpush1.msra.mxu0 0.0
        %2466 = vmatprep.subr.mxu0 0.0
        %2467 = vmatpush1.msra.mxu0 0.0
        %2468 = vmatprep.subr.mxu0 0.0
        %2469 = vmatpush1.msra.mxu0 0.0
        %2470 = vmatprep.subr.mxu0 0.0
        %2471 = vmatpush1.msra.mxu0 0.0
        %2472 = vmatprep.subr.mxu0 0.0
        %2473 = vmatpush1.msra.mxu0 0.0
        %2474 = vmatprep.subr.mxu0 0.0
        %2475 = vmatpush1.msra.mxu0 0.0
        %2476 = vmatprep.subr.mxu0 0.0
        %2477 = vmatpush1.msra.mxu0 0.0
        %2478 = vmatprep.subr.mxu0 0.0
        %2479 = vmatpush1.msra.mxu0 0.0
        %2480 = vmatprep.subr.mxu0 0.0
        %2481 = vmatpush1.msra.mxu0 0.0
        %2482 = vmatprep.subr.mxu0 0.0
        %2483 = vmatpush1.msra.mxu0 0.0
        %2484 = vmatprep.subr.mxu0 0.0
        %2485 = vmatpush1.msra.mxu0 0.0
        %2486 = vmatprep.subr.mxu0 0.0
        %2487 = vmatpush1.msra.mxu0 0.0
        %2488 = vmatprep.subr.mxu0 0.0
        %2489 = vmatpush1.msra.mxu0 0.0
        %2490 = vmatprep.subr.mxu0 0.0
        %2491 = vmatpush1.msra.mxu0 0.0
        %2492 = vmatprep.subr.mxu0 0.0
        %2493 = vmatpush1.msra.mxu0 0.0
        %2494 = vmatprep.subr.mxu0 0.0
        %2495 = vmatpush1.msra.mxu0 0.0
        %2496 = vmatprep.subr.mxu0 0.0
        %2497 = vmatpush1.msra.mxu0 0.0
        %2498 = vmatprep.subr.mxu0 0.0
        %2499 = vmatpush1.msra.mxu0 0.0
        %2500 = vmatprep.subr.mxu0 0.0
        %2501 = vmatpush1.msra.mxu0 0.0
        %2502 = vmatprep.subr.mxu0 0.0
        %2503 = vmatpush1.msra.mxu0 0.0
        %2504 = vmatprep.subr.mxu0 0.0
        %2505 = vmatpush1.msra.mxu0 0.0
        %2506 = vmatprep.subr.mxu0 0.0
        %2507 = vmatpush1.msra.mxu0 0.0
        %2508 = vmatprep.mubr.f32.mxu0 0.0
        %2509 = vmatmul.mubr.f32.gmra.mrb[0].mxu0 %v2442
        %v2510 = vpop.f32.mrb[0].mxu0
        %v2511 = vadd.f32 0.0, %v2510
        %v2512 = vpop.f32.mrb[0].mxu0
        %2513 = vdwg.mxu0
        %2514 = vrot.lane.b32.xlu0 %v1694, 96
        %v2515 = vpop.permute.xlu0 %2514
        %2516 = vrot.lane.b32.xlu0 %v1771, 96
        %v2517 = vpop.permute.xlu0 %2516
        %v2518 = vsel %vm1857, %v2515, 0
        %v2520 = vsel %vm1857, %v2517, 0
        %2522 = vmatprep.subr.mxu0 0.0
        %2523 = vmatpush1.xpose.msra.mxu0 %v2520
        %2524 = vmatprep.subr.mxu0 0.0
        %2525 = vmatpush1.xpose.msra.mxu0 0.0
        %2526 = vmatprep.subr.mxu0 0.0
        %2527 = vmatpush1.xpose.msra.mxu0 0.0
        %2528 = vmatprep.subr.mxu0 0.0
        %2529 = vmatpush1.xpose.msra.mxu0 0.0
        %2530 = vmatprep.subr.mxu0 0.0
        %2531 = vmatpush1.xpose.msra.mxu0 0.0
        %2532 = vmatprep.subr.mxu0 0.0
        %2533 = vmatpush1.xpose.msra.mxu0 0.0
        %2534 = vmatprep.subr.mxu0 0.0
        %2535 = vmatpush1.xpose.msra.mxu0 0.0
        %2536 = vmatprep.subr.mxu0 0.0
        %2537 = vmatpush1.xpose.msra.mxu0 0.0
        %2538 = vmatprep.subr.mxu0 0.0
        %2539 = vmatpush1.xpose.msra.mxu0 0.0
        %2540 = vmatprep.subr.mxu0 0.0
        %2541 = vmatpush1.xpose.msra.mxu0 0.0
        %2542 = vmatprep.subr.mxu0 0.0
        %2543 = vmatpush1.xpose.msra.mxu0 0.0
        %2544 = vmatprep.subr.mxu0 0.0
        %2545 = vmatpush1.xpose.msra.mxu0 0.0
        %2546 = vmatprep.subr.mxu0 0.0
        %2547 = vmatpush1.xpose.msra.mxu0 0.0
        %2548 = vmatprep.subr.mxu0 0.0
        %2549 = vmatpush1.xpose.msra.mxu0 0.0
        %2550 = vmatprep.subr.mxu0 0.0
        %2551 = vmatpush1.xpose.msra.mxu0 0.0
        %2552 = vmatprep.subr.mxu0 0.0
        %2553 = vmatpush1.xpose.msra.mxu0 0.0
        %2554 = vmatprep.subr.mxu0 0.0
        %2555 = vmatpush1.xpose.msra.mxu0 0.0
        %2556 = vmatprep.subr.mxu0 0.0
        %2557 = vmatpush1.xpose.msra.mxu0 0.0
        %2558 = vmatprep.subr.mxu0 0.0
        %2559 = vmatpush1.xpose.msra.mxu0 0.0
        %2560 = vmatprep.subr.mxu0 0.0
        %2561 = vmatpush1.xpose.msra.mxu0 0.0
        %2562 = vmatprep.subr.mxu0 0.0
        %2563 = vmatpush1.xpose.msra.mxu0 0.0
        %2564 = vmatprep.subr.mxu0 0.0
        %2565 = vmatpush1.xpose.msra.mxu0 0.0
        %2566 = vmatprep.subr.mxu0 0.0
        %2567 = vmatpush1.xpose.msra.mxu0 0.0
        %2568 = vmatprep.subr.mxu0 0.0
        %2569 = vmatpush1.xpose.msra.mxu0 0.0
        %2570 = vmatprep.subr.mxu0 0.0
        %2571 = vmatpush1.xpose.msra.mxu0 0.0
        %2572 = vmatprep.subr.mxu0 0.0
        %2573 = vmatpush1.xpose.msra.mxu0 0.0
        %2574 = vmatprep.subr.mxu0 0.0
        %2575 = vmatpush1.xpose.msra.mxu0 0.0
        %2576 = vmatprep.subr.mxu0 0.0
        %2577 = vmatpush1.xpose.msra.mxu0 0.0
        %2578 = vmatprep.subr.mxu0 0.0
        %2579 = vmatpush1.xpose.msra.mxu0 0.0
        %2580 = vmatprep.subr.mxu0 0.0
        %2581 = vmatpush1.xpose.msra.mxu0 0.0
        %2582 = vmatprep.subr.mxu0 0.0
        %2583 = vmatpush1.xpose.msra.mxu0 0.0
        %2584 = vmatprep.subr.mxu0 0.0
        %2585 = vmatpush1.xpose.msra.mxu0 0.0
        %2586 = vmatprep.mubr.f32.mxu0 0.0
        %2587 = vmatmul.mubr.f32.gmra.mrb[0].mxu0 %v2518
        %v2588 = vpop.f32.mrb[0].mxu0
        %v2589 = vadd.f32 0.0, %v2588
        %v2590 = vpop.f32.mrb[0].mxu0
        %2591 = vdwg.mxu0
        %v2592 = vsel %vm1857, %v2589, -inf
        %2593 = vmax.xlane.f32.xlu0 %v2592
        %v2594 = vpop.xlane.xlu0 %2593
        %v2595 = vsub.f32 %v2589, %v2594
        %v2596 = vmul.f32 %v2595, 1.442695
        %v2597 = vpow.pop %v2596
        %v2598 = vsel %vm1857, %v2597, 0.0
        %2599 = vadd.xlane.f32.xlu0 %v2598
        %v2600 = vpop.xlane.xlu0 %2599
        %v2601 = vrcp.pop %v2600
        %v2602 = vmul.f32 %v2597, %v2601
        %2603 = vrot.lane.b32.xlu0 %v1852, 96
        %v2604 = vpop.permute.xlu0 %2603
        %v2607 = vsel %vm1857, %v2602, 0
        %2609 = vmatprep.subr.mxu0 0.0
        %2610 = vmatpush1.msra.mxu0 %v2604
        %2611 = vmatprep.subr.mxu0 0.0
        %2612 = vmatpush1.msra.mxu0 0.0
        %2613 = vmatprep.subr.mxu0 0.0
        %2614 = vmatpush1.msra.mxu0 0.0
        %2615 = vmatprep.subr.mxu0 0.0
        %2616 = vmatpush1.msra.mxu0 0.0
        %2617 = vmatprep.subr.mxu0 0.0
        %2618 = vmatpush1.msra.mxu0 0.0
        %2619 = vmatprep.subr.mxu0 0.0
        %2620 = vmatpush1.msra.mxu0 0.0
        %2621 = vmatprep.subr.mxu0 0.0
        %2622 = vmatpush1.msra.mxu0 0.0
        %2623 = vmatprep.subr.mxu0 0.0
        %2624 = vmatpush1.msra.mxu0 0.0
        %2625 = vmatprep.subr.mxu0 0.0
        %2626 = vmatpush1.msra.mxu0 0.0
        %2627 = vmatprep.subr.mxu0 0.0
        %2628 = vmatpush1.msra.mxu0 0.0
        %2629 = vmatprep.subr.mxu0 0.0
        %2630 = vmatpush1.msra.mxu0 0.0
        %2631 = vmatprep.subr.mxu0 0.0
        %2632 = vmatpush1.msra.mxu0 0.0
        %2633 = vmatprep.subr.mxu0 0.0
        %2634 = vmatpush1.msra.mxu0 0.0
        %2635 = vmatprep.subr.mxu0 0.0
        %2636 = vmatpush1.msra.mxu0 0.0
        %2637 = vmatprep.subr.mxu0 0.0
        %2638 = vmatpush1.msra.mxu0 0.0
        %2639 = vmatprep.subr.mxu0 0.0
        %2640 = vmatpush1.msra.mxu0 0.0
        %2641 = vmatprep.subr.mxu0 0.0
        %2642 = vmatpush1.msra.mxu0 0.0
        %2643 = vmatprep.subr.mxu0 0.0
        %2644 = vmatpush1.msra.mxu0 0.0
        %2645 = vmatprep.subr.mxu0 0.0
        %2646 = vmatpush1.msra.mxu0 0.0
        %2647 = vmatprep.subr.mxu0 0.0
        %2648 = vmatpush1.msra.mxu0 0.0
        %2649 = vmatprep.subr.mxu0 0.0
        %2650 = vmatpush1.msra.mxu0 0.0
        %2651 = vmatprep.subr.mxu0 0.0
        %2652 = vmatpush1.msra.mxu0 0.0
        %2653 = vmatprep.subr.mxu0 0.0
        %2654 = vmatpush1.msra.mxu0 0.0
        %2655 = vmatprep.subr.mxu0 0.0
        %2656 = vmatpush1.msra.mxu0 0.0
        %2657 = vmatprep.subr.mxu0 0.0
        %2658 = vmatpush1.msra.mxu0 0.0
        %2659 = vmatprep.subr.mxu0 0.0
        %2660 = vmatpush1.msra.mxu0 0.0
        %2661 = vmatprep.subr.mxu0 0.0
        %2662 = vmatpush1.msra.mxu0 0.0
        %2663 = vmatprep.subr.mxu0 0.0
        %2664 = vmatpush1.msra.mxu0 0.0
        %2665 = vmatprep.subr.mxu0 0.0
        %2666 = vmatpush1.msra.mxu0 0.0
        %2667 = vmatprep.subr.mxu0 0.0
        %2668 = vmatpush1.msra.mxu0 0.0
        %2669 = vmatprep.subr.mxu0 0.0
        %2670 = vmatpush1.msra.mxu0 0.0
        %2671 = vmatprep.subr.mxu0 0.0
        %2672 = vmatpush1.msra.mxu0 0.0
        %2673 = vmatprep.mubr.f32.mxu0 0.0
        %2674 = vmatmul.mubr.f32.gmra.mrb[0].mxu0 %v2607
        %v2675 = vpop.f32.mrb[0].mxu0
        %v2676 = vadd.f32 0.0, %v2675
        %v2677 = vpop.f32.mrb[0].mxu0
        %2678 = vdwg.mxu0
        %2679 = vrot.lane.b32.xlu0 %v1694, 88
        %v2680 = vpop.permute.xlu0 %2679
        %2681 = vrot.lane.b32.xlu0 %v1771, 88
        %v2682 = vpop.permute.xlu0 %2681
        %v2683 = vsel %vm1857, %v2680, 0
        %v2685 = vsel %vm1857, %v2682, 0
        %2687 = vmatprep.subr.mxu0 0.0
        %2688 = vmatpush1.xpose.msra.mxu0 %v2685
        %2689 = vmatprep.subr.mxu0 0.0
        %2690 = vmatpush1.xpose.msra.mxu0 0.0
        %2691 = vmatprep.subr.mxu0 0.0
        %2692 = vmatpush1.xpose.msra.mxu0 0.0
        %2693 = vmatprep.subr.mxu0 0.0
        %2694 = vmatpush1.xpose.msra.mxu0 0.0
        %2695 = vmatprep.subr.mxu0 0.0
        %2696 = vmatpush1.xpose.msra.mxu0 0.0
        %2697 = vmatprep.subr.mxu0 0.0
        %2698 = vmatpush1.xpose.msra.mxu0 0.0
        %2699 = vmatprep.subr.mxu0 0.0
        %2700 = vmatpush1.xpose.msra.mxu0 0.0
        %2701 = vmatprep.subr.mxu0 0.0
        %2702 = vmatpush1.xpose.msra.mxu0 0.0
        %2703 = vmatprep.subr.mxu0 0.0
        %2704 = vmatpush1.xpose.msra.mxu0 0.0
        %2705 = vmatprep.subr.mxu0 0.0
        %2706 = vmatpush1.xpose.msra.mxu0 0.0
        %2707 = vmatprep.subr.mxu0 0.0
        %2708 = vmatpush1.xpose.msra.mxu0 0.0
        %2709 = vmatprep.subr.mxu0 0.0
        %2710 = vmatpush1.xpose.msra.mxu0 0.0
        %2711 = vmatprep.subr.mxu0 0.0
        %2712 = vmatpush1.xpose.msra.mxu0 0.0
        %2713 = vmatprep.subr.mxu0 0.0
        %2714 = vmatpush1.xpose.msra.mxu0 0.0
        %2715 = vmatprep.subr.mxu0 0.0
        %2716 = vmatpush1.xpose.msra.mxu0 0.0
        %2717 = vmatprep.subr.mxu0 0.0
        %2718 = vmatpush1.xpose.msra.mxu0 0.0
        %2719 = vmatprep.subr.mxu0 0.0
        %2720 = vmatpush1.xpose.msra.mxu0 0.0
        %2721 = vmatprep.subr.mxu0 0.0
        %2722 = vmatpush1.xpose.msra.mxu0 0.0
        %2723 = vmatprep.subr.mxu0 0.0
        %2724 = vmatpush1.xpose.msra.mxu0 0.0
        %2725 = vmatprep.subr.mxu0 0.0
        %2726 = vmatpush1.xpose.msra.mxu0 0.0
        %2727 = vmatprep.subr.mxu0 0.0
        %2728 = vmatpush1.xpose.msra.mxu0 0.0
        %2729 = vmatprep.subr.mxu0 0.0
        %2730 = vmatpush1.xpose.msra.mxu0 0.0
        %2731 = vmatprep.subr.mxu0 0.0
        %2732 = vmatpush1.xpose.msra.mxu0 0.0
        %2733 = vmatprep.subr.mxu0 0.0
        %2734 = vmatpush1.xpose.msra.mxu0 0.0
        %2735 = vmatprep.subr.mxu0 0.0
        %2736 = vmatpush1.xpose.msra.mxu0 0.0
        %2737 = vmatprep.subr.mxu0 0.0
        %2738 = vmatpush1.xpose.msra.mxu0 0.0
        %2739 = vmatprep.subr.mxu0 0.0
        %2740 = vmatpush1.xpose.msra.mxu0 0.0
        %2741 = vmatprep.subr.mxu0 0.0
        %2742 = vmatpush1.xpose.msra.mxu0 0.0
        %2743 = vmatprep.subr.mxu0 0.0
        %2744 = vmatpush1.xpose.msra.mxu0 0.0
        %2745 = vmatprep.subr.mxu0 0.0
        %2746 = vmatpush1.xpose.msra.mxu0 0.0
        %2747 = vmatprep.subr.mxu0 0.0
        %2748 = vmatpush1.xpose.msra.mxu0 0.0
        %2749 = vmatprep.subr.mxu0 0.0
        %2750 = vmatpush1.xpose.msra.mxu0 0.0
        %2751 = vmatprep.mubr.f32.mxu0 0.0
        %2752 = vmatmul.mubr.f32.gmra.mrb[0].mxu0 %v2683
        %v2753 = vpop.f32.mrb[0].mxu0
        %v2754 = vadd.f32 0.0, %v2753
        %v2755 = vpop.f32.mrb[0].mxu0
        %2756 = vdwg.mxu0
        %v2757 = vsel %vm1857, %v2754, -inf
        %2758 = vmax.xlane.f32.xlu0 %v2757
        %v2759 = vpop.xlane.xlu0 %2758
        %v2760 = vsub.f32 %v2754, %v2759
        %v2761 = vmul.f32 %v2760, 1.442695
        %v2762 = vpow.pop %v2761
        %v2763 = vsel %vm1857, %v2762, 0.0
        %2764 = vadd.xlane.f32.xlu0 %v2763
        %v2765 = vpop.xlane.xlu0 %2764
        %v2766 = vrcp.pop %v2765
        %v2767 = vmul.f32 %v2762, %v2766
        %2768 = vrot.lane.b32.xlu0 %v1852, 88
        %v2769 = vpop.permute.xlu0 %2768
        %v2772 = vsel %vm1857, %v2767, 0
        %2774 = vmatprep.subr.mxu0 0.0
        %2775 = vmatpush1.msra.mxu0 %v2769
        %2776 = vmatprep.subr.mxu0 0.0
        %2777 = vmatpush1.msra.mxu0 0.0
        %2778 = vmatprep.subr.mxu0 0.0
        %2779 = vmatpush1.msra.mxu0 0.0
        %2780 = vmatprep.subr.mxu0 0.0
        %2781 = vmatpush1.msra.mxu0 0.0
        %2782 = vmatprep.subr.mxu0 0.0
        %2783 = vmatpush1.msra.mxu0 0.0
        %2784 = vmatprep.subr.mxu0 0.0
        %2785 = vmatpush1.msra.mxu0 0.0
        %2786 = vmatprep.subr.mxu0 0.0
        %2787 = vmatpush1.msra.mxu0 0.0
        %2788 = vmatprep.subr.mxu0 0.0
        %2789 = vmatpush1.msra.mxu0 0.0
        %2790 = vmatprep.subr.mxu0 0.0
        %2791 = vmatpush1.msra.mxu0 0.0
        %2792 = vmatprep.subr.mxu0 0.0
        %2793 = vmatpush1.msra.mxu0 0.0
        %2794 = vmatprep.subr.mxu0 0.0
        %2795 = vmatpush1.msra.mxu0 0.0
        %2796 = vmatprep.subr.mxu0 0.0
        %2797 = vmatpush1.msra.mxu0 0.0
        %2798 = vmatprep.subr.mxu0 0.0
        %2799 = vmatpush1.msra.mxu0 0.0
        %2800 = vmatprep.subr.mxu0 0.0
        %2801 = vmatpush1.msra.mxu0 0.0
        %2802 = vmatprep.subr.mxu0 0.0
        %2803 = vmatpush1.msra.mxu0 0.0
        %2804 = vmatprep.subr.mxu0 0.0
        %2805 = vmatpush1.msra.mxu0 0.0
        %2806 = vmatprep.subr.mxu0 0.0
        %2807 = vmatpush1.msra.mxu0 0.0
        %2808 = vmatprep.subr.mxu0 0.0
        %2809 = vmatpush1.msra.mxu0 0.0
        %2810 = vmatprep.subr.mxu0 0.0
        %2811 = vmatpush1.msra.mxu0 0.0
        %2812 = vmatprep.subr.mxu0 0.0
        %2813 = vmatpush1.msra.mxu0 0.0
        %2814 = vmatprep.subr.mxu0 0.0
        %2815 = vmatpush1.msra.mxu0 0.0
        %2816 = vmatprep.subr.mxu0 0.0
        %2817 = vmatpush1.msra.mxu0 0.0
        %2818 = vmatprep.subr.mxu0 0.0
        %2819 = vmatpush1.msra.mxu0 0.0
        %2820 = vmatprep.subr.mxu0 0.0
        %2821 = vmatpush1.msra.mxu0 0.0
        %2822 = vmatprep.subr.mxu0 0.0
        %2823 = vmatpush1.msra.mxu0 0.0
        %2824 = vmatprep.subr.mxu0 0.0
        %2825 = vmatpush1.msra.mxu0 0.0
        %2826 = vmatprep.subr.mxu0 0.0
        %2827 = vmatpush1.msra.mxu0 0.0
        %2828 = vmatprep.subr.mxu0 0.0
        %2829 = vmatpush1.msra.mxu0 0.0
        %2830 = vmatprep.subr.mxu0 0.0
        %2831 = vmatpush1.msra.mxu0 0.0
        %2832 = vmatprep.subr.mxu0 0.0
        %2833 = vmatpush1.msra.mxu0 0.0
        %2834 = vmatprep.subr.mxu0 0.0
        %2835 = vmatpush1.msra.mxu0 0.0
        %2836 = vmatprep.subr.mxu0 0.0
        %2837 = vmatpush1.msra.mxu0 0.0
        %2838 = vmatprep.mubr.f32.mxu0 0.0
        %2839 = vmatmul.mubr.f32.gmra.mrb[0].mxu0 %v2772
        %v2840 = vpop.f32.mrb[0].mxu0
        %v2841 = vadd.f32 0.0, %v2840
        %v2842 = vpop.f32.mrb[0].mxu0
        %2843 = vdwg.mxu0
        %2844 = vrot.lane.b32.xlu0 %v1694, 80
        %v2845 = vpop.permute.xlu0 %2844
        %2846 = vrot.lane.b32.xlu0 %v1771, 80
        %v2847 = vpop.permute.xlu0 %2846
        %v2848 = vsel %vm1857, %v2845, 0
        %v2850 = vsel %vm1857, %v2847, 0
        %2852 = vmatprep.subr.mxu0 0.0
        %2853 = vmatpush1.xpose.msra.mxu0 %v2850
        %2854 = vmatprep.subr.mxu0 0.0
        %2855 = vmatpush1.xpose.msra.mxu0 0.0
        %2856 = vmatprep.subr.mxu0 0.0
        %2857 = vmatpush1.xpose.msra.mxu0 0.0
        %2858 = vmatprep.subr.mxu0 0.0
        %2859 = vmatpush1.xpose.msra.mxu0 0.0
        %2860 = vmatprep.subr.mxu0 0.0
        %2861 = vmatpush1.xpose.msra.mxu0 0.0
        %2862 = vmatprep.subr.mxu0 0.0
        %2863 = vmatpush1.xpose.msra.mxu0 0.0
        %2864 = vmatprep.subr.mxu0 0.0
        %2865 = vmatpush1.xpose.msra.mxu0 0.0
        %2866 = vmatprep.subr.mxu0 0.0
        %2867 = vmatpush1.xpose.msra.mxu0 0.0
        %2868 = vmatprep.subr.mxu0 0.0
        %2869 = vmatpush1.xpose.msra.mxu0 0.0
        %2870 = vmatprep.subr.mxu0 0.0
        %2871 = vmatpush1.xpose.msra.mxu0 0.0
        %2872 = vmatprep.subr.mxu0 0.0
        %2873 = vmatpush1.xpose.msra.mxu0 0.0
        %2874 = vmatprep.subr.mxu0 0.0
        %2875 = vmatpush1.xpose.msra.mxu0 0.0
        %2876 = vmatprep.subr.mxu0 0.0
        %2877 = vmatpush1.xpose.msra.mxu0 0.0
        %2878 = vmatprep.subr.mxu0 0.0
        %2879 = vmatpush1.xpose.msra.mxu0 0.0
        %2880 = vmatprep.subr.mxu0 0.0
        %2881 = vmatpush1.xpose.msra.mxu0 0.0
        %2882 = vmatprep.subr.mxu0 0.0
        %2883 = vmatpush1.xpose.msra.mxu0 0.0
        %2884 = vmatprep.subr.mxu0 0.0
        %2885 = vmatpush1.xpose.msra.mxu0 0.0
        %2886 = vmatprep.subr.mxu0 0.0
        %2887 = vmatpush1.xpose.msra.mxu0 0.0
        %2888 = vmatprep.subr.mxu0 0.0
        %2889 = vmatpush1.xpose.msra.mxu0 0.0
        %2890 = vmatprep.subr.mxu0 0.0
        %2891 = vmatpush1.xpose.msra.mxu0 0.0
        %2892 = vmatprep.subr.mxu0 0.0
        %2893 = vmatpush1.xpose.msra.mxu0 0.0
        %2894 = vmatprep.subr.mxu0 0.0
        %2895 = vmatpush1.xpose.msra.mxu0 0.0
        %2896 = vmatprep.subr.mxu0 0.0
        %2897 = vmatpush1.xpose.msra.mxu0 0.0
        %2898 = vmatprep.subr.mxu0 0.0
        %2899 = vmatpush1.xpose.msra.mxu0 0.0
        %2900 = vmatprep.subr.mxu0 0.0
        %2901 = vmatpush1.xpose.msra.mxu0 0.0
        %2902 = vmatprep.subr.mxu0 0.0
        %2903 = vmatpush1.xpose.msra.mxu0 0.0
        %2904 = vmatprep.subr.mxu0 0.0
        %2905 = vmatpush1.xpose.msra.mxu0 0.0
        %2906 = vmatprep.subr.mxu0 0.0
        %2907 = vmatpush1.xpose.msra.mxu0 0.0
        %2908 = vmatprep.subr.mxu0 0.0
        %2909 = vmatpush1.xpose.msra.mxu0 0.0
        %2910 = vmatprep.subr.mxu0 0.0
        %2911 = vmatpush1.xpose.msra.mxu0 0.0
        %2912 = vmatprep.subr.mxu0 0.0
        %2913 = vmatpush1.xpose.msra.mxu0 0.0
        %2914 = vmatprep.subr.mxu0 0.0
        %2915 = vmatpush1.xpose.msra.mxu0 0.0
        %2916 = vmatprep.mubr.f32.mxu0 0.0
        %2917 = vmatmul.mubr.f32.gmra.mrb[0].mxu0 %v2848
        %v2918 = vpop.f32.mrb[0].mxu0
        %v2919 = vadd.f32 0.0, %v2918
        %v2920 = vpop.f32.mrb[0].mxu0
        %2921 = vdwg.mxu0
        %v2922 = vsel %vm1857, %v2919, -inf
        %2923 = vmax.xlane.f32.xlu0 %v2922
        %v2924 = vpop.xlane.xlu0 %2923
        %v2925 = vsub.f32 %v2919, %v2924
        %v2926 = vmul.f32 %v2925, 1.442695
        %v2927 = vpow.pop %v2926
        %v2928 = vsel %vm1857, %v2927, 0.0
        %2929 = vadd.xlane.f32.xlu0 %v2928
        %v2930 = vpop.xlane.xlu0 %2929
        %v2931 = vrcp.pop %v2930
        %v2932 = vmul.f32 %v2927, %v2931
        %2933 = vrot.lane.b32.xlu0 %v1852, 80
        %v2934 = vpop.permute.xlu0 %2933
        %v2937 = vsel %vm1857, %v2932, 0
        %2939 = vmatprep.subr.mxu0 0.0
        %2940 = vmatpush1.msra.mxu0 %v2934
        %2941 = vmatprep.subr.mxu0 0.0
        %2942 = vmatpush1.msra.mxu0 0.0
        %2943 = vmatprep.subr.mxu0 0.0
        %2944 = vmatpush1.msra.mxu0 0.0
        %2945 = vmatprep.subr.mxu0 0.0
        %2946 = vmatpush1.msra.mxu0 0.0
        %2947 = vmatprep.subr.mxu0 0.0
        %2948 = vmatpush1.msra.mxu0 0.0
        %2949 = vmatprep.subr.mxu0 0.0
        %2950 = vmatpush1.msra.mxu0 0.0
        %2951 = vmatprep.subr.mxu0 0.0
        %2952 = vmatpush1.msra.mxu0 0.0
        %2953 = vmatprep.subr.mxu0 0.0
        %2954 = vmatpush1.msra.mxu0 0.0
        %2955 = vmatprep.subr.mxu0 0.0
        %2956 = vmatpush1.msra.mxu0 0.0
        %2957 = vmatprep.subr.mxu0 0.0
        %2958 = vmatpush1.msra.mxu0 0.0
        %2959 = vmatprep.subr.mxu0 0.0
        %2960 = vmatpush1.msra.mxu0 0.0
        %2961 = vmatprep.subr.mxu0 0.0
        %2962 = vmatpush1.msra.mxu0 0.0
        %2963 = vmatprep.subr.mxu0 0.0
        %2964 = vmatpush1.msra.mxu0 0.0
        %2965 = vmatprep.subr.mxu0 0.0
        %2966 = vmatpush1.msra.mxu0 0.0
        %2967 = vmatprep.subr.mxu0 0.0
        %2968 = vmatpush1.msra.mxu0 0.0
        %2969 = vmatprep.subr.mxu0 0.0
        %2970 = vmatpush1.msra.mxu0 0.0
        %2971 = vmatprep.subr.mxu0 0.0
        %2972 = vmatpush1.msra.mxu0 0.0
        %2973 = vmatprep.subr.mxu0 0.0
        %2974 = vmatpush1.msra.mxu0 0.0
        %2975 = vmatprep.subr.mxu0 0.0
        %2976 = vmatpush1.msra.mxu0 0.0
        %2977 = vmatprep.subr.mxu0 0.0
        %2978 = vmatpush1.msra.mxu0 0.0
        %2979 = vmatprep.subr.mxu0 0.0
        %2980 = vmatpush1.msra.mxu0 0.0
        %2981 = vmatprep.subr.mxu0 0.0
        %2982 = vmatpush1.msra.mxu0 0.0
        %2983 = vmatprep.subr.mxu0 0.0
        %2984 = vmatpush1.msra.mxu0 0.0
        %2985 = vmatprep.subr.mxu0 0.0
        %2986 = vmatpush1.msra.mxu0 0.0
        %2987 = vmatprep.subr.mxu0 0.0
        %2988 = vmatpush1.msra.mxu0 0.0
        %2989 = vmatprep.subr.mxu0 0.0
        %2990 = vmatpush1.msra.mxu0 0.0
        %2991 = vmatprep.subr.mxu0 0.0
        %2992 = vmatpush1.msra.mxu0 0.0
        %2993 = vmatprep.subr.mxu0 0.0
        %2994 = vmatpush1.msra.mxu0 0.0
        %2995 = vmatprep.subr.mxu0 0.0
        %2996 = vmatpush1.msra.mxu0 0.0
        %2997 = vmatprep.subr.mxu0 0.0
        %2998 = vmatpush1.msra.mxu0 0.0
        %2999 = vmatprep.subr.mxu0 0.0
        %3000 = vmatpush1.msra.mxu0 0.0
        %3001 = vmatprep.subr.mxu0 0.0
        %3002 = vmatpush1.msra.mxu0 0.0
        %3003 = vmatprep.mubr.f32.mxu0 0.0
        %3004 = vmatmul.mubr.f32.gmra.mrb[0].mxu0 %v2937
        %v3005 = vpop.f32.mrb[0].mxu0
        %v3006 = vadd.f32 0.0, %v3005
        %v3007 = vpop.f32.mrb[0].mxu0
        %3008 = vdwg.mxu0
        %3009 = vrot.lane.b32.xlu0 %v1694, 72
        %v3010 = vpop.permute.xlu0 %3009
        %3011 = vrot.lane.b32.xlu0 %v1771, 72
        %v3012 = vpop.permute.xlu0 %3011
        %v3013 = vsel %vm1857, %v3010, 0
        %v3015 = vsel %vm1857, %v3012, 0
        %3017 = vmatprep.subr.mxu0 0.0
        %3018 = vmatpush1.xpose.msra.mxu0 %v3015
        %3019 = vmatprep.subr.mxu0 0.0
        %3020 = vmatpush1.xpose.msra.mxu0 0.0
        %3021 = vmatprep.subr.mxu0 0.0
        %3022 = vmatpush1.xpose.msra.mxu0 0.0
        %3023 = vmatprep.subr.mxu0 0.0
        %3024 = vmatpush1.xpose.msra.mxu0 0.0
        %3025 = vmatprep.subr.mxu0 0.0
        %3026 = vmatpush1.xpose.msra.mxu0 0.0
        %3027 = vmatprep.subr.mxu0 0.0
        %3028 = vmatpush1.xpose.msra.mxu0 0.0
        %3029 = vmatprep.subr.mxu0 0.0
        %3030 = vmatpush1.xpose.msra.mxu0 0.0
        %3031 = vmatprep.subr.mxu0 0.0
        %3032 = vmatpush1.xpose.msra.mxu0 0.0
        %3033 = vmatprep.subr.mxu0 0.0
        %3034 = vmatpush1.xpose.msra.mxu0 0.0
        %3035 = vmatprep.subr.mxu0 0.0
        %3036 = vmatpush1.xpose.msra.mxu0 0.0
        %3037 = vmatprep.subr.mxu0 0.0
        %3038 = vmatpush1.xpose.msra.mxu0 0.0
        %3039 = vmatprep.subr.mxu0 0.0
        %3040 = vmatpush1.xpose.msra.mxu0 0.0
        %3041 = vmatprep.subr.mxu0 0.0
        %3042 = vmatpush1.xpose.msra.mxu0 0.0
        %3043 = vmatprep.subr.mxu0 0.0
        %3044 = vmatpush1.xpose.msra.mxu0 0.0
        %3045 = vmatprep.subr.mxu0 0.0
        %3046 = vmatpush1.xpose.msra.mxu0 0.0
        %3047 = vmatprep.subr.mxu0 0.0
        %3048 = vmatpush1.xpose.msra.mxu0 0.0
        %3049 = vmatprep.subr.mxu0 0.0
        %3050 = vmatpush1.xpose.msra.mxu0 0.0
        %3051 = vmatprep.subr.mxu0 0.0
        %3052 = vmatpush1.xpose.msra.mxu0 0.0
        %3053 = vmatprep.subr.mxu0 0.0
        %3054 = vmatpush1.xpose.msra.mxu0 0.0
        %3055 = vmatprep.subr.mxu0 0.0
        %3056 = vmatpush1.xpose.msra.mxu0 0.0
        %3057 = vmatprep.subr.mxu0 0.0
        %3058 = vmatpush1.xpose.msra.mxu0 0.0
        %3059 = vmatprep.subr.mxu0 0.0
        %3060 = vmatpush1.xpose.msra.mxu0 0.0
        %3061 = vmatprep.subr.mxu0 0.0
        %3062 = vmatpush1.xpose.msra.mxu0 0.0
        %3063 = vmatprep.subr.mxu0 0.0
        %3064 = vmatpush1.xpose.msra.mxu0 0.0
        %3065 = vmatprep.subr.mxu0 0.0
        %3066 = vmatpush1.xpose.msra.mxu0 0.0
        %3067 = vmatprep.subr.mxu0 0.0
        %3068 = vmatpush1.xpose.msra.mxu0 0.0
        %3069 = vmatprep.subr.mxu0 0.0
        %3070 = vmatpush1.xpose.msra.mxu0 0.0
        %3071 = vmatprep.subr.mxu0 0.0
        %3072 = vmatpush1.xpose.msra.mxu0 0.0
        %3073 = vmatprep.subr.mxu0 0.0
        %3074 = vmatpush1.xpose.msra.mxu0 0.0
        %3075 = vmatprep.subr.mxu0 0.0
        %3076 = vmatpush1.xpose.msra.mxu0 0.0
        %3077 = vmatprep.subr.mxu0 0.0
        %3078 = vmatpush1.xpose.msra.mxu0 0.0
        %3079 = vmatprep.subr.mxu0 0.0
        %3080 = vmatpush1.xpose.msra.mxu0 0.0
        %3081 = vmatprep.mubr.f32.mxu0 0.0
        %3082 = vmatmul.mubr.f32.gmra.mrb[0].mxu0 %v3013
        %v3083 = vpop.f32.mrb[0].mxu0
        %v3084 = vadd.f32 0.0, %v3083
        %v3085 = vpop.f32.mrb[0].mxu0
        %3086 = vdwg.mxu0
        %v3087 = vsel %vm1857, %v3084, -inf
        %3088 = vmax.xlane.f32.xlu0 %v3087
        %v3089 = vpop.xlane.xlu0 %3088
        %v3090 = vsub.f32 %v3084, %v3089
        %v3091 = vmul.f32 %v3090, 1.442695
        %v3092 = vpow.pop %v3091
        %v3093 = vsel %vm1857, %v3092, 0.0
        %3094 = vadd.xlane.f32.xlu0 %v3093
        %v3095 = vpop.xlane.xlu0 %3094
        %v3096 = vrcp.pop %v3095
        %v3097 = vmul.f32 %v3092, %v3096
        %3098 = vrot.lane.b32.xlu0 %v1852, 72
        %v3099 = vpop.permute.xlu0 %3098
        %v3102 = vsel %vm1857, %v3097, 0
        %3104 = vmatprep.subr.mxu0 0.0
        %3105 = vmatpush1.msra.mxu0 %v3099
        %3106 = vmatprep.subr.mxu0 0.0
        %3107 = vmatpush1.msra.mxu0 0.0
        %3108 = vmatprep.subr.mxu0 0.0
        %3109 = vmatpush1.msra.mxu0 0.0
        %3110 = vmatprep.subr.mxu0 0.0
        %3111 = vmatpush1.msra.mxu0 0.0
        %3112 = vmatprep.subr.mxu0 0.0
        %3113 = vmatpush1.msra.mxu0 0.0
        %3114 = vmatprep.subr.mxu0 0.0
        %3115 = vmatpush1.msra.mxu0 0.0
        %3116 = vmatprep.subr.mxu0 0.0
        %3117 = vmatpush1.msra.mxu0 0.0
        %3118 = vmatprep.subr.mxu0 0.0
        %3119 = vmatpush1.msra.mxu0 0.0
        %3120 = vmatprep.subr.mxu0 0.0
        %3121 = vmatpush1.msra.mxu0 0.0
        %3122 = vmatprep.subr.mxu0 0.0
        %3123 = vmatpush1.msra.mxu0 0.0
        %3124 = vmatprep.subr.mxu0 0.0
        %3125 = vmatpush1.msra.mxu0 0.0
        %3126 = vmatprep.subr.mxu0 0.0
        %3127 = vmatpush1.msra.mxu0 0.0
        %3128 = vmatprep.subr.mxu0 0.0
        %3129 = vmatpush1.msra.mxu0 0.0
        %3130 = vmatprep.subr.mxu0 0.0
        %3131 = vmatpush1.msra.mxu0 0.0
        %3132 = vmatprep.subr.mxu0 0.0
        %3133 = vmatpush1.msra.mxu0 0.0
        %3134 = vmatprep.subr.mxu0 0.0
        %3135 = vmatpush1.msra.mxu0 0.0
        %3136 = vmatprep.subr.mxu0 0.0
        %3137 = vmatpush1.msra.mxu0 0.0
        %3138 = vmatprep.subr.mxu0 0.0
        %3139 = vmatpush1.msra.mxu0 0.0
        %3140 = vmatprep.subr.mxu0 0.0
        %3141 = vmatpush1.msra.mxu0 0.0
        %3142 = vmatprep.subr.mxu0 0.0
        %3143 = vmatpush1.msra.mxu0 0.0
        %3144 = vmatprep.subr.mxu0 0.0
        %3145 = vmatpush1.msra.mxu0 0.0
        %3146 = vmatprep.subr.mxu0 0.0
        %3147 = vmatpush1.msra.mxu0 0.0
        %3148 = vmatprep.subr.mxu0 0.0
        %3149 = vmatpush1.msra.mxu0 0.0
        %3150 = vmatprep.subr.mxu0 0.0
        %3151 = vmatpush1.msra.mxu0 0.0
        %3152 = vmatprep.subr.mxu0 0.0
        %3153 = vmatpush1.msra.mxu0 0.0
        %3154 = vmatprep.subr.mxu0 0.0
        %3155 = vmatpush1.msra.mxu0 0.0
        %3156 = vmatprep.subr.mxu0 0.0
        %3157 = vmatpush1.msra.mxu0 0.0
        %3158 = vmatprep.subr.mxu0 0.0
        %3159 = vmatpush1.msra.mxu0 0.0
        %3160 = vmatprep.subr.mxu0 0.0
        %3161 = vmatpush1.msra.mxu0 0.0
        %3162 = vmatprep.subr.mxu0 0.0
        %3163 = vmatpush1.msra.mxu0 0.0
        %3164 = vmatprep.subr.mxu0 0.0
        %3165 = vmatpush1.msra.mxu0 0.0
        %3166 = vmatprep.subr.mxu0 0.0
        %3167 = vmatpush1.msra.mxu0 0.0
        %3168 = vmatprep.mubr.f32.mxu0 0.0
        %3169 = vmatmul.mubr.f32.gmra.mrb[0].mxu0 %v3102
        %v3170 = vpop.f32.mrb[0].mxu0
        %v3171 = vadd.f32 0.0, %v3170
        %v3172 = vpop.f32.mrb[0].mxu0
        %3173 = vdwg.mxu0
        %3175 = vrot.lane.b32.xlu0 %v2181, 8
        %v3176 = vpop.permute.xlu0 %3175
        %3179 = vrot.lane.b32.xlu0 %v2346, 16
        %v3180 = vpop.permute.xlu0 %3179
        %3183 = vrot.lane.b32.xlu0 %v2511, 24
        %v3184 = vpop.permute.xlu0 %3183
        %3187 = vrot.lane.b32.xlu0 %v2676, 32
        %v3188 = vpop.permute.xlu0 %3187
        %3191 = vrot.lane.b32.xlu0 %v2841, 40
        %v3192 = vpop.permute.xlu0 %3191
        %3195 = vrot.lane.b32.xlu0 %v3006, 48
        %v3196 = vpop.permute.xlu0 %3195
        %3199 = vrot.lane.b32.xlu0 %v3171, 56
        %v3200 = vpop.permute.xlu0 %3199
        %v3202 = vsel %vm1857, %v2015, %v3176
        %vm3203 = vcmask 130048
        %v3204 = vsel %vm3203, %v3202, %v3180
        %vm3205 = vcmask 195584
        %v3206 = vsel %vm3205, %v3204, %v3184
        %vm3207 = vcmask 261120
        %v3208 = vsel %vm3207, %v3206, %v3188
        %vm3209 = vcmask 326656
        %v3210 = vsel %vm3209, %v3208, %v3192
        %vm3211 = vcmask 392192
        %v3212 = vsel %vm3211, %v3210, %v3196
        %vm3213 = vcmask 457728
        %v3214 = vsel %vm3213, %v3212, %v3200
        %v3215 = vld [vmem:[%s1531] sm:$0xf]
        %v3216 = vld [vmem:[%s1531 + $0x4] sm:$0xf]
        %v3217 = vld [vmem:[%s1531 + $0x8] sm:$0xf]
        %v3218 = vld [vmem:[%s1531 + $0xc] sm:$0xf]
        %v3219 = vld [vmem:[%s1531 + $0x10] sm:$0xf]
        %v3220 = vld [vmem:[%s1531 + $0x14] sm:$0xf]
        %v3221 = vld [vmem:[%s1531 + $0x18] sm:$0xf]
        %v3222 = vld [vmem:[%s1531 + $0x1c] sm:$0xf]
        %v3223 = vld [vmem:[%s1279] sm:$0x1]
        %v3224 = vpack.c.bf16 %v3214, %v3214
        %v3226 = vlaneseq
        %v3227 = vshrl.u32 %v3226, 7
        %v3228 = vsub.s32 0, %v3227
        %v3229 = vrot.slane %v3223, %v3228
        %v3239 = vunpack.c.l.b16 %v3215
        %v3240 = vunpack.c.l.b16 %v3216
        %v3241 = vunpack.c.l.b16 %v3217
        %v3242 = vunpack.c.l.b16 %v3218
        %v3243 = vunpack.c.l.b16 %v3219
        %v3244 = vunpack.c.l.b16 %v3220
        %v3245 = vunpack.c.l.b16 %v3221
        %v3246 = vunpack.c.l.b16 %v3222
        %v3247 = vpack.c.b16 %v3240, %v3239
        %v3248 = vpack.c.b16 %v3242, %v3241
        %v3249 = vpack.c.b16 %v3244, %v3243
        %v3250 = vpack.c.b16 %v3246, %v3245
        %v3256 = vsel %vm1650, %v3224, 0
        %3258 = vmatprep.subr.bf16.mxu0 0
        %3259 = vmatpush1.bf16.msra.mxu0 %v3247
        %3260 = vmatprep.subr.bf16.mxu0 0
        %3261 = vmatpush1.bf16.msra.mxu0 %v3248
        %3262 = vmatprep.subr.bf16.mxu0 0
        %3263 = vmatpush1.bf16.msra.mxu0 %v3249
        %3264 = vmatprep.subr.bf16.mxu0 0
        %3265 = vmatpush1.bf16.msra.mxu0 %v3250
        %3266 = vmatprep.subr.bf16.mxu0 0
        %3267 = vmatpush1.bf16.msra.mxu0 0
        %3268 = vmatprep.subr.bf16.mxu0 0
        %3269 = vmatpush1.bf16.msra.mxu0 0
        %3270 = vmatprep.subr.bf16.mxu0 0
        %3271 = vmatpush1.bf16.msra.mxu0 0
        %3272 = vmatprep.subr.bf16.mxu0 0
        %3273 = vmatpush1.bf16.msra.mxu0 0
        %3274 = vmatprep.subr.bf16.mxu0 0
        %3275 = vmatpush1.bf16.msra.mxu0 0
        %3276 = vmatprep.subr.bf16.mxu0 0
        %3277 = vmatpush1.bf16.msra.mxu0 0
        %3278 = vmatprep.subr.bf16.mxu0 0
        %3279 = vmatpush1.bf16.msra.mxu0 0
        %3280 = vmatprep.subr.bf16.mxu0 0
        %3281 = vmatpush1.bf16.msra.mxu0 0
        %3282 = vmatprep.subr.bf16.mxu0 0
        %3283 = vmatpush1.bf16.msra.mxu0 0
        %3284 = vmatprep.subr.bf16.mxu0 0
        %3285 = vmatpush1.bf16.msra.mxu0 0
        %3286 = vmatprep.subr.bf16.mxu0 0
        %3287 = vmatpush1.bf16.msra.mxu0 0
        %3288 = vmatprep.subr.bf16.mxu0 0
        %3289 = vmatpush1.bf16.msra.mxu0 0
        %3290 = vmatprep.mubr.bf16.mxu0 0
        %3291 = vmatmul.mubr.bf16.gmra.mrb[0].mxu0 %v3256
        %v3292 = vpop.f32.mrb[0].mxu0
        %v3293 = vadd.f32 %v3229, %v3292
        %v3294 = vpop.f32.mrb[0].mxu0
        %v3295 = vpop.f32.mrb[0].mxu0
        %v3296 = vpop.f32.mrb[0].mxu0
        %3297 = vdwg.mxu0
        %v3298 = vadd.f32 %v1609, %v3293
        %v3299 = vld [vmem:[%s1304] sm:$0x1]
        %v3300 = vld [vmem:[%s1312] sm:$0x1]
        %v3301 = vsel %vm1650, %v3298, 0.0
        %3302 = vadd.xlane.f32.xlu0 %v3301
        %v3303 = vpop.xlane.xlu0 %3302
        %v3304 = vrcp.pop 64.0
        %v3305 = vmul.f32 %v3303, %v3304
        %v3306 = vsub.f32 %v3298, %v3305
        %v3307 = vmul.f32 %v3306, %v3306
        %v3308 = vsel %vm1650, %v3307, 0.0
        %3309 = vadd.xlane.f32.xlu0 %v3308
        %v3310 = vpop.xlane.xlu0 %3309
        %v3311 = vmul.f32 %v3310, %v3304
        %v3312 = vadd.f32 %v3311, 1e-05
        %v3313 = vrsqrt.pop %v3312
        %v3314 = vmul.f32 %v3306, %v3313
        %v3316 = vlaneseq
        %v3317 = vshrl.u32 %v3316, 7
        %v3318 = vsub.s32 0, %v3317
        %v3319 = vrot.slane %v3299, %v3318
        %v3321 = vmul.f32 %v3314, %v3319
        %v3323 = vlaneseq
        %v3324 = vshrl.u32 %v3323, 7
        %v3325 = vsub.s32 0, %v3324
        %v3326 = vrot.slane %v3300, %v3325
        %v3328 = vadd.f32 %v3321, %v3326
        %v3329 = vld [vmem:[%s1536] sm:$0xff]
        %v3330 = vld [vmem:[%s1536 + $0x8] sm:$0xff]
        %v3331 = vld [vmem:[%s1536 + $0x10] sm:$0xff]
        %v3332 = vld [vmem:[%s1536 + $0x18] sm:$0xff]
        %v3333 = vld [vmem:[%s1536 + $0x20] sm:$0xff]
        %v3334 = vld [vmem:[%s1536 + $0x28] sm:$0xff]
        %v3335 = vld [vmem:[%s1536 + $0x30] sm:$0xff]
        %v3336 = vld [vmem:[%s1536 + $0x38] sm:$0xff]
        %v3337 = vld [vmem:[%s1288] sm:$0x3]
        %v3338 = vpack.c.bf16 %v3328, %v3328
        %v3340 = vlaneseq
        %v3341 = vshrl.u32 %v3340, 7
        %v3342 = vsub.s32 0, %v3341
        %v3343 = vrot.slane %v3337, %v3342
        %v3344 = vlaneseq
        %v3345 = vshrl.u32 %v3344, 7
        %v3346 = vsub.s32 1, %v3345
        %v3347 = vrot.slane %v3337, %v3346
        %v3358 = vunpack.c.l.b16 %v3329
        %v3359 = vunpack.c.h.b16 %v3329
        %v3360 = vunpack.c.l.b16 %v3330
        %v3361 = vunpack.c.h.b16 %v3330
        %v3362 = vunpack.c.l.b16 %v3331
        %v3363 = vunpack.c.h.b16 %v3331
        %v3364 = vunpack.c.l.b16 %v3332
        %v3365 = vunpack.c.h.b16 %v3332
        %v3366 = vunpack.c.l.b16 %v3333
        %v3367 = vunpack.c.h.b16 %v3333
        %v3368 = vunpack.c.l.b16 %v3334
        %v3369 = vunpack.c.h.b16 %v3334
        %v3370 = vunpack.c.l.b16 %v3335
        %v3371 = vunpack.c.h.b16 %v3335
        %v3372 = vunpack.c.l.b16 %v3336
        %v3373 = vunpack.c.h.b16 %v3336
        %v3374 = vpack.c.b16 %v3360, %v3358
        %v3375 = vpack.c.b16 %v3361, %v3359
        %v3376 = vpack.c.b16 %v3364, %v3362
        %v3377 = vpack.c.b16 %v3365, %v3363
        %v3378 = vpack.c.b16 %v3368, %v3366
        %v3379 = vpack.c.b16 %v3369, %v3367
        %v3380 = vpack.c.b16 %v3372, %v3370
        %v3381 = vpack.c.b16 %v3373, %v3371
        %v3391 = vsel %vm1650, %v3338, 0
        %3393 = vmatprep.subr.bf16.mxu0 %v3375
        %3394 = vmatpush1.bf16.msra.mxu0 %v3374
        %3395 = vmatprep.subr.bf16.mxu0 %v3377
        %3396 = vmatpush1.bf16.msra.mxu0 %v3376
        %3397 = vmatprep.subr.bf16.mxu0 %v3379
        %3398 = vmatpush1.bf16.msra.mxu0 %v3378
        %3399 = vmatprep.subr.bf16.mxu0 %v3381
        %3400 = vmatpush1.bf16.msra.mxu0 %v3380
        %3401 = vmatprep.subr.bf16.mxu0 0
        %3402 = vmatpush1.bf16.msra.mxu0 0
        %3403 = vmatprep.subr.bf16.mxu0 0
        %3404 = vmatpush1.bf16.msra.mxu0 0
        %3405 = vmatprep.subr.bf16.mxu0 0
        %3406 = vmatpush1.bf16.msra.mxu0 0
        %3407 = vmatprep.subr.bf16.mxu0 0
        %3408 = vmatpush1.bf16.msra.mxu0 0
        %3409 = vmatprep.subr.bf16.mxu0 0
        %3410 = vmatpush1.bf16.msra.mxu0 0
        %3411 = vmatprep.subr.bf16.mxu0 0
        %3412 = vmatpush1.bf16.msra.mxu0 0
        %3413 = vmatprep.subr.bf16.mxu0 0
        %3414 = vmatpush1.bf16.msra.mxu0 0
        %3415 = vmatprep.subr.bf16.mxu0 0
        %3416 = vmatpush1.bf16.msra.mxu0 0
        %3417 = vmatprep.subr.bf16.mxu0 0
        %3418 = vmatpush1.bf16.msra.mxu0 0
        %3419 = vmatprep.subr.bf16.mxu0 0
        %3420 = vmatpush1.bf16.msra.mxu0 0
        %3421 = vmatprep.subr.bf16.mxu0 0
        %3422 = vmatpush1.bf16.msra.mxu0 0
        %3423 = vmatprep.subr.bf16.mxu0 0
        %3424 = vmatpush1.bf16.msra.mxu0 0
        %3425 = vmatprep.mubr.bf16.mxu0 0
        %3426 = vmatmul.mubr.bf16.gmra.mrb[0].mxu0 %v3391
        %v3427 = vpop.f32.mrb[0].mxu0
        %v3428 = vadd.f32 %v3343, %v3427
        %v3429 = vpop.f32.mrb[0].mxu0
        %v3430 = vadd.f32 %v3347, %v3429
        %v3431 = vpop.f32.mrb[0].mxu0
        %v3432 = vpop.f32.mrb[0].mxu0
        %3433 = vdwg.mxu0
        %v3434 = vmax.f32 %v3428, 0.0
        %v3435 = vmax.f32 %v3430, 0.0
        %v3436 = vld [vmem:[%s1541] sm:$0xf]
        %v3437 = vld [vmem:[%s1541 + $0x4] sm:$0xf]
        %v3438 = vld [vmem:[%s1541 + $0x8] sm:$0xf]
        %v3439 = vld [vmem:[%s1541 + $0xc] sm:$0xf]
        %v3440 = vld [vmem:[%s1541 + $0x10] sm:$0xf]
        %v3441 = vld [vmem:[%s1541 + $0x14] sm:$0xf]
        %v3442 = vld [vmem:[%s1541 + $0x18] sm:$0xf]
        %v3443 = vld [vmem:[%s1541 + $0x1c] sm:$0xf]
        %v3444 = vld [vmem:[%s1541 + $0x20] sm:$0xf]
        %v3445 = vld [vmem:[%s1541 + $0x24] sm:$0xf]
        %v3446 = vld [vmem:[%s1541 + $0x28] sm:$0xf]
        %v3447 = vld [vmem:[%s1541 + $0x2c] sm:$0xf]
        %v3448 = vld [vmem:[%s1541 + $0x30] sm:$0xf]
        %v3449 = vld [vmem:[%s1541 + $0x34] sm:$0xf]
        %v3450 = vld [vmem:[%s1541 + $0x38] sm:$0xf]
        %v3451 = vld [vmem:[%s1541 + $0x3c] sm:$0xf]
        %v3452 = vld [vmem:[%s1541 + $0x40] sm:$0xf]
        %v3453 = vld [vmem:[%s1541 + $0x44] sm:$0xf]
        %v3454 = vld [vmem:[%s1541 + $0x48] sm:$0xf]
        %v3455 = vld [vmem:[%s1541 + $0x4c] sm:$0xf]
        %v3456 = vld [vmem:[%s1541 + $0x50] sm:$0xf]
        %v3457 = vld [vmem:[%s1541 + $0x54] sm:$0xf]
        %v3458 = vld [vmem:[%s1541 + $0x58] sm:$0xf]
        %v3459 = vld [vmem:[%s1541 + $0x5c] sm:$0xf]
        %v3460 = vld [vmem:[%s1541 + $0x60] sm:$0xf]
        %v3461 = vld [vmem:[%s1541 + $0x64] sm:$0xf]
        %v3462 = vld [vmem:[%s1541 + $0x68] sm:$0xf]
        %v3463 = vld [vmem:[%s1541 + $0x6c] sm:$0xf]
        %v3464 = vld [vmem:[%s1541 + $0x70] sm:$0xf]
        %v3465 = vld [vmem:[%s1541 + $0x74] sm:$0xf]
        %v3466 = vld [vmem:[%s1541 + $0x78] sm:$0xf]
        %v3467 = vld [vmem:[%s1541 + $0x7c] sm:$0xf]
        %v3468 = vld [vmem:[%s1296] sm:$0x1]
        %v3469 = vpack.c.bf16 %v3434, %v3434
        %v3470 = vpack.c.bf16 %v3435, %v3435
        %v3472 = vlaneseq
        %v3473 = vshrl.u32 %v3472, 7
        %v3474 = vsub.s32 0, %v3473
        %v3475 = vrot.slane %v3468, %v3474
        %v3509 = vunpack.c.l.b16 %v3436
        %v3510 = vunpack.c.l.b16 %v3437
        %v3511 = vunpack.c.l.b16 %v3438
        %v3512 = vunpack.c.l.b16 %v3439
        %v3513 = vunpack.c.l.b16 %v3440
        %v3514 = vunpack.c.l.b16 %v3441
        %v3515 = vunpack.c.l.b16 %v3442
        %v3516 = vunpack.c.l.b16 %v3443
        %v3517 = vunpack.c.l.b16 %v3444
        %v3518 = vunpack.c.l.b16 %v3445
        %v3519 = vunpack.c.l.b16 %v3446
        %v3520 = vunpack.c.l.b16 %v3447
        %v3521 = vunpack.c.l.b16 %v3448
        %v3522 = vunpack.c.l.b16 %v3449
        %v3523 = vunpack.c.l.b16 %v3450
        %v3524 = vunpack.c.l.b16 %v3451
        %v3525 = vunpack.c.l.b16 %v3452
        %v3526 = vunpack.c.l.b16 %v3453
        %v3527 = vunpack.c.l.b16 %v3454
        %v3528 = vunpack.c.l.b16 %v3455
        %v3529 = vunpack.c.l.b16 %v3456
        %v3530 = vunpack.c.l.b16 %v3457
        %v3531 = vunpack.c.l.b16 %v3458
        %v3532 = vunpack.c.l.b16 %v3459
        %v3533 = vunpack.c.l.b16 %v3460
        %v3534 = vunpack.c.l.b16 %v3461
        %v3535 = vunpack.c.l.b16 %v3462
        %v3536 = vunpack.c.l.b16 %v3463
        %v3537 = vunpack.c.l.b16 %v3464
        %v3538 = vunpack.c.l.b16 %v3465
        %v3539 = vunpack.c.l.b16 %v3466
        %v3540 = vunpack.c.l.b16 %v3467
        %v3541 = vpack.c.b16 %v3510, %v3509
        %v3542 = vpack.c.b16 %v3512, %v3511
        %v3543 = vpack.c.b16 %v3514, %v3513
        %v3544 = vpack.c.b16 %v3516, %v3515
        %v3545 = vpack.c.b16 %v3518, %v3517
        %v3546 = vpack.c.b16 %v3520, %v3519
        %v3547 = vpack.c.b16 %v3522, %v3521
        %v3548 = vpack.c.b16 %v3524, %v3523
        %v3549 = vpack.c.b16 %v3526, %v3525
        %v3550 = vpack.c.b16 %v3528, %v3527
        %v3551 = vpack.c.b16 %v3530, %v3529
        %v3552 = vpack.c.b16 %v3532, %v3531
        %v3553 = vpack.c.b16 %v3534, %v3533
        %v3554 = vpack.c.b16 %v3536, %v3535
        %v3555 = vpack.c.b16 %v3538, %v3537
        %v3556 = vpack.c.b16 %v3540, %v3539
        %3573 = vmatprep.subr.bf16.mxu0 0
        %3574 = vmatpush1.bf16.msra.mxu0 %v3541
        %3575 = vmatprep.subr.bf16.mxu0 0
        %3576 = vmatpush1.bf16.msra.mxu0 %v3542
        %3577 = vmatprep.subr.bf16.mxu0 0
        %3578 = vmatpush1.bf16.msra.mxu0 %v3543
        %3579 = vmatprep.subr.bf16.mxu0 0
        %3580 = vmatpush1.bf16.msra.mxu0 %v3544
        %3581 = vmatprep.subr.bf16.mxu0 0
        %3582 = vmatpush1.bf16.msra.mxu0 %v3545
        %3583 = vmatprep.subr.bf16.mxu0 0
        %3584 = vmatpush1.bf16.msra.mxu0 %v3546
        %3585 = vmatprep.subr.bf16.mxu0 0
        %3586 = vmatpush1.bf16.msra.mxu0 %v3547
        %3587 = vmatprep.subr.bf16.mxu0 0
        %3588 = vmatpush1.bf16.msra.mxu0 %v3548
        %3589 = vmatprep.subr.bf16.mxu0 0
        %3590 = vmatpush1.bf16.msra.mxu0 %v3549
        %3591 = vmatprep.subr.bf16.mxu0 0
        %3592 = vmatpush1.bf16.msra.mxu0 %v3550
        %3593 = vmatprep.subr.bf16.mxu0 0
        %3594 = vmatpush1.bf16.msra.mxu0 %v3551
        %3595 = vmatprep.subr.bf16.mxu0 0
        %3596 = vmatpush1.bf16.msra.mxu0 %v3552
        %3597 = vmatprep.subr.bf16.mxu0 0
        %3598 = vmatpush1.bf16.msra.mxu0 %v3553
        %3599 = vmatprep.subr.bf16.mxu0 0
        %3600 = vmatpush1.bf16.msra.mxu0 %v3554
        %3601 = vmatprep.subr.bf16.mxu0 0
        %3602 = vmatpush1.bf16.msra.mxu0 %v3555
        %3603 = vmatprep.subr.bf16.mxu0 0
        %3604 = vmatpush1.bf16.msra.mxu0 %v3556
        %3605 = vmatprep.mubr.bf16.mxu0 %v3470
        %3606 = vmatmul.mubr.bf16.gmra.mrb[0].mxu0 %v3469
        %v3607 = vpop.f32.mrb[0].mxu0
        %v3608 = vadd.f32 %v3475, %v3607
        %v3609 = vpop.f32.mrb[0].mxu0
        %v3610 = vpop.f32.mrb[0].mxu0
        %v3611 = vpop.f32.mrb[0].mxu0
        %3612 = vdwg.mxu0
        %v3613 = vadd.f32 %v3328, %v3608
        %v3614 = vld [vmem:[%s1320] sm:$0x1]
        %v3615 = vld [vmem:[%s1328] sm:$0x1]
        %v3616 = vsel %vm1650, %v3613, 0.0
        %3617 = vadd.xlane.f32.xlu0 %v3616
        %v3618 = vpop.xlane.xlu0 %3617
        %v3619 = vmul.f32 %v3618, %v3304
        %v3620 = vsub.f32 %v3613, %v3619
        %v3621 = vmul.f32 %v3620, %v3620
        %v3622 = vsel %vm1650, %v3621, 0.0
        %3623 = vadd.xlane.f32.xlu0 %v3622
        %v3624 = vpop.xlane.xlu0 %3623
        %v3625 = vmul.f32 %v3624, %v3304
        %v3626 = vadd.f32 %v3625, 1e-05
        %v3627 = vrsqrt.pop %v3626
        %v3628 = vmul.f32 %v3620, %v3627
        %v3630 = vlaneseq
        %v3631 = vshrl.u32 %v3630, 7
        %v3632 = vsub.s32 0, %v3631
        %v3633 = vrot.slane %v3614, %v3632
        %v3635 = vmul.f32 %v3628, %v3633
        %v3637 = vlaneseq
        %v3638 = vshrl.u32 %v3637, 7
        %v3639 = vsub.s32 0, %v3638
        %v3640 = vrot.slane %v3615, %v3639
        %v3642 = vadd.f32 %v3635, %v3640
        %3643 = vst.msk [vmem:[#allocation2] sm:$0xff] %vm1650, %v3642
        %p3644 = scmp.eq.s32.totalorder %s96, 5
        // Predicated region
        $region233: #{tpu_custom_call.1} parent=139 // pred_check
          %p3645 = pneg %p3644
        $region234: #{tpu_custom_call.1} parent=139 // pred_check_branch
          %3647 = sbr.rel (%p3645) target = $region236
        $region235: #{tpu_custom_call.1} parent=139 // pred_region
          %v3648 = vld [vmem:[#allocation16] sm:$0xff]
          %v3649 = vld [vmem:[#allocation16 + $0x8] sm:$0xff]
          %v3650 = vld [vmem:[#allocation16 + $0x10] sm:$0xff]
          %v3651 = vld [vmem:[#allocation16 + $0x18] sm:$0xff]
          %v3652 = vld [vmem:[#allocation16 + $0x20] sm:$0xff]
          %v3653 = vld [vmem:[#allocation16 + $0x28] sm:$0xff]
          %v3654 = vld [vmem:[#allocation16 + $0x30] sm:$0xff]
          %v3655 = vld [vmem:[#allocation16 + $0x38] sm:$0xff]
          %v3656 = vld [vmem:[#allocation17] sm:$0x3]
          %v3657 = vpack.c.bf16 %v3642, %v3642
          %v3666 = vunpack.c.l.b16 %v3648
          %v3667 = vunpack.c.h.b16 %v3648
          %v3668 = vunpack.c.l.b16 %v3649
          %v3669 = vunpack.c.h.b16 %v3649
          %v3670 = vunpack.c.l.b16 %v3650
          %v3671 = vunpack.c.h.b16 %v3650
          %v3672 = vunpack.c.l.b16 %v3651
          %v3673 = vunpack.c.h.b16 %v3651
          %v3674 = vunpack.c.l.b16 %v3652
          %v3675 = vunpack.c.h.b16 %v3652
          %v3676 = vunpack.c.l.b16 %v3653
          %v3677 = vunpack.c.h.b16 %v3653
          %v3678 = vunpack.c.l.b16 %v3654
          %v3679 = vunpack.c.h.b16 %v3654
          %v3680 = vunpack.c.l.b16 %v3655
          %v3681 = vunpack.c.h.b16 %v3655
          %v3682 = vpack.c.b16 %v3668, %v3666
          %v3683 = vpack.c.b16 %v3669, %v3667
          %v3684 = vpack.c.b16 %v3672, %v3670
          %v3685 = vpack.c.b16 %v3673, %v3671
          %v3686 = vpack.c.b16 %v3676, %v3674
          %v3687 = vpack.c.b16 %v3677, %v3675
          %v3688 = vpack.c.b16 %v3680, %v3678
          %v3689 = vpack.c.b16 %v3681, %v3679
          %v3699 = vlaneseq
          %v3700 = vshrl.u32 %v3699, 7
          %v3701 = vsub.s32 0, %v3700
          %v3702 = vrot.slane %v3656, %v3701
          %v3703 = vlaneseq
          %v3704 = vshrl.u32 %v3703, 7
          %v3705 = vsub.s32 1, %v3704
          %v3706 = vrot.slane %v3656, %v3705
          %v3710 = vsel %vm1650, %v3657, 0
          %3712 = vmatprep.subr.bf16.mxu0 %v3683
          %3713 = vmatpush1.bf16.msra.mxu0 %v3682
          %3714 = vmatprep.subr.bf16.mxu0 %v3685
          %3715 = vmatpush1.bf16.msra.mxu0 %v3684
          %3716 = vmatprep.subr.bf16.mxu0 %v3687
          %3717 = vmatpush1.bf16.msra.mxu0 %v3686
          %3718 = vmatprep.subr.bf16.mxu0 %v3689
          %3719 = vmatpush1.bf16.msra.mxu0 %v3688
          %3720 = vmatprep.subr.bf16.mxu0 0
          %3721 = vmatpush1.bf16.msra.mxu0 0
          %3722 = vmatprep.subr.bf16.mxu0 0
          %3723 = vmatpush1.bf16.msra.mxu0 0
          %3724 = vmatprep.subr.bf16.mxu0 0
          %3725 = vmatpush1.bf16.msra.mxu0 0
          %3726 = vmatprep.subr.bf16.mxu0 0
          %3727 = vmatpush1.bf16.msra.mxu0 0
          %3728 = vmatprep.subr.bf16.mxu0 0
          %3729 = vmatpush1.bf16.msra.mxu0 0
          %3730 = vmatprep.subr.bf16.mxu0 0
          %3731 = vmatpush1.bf16.msra.mxu0 0
          %3732 = vmatprep.subr.bf16.mxu0 0
          %3733 = vmatpush1.bf16.msra.mxu0 0
          %3734 = vmatprep.subr.bf16.mxu0 0
          %3735 = vmatpush1.bf16.msra.mxu0 0
          %3736 = vmatprep.subr.bf16.mxu0 0
          %3737 = vmatpush1.bf16.msra.mxu0 0
          %3738 = vmatprep.subr.bf16.mxu0 0
          %3739 = vmatpush1.bf16.msra.mxu0 0
          %3740 = vmatprep.subr.bf16.mxu0 0
          %3741 = vmatpush1.bf16.msra.mxu0 0
          %3742 = vmatprep.subr.bf16.mxu0 0
          %3743 = vmatpush1.bf16.msra.mxu0 0
          %3744 = vmatprep.mubr.bf16.mxu0 0
          %3745 = vmatmul.mubr.bf16.gmra.mrb[0].mxu0 %v3710
          %v3746 = vpop.f32.mrb[0].mxu0
          %v3747 = vadd.f32 %v3702, %v3746
          %v3748 = vpop.f32.mrb[0].mxu0
          %v3749 = vadd.f32 %v3706, %v3748
          %v3750 = vpop.f32.mrb[0].mxu0
          %v3751 = vpop.f32.mrb[0].mxu0
          %3752 = vdwg.mxu0
          %v3755 = vcombine.low %v3747, %v3749
          %v3757 = vunpack.c.l.s4 1966171168
          %v3758 = vunpack.c.0.s8 %v3757
          %v3759 = vlaneseq
          %v3760 = vshrl.u32 %v3759, 7
          %v3761 = vsub.s32 %v3758, %v3760
          %v3762 = vrot.slane %v3755, %v3761
          %v3764 = vunpack.c.l.s4 1966171168
          %v3765 = vunpack.c.0.s8 %v3764
          %v3766 = vlaneseq
          %v3767 = vshrl.u32 %v3766, 7
          %v3768 = vsub.s32 %v3765, %v3767
          %v3769 = vrot.slane %v3762, %v3768
          %v3771 = vlaneseq
          %vm3772 = vcmp.ge.s32.totalorder %v3771, 0
          %vm3773 = vcmp.lt.s32.totalorder %v3771, 192
          %vm3774 = vmand %vm3772, %vm3773
          %3775 = vst.msk [vmem:[%s1505] sm:$0x3] %vm3774, %v3769
          %v3776 = vld [vmem:[#allocation19] sm:$0xf]
          %v3777 = vld [vmem:[#allocation19 + $0x4] sm:$0xf]
          %v3778 = vld [vmem:[#allocation19 + $0x8] sm:$0xf]
          %v3779 = vld [vmem:[#allocation19 + $0xc] sm:$0xf]
          %v3780 = vld [vmem:[#allocation19 + $0x10] sm:$0xf]
          %v3781 = vld [vmem:[#allocation19 + $0x14] sm:$0xf]
          %v3782 = vld [vmem:[#allocation19 + $0x18] sm:$0xf]
          %v3783 = vld [vmem:[#allocation19 + $0x1c] sm:$0xf]
          %v3784 = vld [vmem:[#allocation20] sm:$0x1]
          %v3785 = vpack.c.bf16 %v3747, %v3747
          %v3794 = vunpack.c.l.b16 %v3776
          %v3795 = vunpack.c.l.b16 %v3777
          %v3796 = vunpack.c.l.b16 %v3778
          %v3797 = vunpack.c.l.b16 %v3779
          %v3798 = vunpack.c.l.b16 %v3780
          %v3799 = vunpack.c.l.b16 %v3781
          %v3800 = vunpack.c.l.b16 %v3782
          %v3801 = vunpack.c.l.b16 %v3783
          %v3802 = vpack.c.b16 %v3795, %v3794
          %v3803 = vpack.c.b16 %v3797, %v3796
          %v3804 = vpack.c.b16 %v3799, %v3798
          %v3805 = vpack.c.b16 %v3801, %v3800
          %v3811 = vsel %vm1650, %v3785, 0
          %3813 = vmatprep.subr.bf16.mxu0 0
          %3814 = vmatpush1.bf16.msra.mxu0 %v3802
          %3815 = vmatprep.subr.bf16.mxu0 0
          %3816 = vmatpush1.bf16.msra.mxu0 %v3803
          %3817 = vmatprep.subr.bf16.mxu0 0
          %3818 = vmatpush1.bf16.msra.mxu0 %v3804
          %3819 = vmatprep.subr.bf16.mxu0 0
          %3820 = vmatpush1.bf16.msra.mxu0 %v3805
          %3821 = vmatprep.subr.bf16.mxu0 0
          %3822 = vmatpush1.bf16.msra.mxu0 0
          %3823 = vmatprep.subr.bf16.mxu0 0
          %3824 = vmatpush1.bf16.msra.mxu0 0
          %3825 = vmatprep.subr.bf16.mxu0 0
          %3826 = vmatpush1.bf16.msra.mxu0 0
          %3827 = vmatprep.subr.bf16.mxu0 0
          %3828 = vmatpush1.bf16.msra.mxu0 0
          %3829 = vmatprep.subr.bf16.mxu0 0
          %3830 = vmatpush1.bf16.msra.mxu0 0
          %3831 = vmatprep.subr.bf16.mxu0 0
          %3832 = vmatpush1.bf16.msra.mxu0 0
          %3833 = vmatprep.subr.bf16.mxu0 0
          %3834 = vmatpush1.bf16.msra.mxu0 0
          %3835 = vmatprep.subr.bf16.mxu0 0
          %3836 = vmatpush1.bf16.msra.mxu0 0
          %3837 = vmatprep.subr.bf16.mxu0 0
          %3838 = vmatpush1.bf16.msra.mxu0 0
          %3839 = vmatprep.subr.bf16.mxu0 0
          %3840 = vmatpush1.bf16.msra.mxu0 0
          %3841 = vmatprep.subr.bf16.mxu0 0
          %3842 = vmatpush1.bf16.msra.mxu0 0
          %3843 = vmatprep.subr.bf16.mxu0 0
          %3844 = vmatpush1.bf16.msra.mxu0 0
          %3845 = vmatprep.mubr.bf16.mxu0 0
          %3846 = vmatmul.mubr.bf16.gmra.mrb[0].mxu0 %v3811
          %v3847 = vpop.f32.mrb[0].mxu0
          %v3848 = vadd.f32 %v3784, %v3847
          %v3849 = vpop.f32.mrb[0].mxu0
          %v3850 = vpop.f32.mrb[0].mxu0
          %v3851 = vpop.f32.mrb[0].mxu0
          %3852 = vdwg.mxu0
          %v3853 = vld [vmem:[#allocation22] sm:$0x1]
          %v3854 = vld [vmem:[#allocation23] sm:$0x1]
          %vm3855 = vcmask 516096
          %v3856 = vsel %vm3855, %v3848, 0.0
          %3857 = vadd.xlane.f32.xlu0 %v3856
          %v3858 = vpop.xlane.xlu0 %3857
          %v3859 = vmul.f32 %v3858, %v3304
          %v3860 = vsub.f32 %v3848, %v3859
          %v3861 = vmul.f32 %v3860, %v3860
          %v3862 = vsel %vm3855, %v3861, 0.0
          %3863 = vadd.xlane.f32.xlu0 %v3862
          %v3864 = vpop.xlane.xlu0 %3863
          %v3865 = vmul.f32 %v3864, %v3304
          %v3866 = vadd.f32 %v3865, 1e-05
          %v3867 = vrsqrt.pop %v3866
          %v3868 = vmul.f32 %v3860, %v3867
          %v3869 = vmul.f32 %v3868, %v3853
          %v3870 = vadd.f32 %v3869, %v3854
          %v3871 = vmax.f32 %v3870, 0.0
          %s3872 = scalar_lea.vmem [#allocation19], 32
          %v3873 = vld [vmem:[%s3872] sm:$0xf]
          %v3874 = vld [vmem:[%s3872 + $0x4] sm:$0xf]
          %v3875 = vld [vmem:[%s3872 + $0x8] sm:$0xf]
          %v3876 = vld [vmem:[%s3872 + $0xc] sm:$0xf]
          %v3877 = vld [vmem:[%s3872 + $0x10] sm:$0xf]
          %v3878 = vld [vmem:[%s3872 + $0x14] sm:$0xf]
          %v3879 = vld [vmem:[%s3872 + $0x18] sm:$0xf]
          %v3880 = vld [vmem:[%s3872 + $0x1c] sm:$0xf]
          %s3881 = scalar_lea.vmem [#allocation20], 1
          %v3882 = vld [vmem:[%s3881] sm:$0x1]
          %v3883 = vpack.c.bf16 %v3871, %v3871
          %v3892 = vunpack.c.l.b16 %v3873
          %v3893 = vunpack.c.l.b16 %v3874
          %v3894 = vunpack.c.l.b16 %v3875
          %v3895 = vunpack.c.l.b16 %v3876
          %v3896 = vunpack.c.l.b16 %v3877
          %v3897 = vunpack.c.l.b16 %v3878
          %v3898 = vunpack.c.l.b16 %v3879
          %v3899 = vunpack.c.l.b16 %v3880
          %v3900 = vpack.c.b16 %v3893, %v3892
          %v3901 = vpack.c.b16 %v3895, %v3894
          %v3902 = vpack.c.b16 %v3897, %v3896
          %v3903 = vpack.c.b16 %v3899, %v3898
          %v3909 = vsel %vm1650, %v3883, 0
          %3911 = vmatprep.subr.bf16.mxu0 0
          %3912 = vmatpush1.bf16.msra.mxu0 %v3900
          %3913 = vmatprep.subr.bf16.mxu0 0
          %3914 = vmatpush1.bf16.msra.mxu0 %v3901
          %3915 = vmatprep.subr.bf16.mxu0 0
          %3916 = vmatpush1.bf16.msra.mxu0 %v3902
          %3917 = vmatprep.subr.bf16.mxu0 0
          %3918 = vmatpush1.bf16.msra.mxu0 %v3903
          %3919 = vmatprep.subr.bf16.mxu0 0
          %3920 = vmatpush1.bf16.msra.mxu0 0
          %3921 = vmatprep.subr.bf16.mxu0 0
          %3922 = vmatpush1.bf16.msra.mxu0 0
          %3923 = vmatprep.subr.bf16.mxu0 0
          %3924 = vmatpush1.bf16.msra.mxu0 0
          %3925 = vmatprep.subr.bf16.mxu0 0
          %3926 = vmatpush1.bf16.msra.mxu0 0
          %3927 = vmatprep.subr.bf16.mxu0 0
          %3928 = vmatpush1.bf16.msra.mxu0 0
          %3929 = vmatprep.subr.bf16.mxu0 0
          %3930 = vmatpush1.bf16.msra.mxu0 0
          %3931 = vmatprep.subr.bf16.mxu0 0
          %3932 = vmatpush1.bf16.msra.mxu0 0
          %3933 = vmatprep.subr.bf16.mxu0 0
          %3934 = vmatpush1.bf16.msra.mxu0 0
          %3935 = vmatprep.subr.bf16.mxu0 0
          %3936 = vmatpush1.bf16.msra.mxu0 0
          %3937 = vmatprep.subr.bf16.mxu0 0
          %3938 = vmatpush1.bf16.msra.mxu0 0
          %3939 = vmatprep.subr.bf16.mxu0 0
          %3940 = vmatpush1.bf16.msra.mxu0 0
          %3941 = vmatprep.subr.bf16.mxu0 0
          %3942 = vmatpush1.bf16.msra.mxu0 0
          %3943 = vmatprep.mubr.bf16.mxu0 0
          %3944 = vmatmul.mubr.bf16.gmra.mrb[0].mxu0 %v3909
          %v3945 = vpop.f32.mrb[0].mxu0
          %v3946 = vadd.f32 %v3882, %v3945
          %v3947 = vpop.f32.mrb[0].mxu0
          %v3948 = vpop.f32.mrb[0].mxu0
          %v3949 = vpop.f32.mrb[0].mxu0
          %3950 = vdwg.mxu0
          %s3951 = scalar_lea.vmem [#allocation22], 1
          %v3952 = vld [vmem:[%s3951] sm:$0x1]
          %s3953 = scalar_lea.vmem [#allocation23], 1
          %v3954 = vld [vmem:[%s3953] sm:$0x1]
          %v3955 = vsel %vm3855, %v3946, 0.0
          %3956 = vadd.xlane.f32.xlu0 %v3955
          %v3957 = vpop.xlane.xlu0 %3956
          %v3958 = vmul.f32 %v3957, %v3304
          %v3959 = vsub.f32 %v3946, %v3958
          %v3960 = vmul.f32 %v3959, %v3959
          %v3961 = vsel %vm3855, %v3960, 0.0
          %3962 = vadd.xlane.f32.xlu0 %v3961
          %v3963 = vpop.xlane.xlu0 %3962
          %v3964 = vmul.f32 %v3963, %v3304
          %v3965 = vadd.f32 %v3964, 1e-05
          %v3966 = vrsqrt.pop %v3965
          %v3967 = vmul.f32 %v3959, %v3966
          %v3968 = vmul.f32 %v3967, %v3952
          %v3969 = vadd.f32 %v3968, %v3954
          %v3970 = vmax.f32 %v3969, 0.0
          %s3971 = scalar_lea.vmem [#allocation19], 64
          %v3972 = vld [vmem:[%s3971] sm:$0xf]
          %v3973 = vld [vmem:[%s3971 + $0x4] sm:$0xf]
          %v3974 = vld [vmem:[%s3971 + $0x8] sm:$0xf]
          %v3975 = vld [vmem:[%s3971 + $0xc] sm:$0xf]
          %v3976 = vld [vmem:[%s3971 + $0x10] sm:$0xf]
          %v3977 = vld [vmem:[%s3971 + $0x14] sm:$0xf]
          %v3978 = vld [vmem:[%s3971 + $0x18] sm:$0xf]
          %v3979 = vld [vmem:[%s3971 + $0x1c] sm:$0xf]
          %s3980 = scalar_lea.vmem [#allocation20], 2
          %v3981 = vld [vmem:[%s3980] sm:$0x1]
          %v3982 = vpack.c.bf16 %v3970, %v3970
          %v3991 = vunpack.c.l.b16 %v3972
          %v3992 = vunpack.c.l.b16 %v3973
          %v3993 = vunpack.c.l.b16 %v3974
          %v3994 = vunpack.c.l.b16 %v3975
          %v3995 = vunpack.c.l.b16 %v3976
          %v3996 = vunpack.c.l.b16 %v3977
          %v3997 = vunpack.c.l.b16 %v3978
          %v3998 = vunpack.c.l.b16 %v3979
          %v3999 = vpack.c.b16 %v3992, %v3991
          %v4000 = vpack.c.b16 %v3994, %v3993
          %v4001 = vpack.c.b16 %v3996, %v3995
          %v4002 = vpack.c.b16 %v3998, %v3997
          %v4008 = vsel %vm1650, %v3982, 0
          %4010 = vmatprep.subr.bf16.mxu0 0
          %4011 = vmatpush1.bf16.msra.mxu0 %v3999
          %4012 = vmatprep.subr.bf16.mxu0 0
          %4013 = vmatpush1.bf16.msra.mxu0 %v4000
          %4014 = vmatprep.subr.bf16.mxu0 0
          %4015 = vmatpush1.bf16.msra.mxu0 %v4001
          %4016 = vmatprep.subr.bf16.mxu0 0
          %4017 = vmatpush1.bf16.msra.mxu0 %v4002
          %4018 = vmatprep.subr.bf16.mxu0 0
          %4019 = vmatpush1.bf16.msra.mxu0 0
          %4020 = vmatprep.subr.bf16.mxu0 0
          %4021 = vmatpush1.bf16.msra.mxu0 0
          %4022 = vmatprep.subr.bf16.mxu0 0
          %4023 = vmatpush1.bf16.msra.mxu0 0
          %4024 = vmatprep.subr.bf16.mxu0 0
          %4025 = vmatpush1.bf16.msra.mxu0 0
          %4026 = vmatprep.subr.bf16.mxu0 0
          %4027 = vmatpush1.bf16.msra.mxu0 0
          %4028 = vmatprep.subr.bf16.mxu0 0
          %4029 = vmatpush1.bf16.msra.mxu0 0
          %4030 = vmatprep.subr.bf16.mxu0 0
          %4031 = vmatpush1.bf16.msra.mxu0 0
          %4032 = vmatprep.subr.bf16.mxu0 0
          %4033 = vmatpush1.bf16.msra.mxu0 0
          %4034 = vmatprep.subr.bf16.mxu0 0
          %4035 = vmatpush1.bf16.msra.mxu0 0
          %4036 = vmatprep.subr.bf16.mxu0 0
          %4037 = vmatpush1.bf16.msra.mxu0 0
          %4038 = vmatprep.subr.bf16.mxu0 0
          %4039 = vmatpush1.bf16.msra.mxu0 0
          %4040 = vmatprep.subr.bf16.mxu0 0
          %4041 = vmatpush1.bf16.msra.mxu0 0
          %4042 = vmatprep.mubr.bf16.mxu0 0
          %4043 = vmatmul.mubr.bf16.gmra.mrb[0].mxu0 %v4008
          %v4044 = vpop.f32.mrb[0].mxu0
          %v4045 = vadd.f32 %v3981, %v4044
          %v4046 = vpop.f32.mrb[0].mxu0
          %v4047 = vpop.f32.mrb[0].mxu0
          %v4048 = vpop.f32.mrb[0].mxu0
          %4049 = vdwg.mxu0
          %s4050 = scalar_lea.vmem [#allocation22], 2
          %v4051 = vld [vmem:[%s4050] sm:$0x1]
          %s4052 = scalar_lea.vmem [#allocation23], 2
          %v4053 = vld [vmem:[%s4052] sm:$0x1]
          %v4054 = vsel %vm3855, %v4045, 0.0
          %4055 = vadd.xlane.f32.xlu0 %v4054
          %v4056 = vpop.xlane.xlu0 %4055
          %v4057 = vmul.f32 %v4056, %v3304
          %v4058 = vsub.f32 %v4045, %v4057
          %v4059 = vmul.f32 %v4058, %v4058
          %v4060 = vsel %vm3855, %v4059, 0.0
          %4061 = vadd.xlane.f32.xlu0 %v4060
          %v4062 = vpop.xlane.xlu0 %4061
          %v4063 = vmul.f32 %v4062, %v3304
          %v4064 = vadd.f32 %v4063, 1e-05
          %v4065 = vrsqrt.pop %v4064
          %v4066 = vmul.f32 %v4058, %v4065
          %v4067 = vmul.f32 %v4066, %v4051
          %v4068 = vadd.f32 %v4067, %v4053
          %v4069 = vmax.f32 %v4068, 0.0
          %v4070 = vld [vmem:[#allocation25] sm:$0xf]
          %v4071 = vld [vmem:[#allocation25 + $0x4] sm:$0xf]
          %v4072 = vld [vmem:[#allocation25 + $0x8] sm:$0xf]
          %v4073 = vld [vmem:[#allocation25 + $0xc] sm:$0xf]
          %v4074 = vld [vmem:[#allocation25 + $0x10] sm:$0xf]
          %v4075 = vld [vmem:[#allocation25 + $0x14] sm:$0xf]
          %v4076 = vld [vmem:[#allocation25 + $0x18] sm:$0xf]
          %v4077 = vld [vmem:[#allocation25 + $0x1c] sm:$0xf]
          %v4078 = vld [vmem:[#allocation26] sm:$0x1]
          %v4079 = vpack.c.bf16 %v4069, %v4069
          %v4088 = vunpack.c.l.b16 %v4070
          %v4089 = vunpack.c.l.b16 %v4071
          %v4090 = vunpack.c.l.b16 %v4072
          %v4091 = vunpack.c.l.b16 %v4073
          %v4092 = vunpack.c.l.b16 %v4074
          %v4093 = vunpack.c.l.b16 %v4075
          %v4094 = vunpack.c.l.b16 %v4076
          %v4095 = vunpack.c.l.b16 %v4077
          %v4096 = vpack.c.b16 %v4089, %v4088
          %v4097 = vpack.c.b16 %v4091, %v4090
          %v4098 = vpack.c.b16 %v4093, %v4092
          %v4099 = vpack.c.b16 %v4095, %v4094
          %v4105 = vsel %vm1650, %v4079, 0
          %4107 = vmatprep.subr.bf16.mxu0 0
          %4108 = vmatpush1.bf16.msra.mxu0 %v4096
          %4109 = vmatprep.subr.bf16.mxu0 0
          %4110 = vmatpush1.bf16.msra.mxu0 %v4097
          %4111 = vmatprep.subr.bf16.mxu0 0
          %4112 = vmatpush1.bf16.msra.mxu0 %v4098
          %4113 = vmatprep.subr.bf16.mxu0 0
          %4114 = vmatpush1.bf16.msra.mxu0 %v4099
          %4115 = vmatprep.subr.bf16.mxu0 0
          %4116 = vmatpush1.bf16.msra.mxu0 0
          %4117 = vmatprep.subr.bf16.mxu0 0
          %4118 = vmatpush1.bf16.msra.mxu0 0
          %4119 = vmatprep.subr.bf16.mxu0 0
          %4120 = vmatpush1.bf16.msra.mxu0 0
          %4121 = vmatprep.subr.bf16.mxu0 0
          %4122 = vmatpush1.bf16.msra.mxu0 0
          %4123 = vmatprep.subr.bf16.mxu0 0
          %4124 = vmatpush1.bf16.msra.mxu0 0
          %4125 = vmatprep.subr.bf16.mxu0 0
          %4126 = vmatpush1.bf16.msra.mxu0 0
          %4127 = vmatprep.subr.bf16.mxu0 0
          %4128 = vmatpush1.bf16.msra.mxu0 0
          %4129 = vmatprep.subr.bf16.mxu0 0
          %4130 = vmatpush1.bf16.msra.mxu0 0
          %4131 = vmatprep.subr.bf16.mxu0 0
          %4132 = vmatpush1.bf16.msra.mxu0 0
          %4133 = vmatprep.subr.bf16.mxu0 0
          %4134 = vmatpush1.bf16.msra.mxu0 0
          %4135 = vmatprep.subr.bf16.mxu0 0
          %4136 = vmatpush1.bf16.msra.mxu0 0
          %4137 = vmatprep.subr.bf16.mxu0 0
          %4138 = vmatpush1.bf16.msra.mxu0 0
          %4139 = vmatprep.mubr.bf16.mxu0 0
          %4140 = vmatmul.mubr.bf16.gmra.mrb[0].mxu0 %v4105
          %v4141 = vpop.f32.mrb[0].mxu0
          %v4142 = vadd.f32 %v4078, %v4141
          %v4143 = vpop.f32.mrb[0].mxu0
          %v4144 = vpop.f32.mrb[0].mxu0
          %v4145 = vpop.f32.mrb[0].mxu0
          %4146 = vdwg.mxu0
          %4147 = vst [vmem:[%s1511] sm:$0x1] %v4142
          %v4148 = vld [vmem:[%s49] sm:$0xf]
          %v4149 = vld [vmem:[%s49 + $0x4] sm:$0xf]
          %v4150 = vld [vmem:[%s49 + $0x8] sm:$0xf]
          %v4151 = vld [vmem:[%s49 + $0xc] sm:$0xf]
          %v4152 = vld [vmem:[%s49 + $0x10] sm:$0xf]
          %v4153 = vld [vmem:[%s49 + $0x14] sm:$0xf]
          %v4154 = vld [vmem:[%s49 + $0x18] sm:$0xf]
          %v4155 = vld [vmem:[%s49 + $0x1c] sm:$0xf]
          %v4156 = vld [vmem:[#allocation28] sm:$0x1]
          %v4157 = vpack.c.bf16 %v3749, %v3749
          %v4166 = vunpack.c.l.b16 %v4148
          %v4167 = vunpack.c.l.b16 %v4149
          %v4168 = vunpack.c.l.b16 %v4150
          %v4169 = vunpack.c.l.b16 %v4151
          %v4170 = vunpack.c.l.b16 %v4152
          %v4171 = vunpack.c.l.b16 %v4153
          %v4172 = vunpack.c.l.b16 %v4154
          %v4173 = vunpack.c.l.b16 %v4155
          %v4174 = vpack.c.b16 %v4167, %v4166
          %v4175 = vpack.c.b16 %v4169, %v4168
          %v4176 = vpack.c.b16 %v4171, %v4170
          %v4177 = vpack.c.b16 %v4173, %v4172
          %v4183 = vsel %vm1650, %v4157, 0
          %4185 = vmatprep.subr.bf16.mxu0 0
          %4186 = vmatpush1.bf16.msra.mxu0 %v4174
          %4187 = vmatprep.subr.bf16.mxu0 0
          %4188 = vmatpush1.bf16.msra.mxu0 %v4175
          %4189 = vmatprep.subr.bf16.mxu0 0
          %4190 = vmatpush1.bf16.msra.mxu0 %v4176
          %4191 = vmatprep.subr.bf16.mxu0 0
          %4192 = vmatpush1.bf16.msra.mxu0 %v4177
          %4193 = vmatprep.subr.bf16.mxu0 0
          %4194 = vmatpush1.bf16.msra.mxu0 0
          %4195 = vmatprep.subr.bf16.mxu0 0
          %4196 = vmatpush1.bf16.msra.mxu0 0
          %4197 = vmatprep.subr.bf16.mxu0 0
          %4198 = vmatpush1.bf16.msra.mxu0 0
          %4199 = vmatprep.subr.bf16.mxu0 0
          %4200 = vmatpush1.bf16.msra.mxu0 0
          %4201 = vmatprep.subr.bf16.mxu0 0
          %4202 = vmatpush1.bf16.msra.mxu0 0
          %4203 = vmatprep.subr.bf16.mxu0 0
          %4204 = vmatpush1.bf16.msra.mxu0 0
          %4205 = vmatprep.subr.bf16.mxu0 0
          %4206 = vmatpush1.bf16.msra.mxu0 0
          %4207 = vmatprep.subr.bf16.mxu0 0
          %4208 = vmatpush1.bf16.msra.mxu0 0
          %4209 = vmatprep.subr.bf16.mxu0 0
          %4210 = vmatpush1.bf16.msra.mxu0 0
          %4211 = vmatprep.subr.bf16.mxu0 0
          %4212 = vmatpush1.bf16.msra.mxu0 0
          %4213 = vmatprep.subr.bf16.mxu0 0
          %4214 = vmatpush1.bf16.msra.mxu0 0
          %4215 = vmatprep.subr.bf16.mxu0 0
          %4216 = vmatpush1.bf16.msra.mxu0 0
          %4217 = vmatprep.mubr.bf16.mxu0 0
          %4218 = vmatmul.mubr.bf16.gmra.mrb[0].mxu0 %v4183
          %v4219 = vpop.f32.mrb[0].mxu0
          %v4220 = vadd.f32 %v4156, %v4219
          %v4221 = vpop.f32.mrb[0].mxu0
          %v4222 = vpop.f32.mrb[0].mxu0
          %v4223 = vpop.f32.mrb[0].mxu0
          %4224 = vdwg.mxu0
          %v4225 = vld [vmem:[#allocation29] sm:$0x1]
          %v4226 = vld [vmem:[#allocation31] sm:$0x1]
          %v4227 = vsel %vm3855, %v4220, 0.0
          %4228 = vadd.xlane.f32.xlu0 %v4227
          %v4229 = vpop.xlane.xlu0 %4228
          %v4230 = vmul.f32 %v4229, %v3304
          %v4231 = vsub.f32 %v4220, %v4230
          %v4232 = vmul.f32 %v4231, %v4231
          %v4233 = vsel %vm3855, %v4232, 0.0
          %4234 = vadd.xlane.f32.xlu0 %v4233
          %v4235 = vpop.xlane.xlu0 %4234
          %v4236 = vmul.f32 %v4235, %v3304
          %v4237 = vadd.f32 %v4236, 1e-05
          %v4238 = vrsqrt.pop %v4237
          %v4239 = vmul.f32 %v4231, %v4238
          %v4240 = vmul.f32 %v4239, %v4225
          %v4241 = vadd.f32 %v4240, %v4226
          %v4242 = vmax.f32 %v4241, 0.0
          %s4243 = scalar_lea.vmem %s49, 32
          %v4244 = vld [vmem:[%s4243] sm:$0xf]
          %v4245 = vld [vmem:[%s4243 + $0x4] sm:$0xf]
          %v4246 = vld [vmem:[%s4243 + $0x8] sm:$0xf]
          %v4247 = vld [vmem:[%s4243 + $0xc] sm:$0xf]
          %v4248 = vld [vmem:[%s4243 + $0x10] sm:$0xf]
          %v4249 = vld [vmem:[%s4243 + $0x14] sm:$0xf]
          %v4250 = vld [vmem:[%s4243 + $0x18] sm:$0xf]
          %v4251 = vld [vmem:[%s4243 + $0x1c] sm:$0xf]
          %s4252 = scalar_lea.vmem [#allocation28], 1
          %v4253 = vld [vmem:[%s4252] sm:$0x1]
          %v4254 = vpack.c.bf16 %v4242, %v4242
          %v4263 = vunpack.c.l.b16 %v4244
          %v4264 = vunpack.c.l.b16 %v4245
          %v4265 = vunpack.c.l.b16 %v4246
          %v4266 = vunpack.c.l.b16 %v4247
          %v4267 = vunpack.c.l.b16 %v4248
          %v4268 = vunpack.c.l.b16 %v4249
          %v4269 = vunpack.c.l.b16 %v4250
          %v4270 = vunpack.c.l.b16 %v4251
          %v4271 = vpack.c.b16 %v4264, %v4263
          %v4272 = vpack.c.b16 %v4266, %v4265
          %v4273 = vpack.c.b16 %v4268, %v4267
          %v4274 = vpack.c.b16 %v4270, %v4269
          %v4280 = vsel %vm1650, %v4254, 0
          %4282 = vmatprep.subr.bf16.mxu0 0
          %4283 = vmatpush1.bf16.msra.mxu0 %v4271
          %4284 = vmatprep.subr.bf16.mxu0 0
          %4285 = vmatpush1.bf16.msra.mxu0 %v4272
          %4286 = vmatprep.subr.bf16.mxu0 0
          %4287 = vmatpush1.bf16.msra.mxu0 %v4273
          %4288 = vmatprep.subr.bf16.mxu0 0
          %4289 = vmatpush1.bf16.msra.mxu0 %v4274
          %4290 = vmatprep.subr.bf16.mxu0 0
          %4291 = vmatpush1.bf16.msra.mxu0 0
          %4292 = vmatprep.subr.bf16.mxu0 0
          %4293 = vmatpush1.bf16.msra.mxu0 0
          %4294 = vmatprep.subr.bf16.mxu0 0
          %4295 = vmatpush1.bf16.msra.mxu0 0
          %4296 = vmatprep.subr.bf16.mxu0 0
          %4297 = vmatpush1.bf16.msra.mxu0 0
          %4298 = vmatprep.subr.bf16.mxu0 0
          %4299 = vmatpush1.bf16.msra.mxu0 0
          %4300 = vmatprep.subr.bf16.mxu0 0
          %4301 = vmatpush1.bf16.msra.mxu0 0
          %4302 = vmatprep.subr.bf16.mxu0 0
          %4303 = vmatpush1.bf16.msra.mxu0 0
          %4304 = vmatprep.subr.bf16.mxu0 0
          %4305 = vmatpush1.bf16.msra.mxu0 0
          %4306 = vmatprep.subr.bf16.mxu0 0
          %4307 = vmatpush1.bf16.msra.mxu0 0
          %4308 = vmatprep.subr.bf16.mxu0 0
          %4309 = vmatpush1.bf16.msra.mxu0 0
          %4310 = vmatprep.subr.bf16.mxu0 0
          %4311 = vmatpush1.bf16.msra.mxu0 0
          %4312 = vmatprep.subr.bf16.mxu0 0
          %4313 = vmatpush1.bf16.msra.mxu0 0
          %4314 = vmatprep.mubr.bf16.mxu0 0
          %4315 = vmatmul.mubr.bf16.gmra.mrb[0].mxu0 %v4280
          %v4316 = vpop.f32.mrb[0].mxu0
          %v4317 = vadd.f32 %v4253, %v4316
          %v4318 = vpop.f32.mrb[0].mxu0
          %v4319 = vpop.f32.mrb[0].mxu0
          %v4320 = vpop.f32.mrb[0].mxu0
          %4321 = vdwg.mxu0
          %s4322 = scalar_lea.vmem [#allocation29], 1
          %v4323 = vld [vmem:[%s4322] sm:$0x1]
          %s4324 = scalar_lea.vmem [#allocation31], 1
          %v4325 = vld [vmem:[%s4324] sm:$0x1]
          %v4326 = vsel %vm3855, %v4317, 0.0
          %4327 = vadd.xlane.f32.xlu0 %v4326
          %v4328 = vpop.xlane.xlu0 %4327
          %v4329 = vmul.f32 %v4328, %v3304
          %v4330 = vsub.f32 %v4317, %v4329
          %v4331 = vmul.f32 %v4330, %v4330
          %v4332 = vsel %vm3855, %v4331, 0.0
          %4333 = vadd.xlane.f32.xlu0 %v4332
          %v4334 = vpop.xlane.xlu0 %4333
          %v4335 = vmul.f32 %v4334, %v3304
          %v4336 = vadd.f32 %v4335, 1e-05
          %v4337 = vrsqrt.pop %v4336
          %v4338 = vmul.f32 %v4330, %v4337
          %v4339 = vmul.f32 %v4338, %v4323
          %v4340 = vadd.f32 %v4339, %v4325
          %v4341 = vmax.f32 %v4340, 0.0
          %s4342 = scalar_lea.vmem %s49, 64
          %v4343 = vld [vmem:[%s4342] sm:$0xf]
          %v4344 = vld [vmem:[%s4342 + $0x4] sm:$0xf]
          %v4345 = vld [vmem:[%s4342 + $0x8] sm:$0xf]
          %v4346 = vld [vmem:[%s4342 + $0xc] sm:$0xf]
          %v4347 = vld [vmem:[%s4342 + $0x10] sm:$0xf]
          %v4348 = vld [vmem:[%s4342 + $0x14] sm:$0xf]
          %v4349 = vld [vmem:[%s4342 + $0x18] sm:$0xf]
          %v4350 = vld [vmem:[%s4342 + $0x1c] sm:$0xf]
          %s4351 = scalar_lea.vmem [#allocation28], 2
          %v4352 = vld [vmem:[%s4351] sm:$0x1]
          %v4353 = vpack.c.bf16 %v4341, %v4341
          %v4362 = vunpack.c.l.b16 %v4343
          %v4363 = vunpack.c.l.b16 %v4344
          %v4364 = vunpack.c.l.b16 %v4345
          %v4365 = vunpack.c.l.b16 %v4346
          %v4366 = vunpack.c.l.b16 %v4347
          %v4367 = vunpack.c.l.b16 %v4348
          %v4368 = vunpack.c.l.b16 %v4349
          %v4369 = vunpack.c.l.b16 %v4350
          %v4370 = vpack.c.b16 %v4363, %v4362
          %v4371 = vpack.c.b16 %v4365, %v4364
          %v4372 = vpack.c.b16 %v4367, %v4366
          %v4373 = vpack.c.b16 %v4369, %v4368
          %v4379 = vsel %vm1650, %v4353, 0
          %4381 = vmatprep.subr.bf16.mxu0 0
          %4382 = vmatpush1.bf16.msra.mxu0 %v4370
          %4383 = vmatprep.subr.bf16.mxu0 0
          %4384 = vmatpush1.bf16.msra.mxu0 %v4371
          %4385 = vmatprep.subr.bf16.mxu0 0
          %4386 = vmatpush1.bf16.msra.mxu0 %v4372
          %4387 = vmatprep.subr.bf16.mxu0 0
          %4388 = vmatpush1.bf16.msra.mxu0 %v4373
          %4389 = vmatprep.subr.bf16.mxu0 0
          %4390 = vmatpush1.bf16.msra.mxu0 0
          %4391 = vmatprep.subr.bf16.mxu0 0
          %4392 = vmatpush1.bf16.msra.mxu0 0
          %4393 = vmatprep.subr.bf16.mxu0 0
          %4394 = vmatpush1.bf16.msra.mxu0 0
          %4395 = vmatprep.subr.bf16.mxu0 0
          %4396 = vmatpush1.bf16.msra.mxu0 0
          %4397 = vmatprep.subr.bf16.mxu0 0
          %4398 = vmatpush1.bf16.msra.mxu0 0
          %4399 = vmatprep.subr.bf16.mxu0 0
          %4400 = vmatpush1.bf16.msra.mxu0 0
          %4401 = vmatprep.subr.bf16.mxu0 0
          %4402 = vmatpush1.bf16.msra.mxu0 0
          %4403 = vmatprep.subr.bf16.mxu0 0
          %4404 = vmatpush1.bf16.msra.mxu0 0
          %4405 = vmatprep.subr.bf16.mxu0 0
          %4406 = vmatpush1.bf16.msra.mxu0 0
          %4407 = vmatprep.subr.bf16.mxu0 0
          %4408 = vmatpush1.bf16.msra.mxu0 0
          %4409 = vmatprep.subr.bf16.mxu0 0
          %4410 = vmatpush1.bf16.msra.mxu0 0
          %4411 = vmatprep.subr.bf16.mxu0 0
          %4412 = vmatpush1.bf16.msra.mxu0 0
          %4413 = vmatprep.mubr.bf16.mxu0 0
          %4414 = vmatmul.mubr.bf16.gmra.mrb[0].mxu0 %v4379
          %v4415 = vpop.f32.mrb[0].mxu0
          %v4416 = vadd.f32 %v4352, %v4415
          %v4417 = vpop.f32.mrb[0].mxu0
          %v4418 = vpop.f32.mrb[0].mxu0
          %v4419 = vpop.f32.mrb[0].mxu0
          %4420 = vdwg.mxu0
          %s4421 = scalar_lea.vmem [#allocation29], 2
          %v4422 = vld [vmem:[%s4421] sm:$0x1]
          %s4423 = scalar_lea.vmem [#allocation31], 2
          %v4424 = vld [vmem:[%s4423] sm:$0x1]
          %v4425 = vsel %vm3855, %v4416, 0.0
          %4426 = vadd.xlane.f32.xlu0 %v4425
          %v4427 = vpop.xlane.xlu0 %4426
          %v4428 = vmul.f32 %v4427, %v3304
          %v4429 = vsub.f32 %v4416, %v4428
          %v4430 = vmul.f32 %v4429, %v4429
          %v4431 = vsel %vm3855, %v4430, 0.0
          %4432 = vadd.xlane.f32.xlu0 %v4431
          %v4433 = vpop.xlane.xlu0 %4432
          %v4434 = vmul.f32 %v4433, %v3304
          %v4435 = vadd.f32 %v4434, 1e-05
          %v4436 = vrsqrt.pop %v4435
          %v4437 = vmul.f32 %v4429, %v4436
          %v4438 = vmul.f32 %v4437, %v4422
          %v4439 = vadd.f32 %v4438, %v4424
          %v4440 = vmax.f32 %v4439, 0.0
          %v4441 = vld [vmem:[%s57] sm:$0xf]
          %v4442 = vld [vmem:[%s57 + $0x4] sm:$0xf]
          %v4443 = vld [vmem:[%s57 + $0x8] sm:$0xf]
          %v4444 = vld [vmem:[%s57 + $0xc] sm:$0xf]
          %v4445 = vld [vmem:[%s57 + $0x10] sm:$0xf]
          %v4446 = vld [vmem:[%s57 + $0x14] sm:$0xf]
          %v4447 = vld [vmem:[%s57 + $0x18] sm:$0xf]
          %v4448 = vld [vmem:[%s57 + $0x1c] sm:$0xf]
          %v4449 = vld [vmem:[#allocation32] sm:$0x1]
          %v4450 = vpack.c.bf16 %v4440, %v4440
          %v4459 = vunpack.c.l.b16 %v4441
          %v4460 = vunpack.c.l.b16 %v4442
          %v4461 = vunpack.c.l.b16 %v4443
          %v4462 = vunpack.c.l.b16 %v4444
          %v4463 = vunpack.c.l.b16 %v4445
          %v4464 = vunpack.c.l.b16 %v4446
          %v4465 = vunpack.c.l.b16 %v4447
          %v4466 = vunpack.c.l.b16 %v4448
          %v4467 = vpack.c.b16 %v4460, %v4459
          %v4468 = vpack.c.b16 %v4462, %v4461
          %v4469 = vpack.c.b16 %v4464, %v4463
          %v4470 = vpack.c.b16 %v4466, %v4465
          %v4476 = vsel %vm1650, %v4450, 0
          %4478 = vmatprep.subr.bf16.mxu0 0
          %4479 = vmatpush1.bf16.msra.mxu0 %v4467
          %4480 = vmatprep.subr.bf16.mxu0 0
          %4481 = vmatpush1.bf16.msra.mxu0 %v4468
          %4482 = vmatprep.subr.bf16.mxu0 0
          %4483 = vmatpush1.bf16.msra.mxu0 %v4469
          %4484 = vmatprep.subr.bf16.mxu0 0
          %4485 = vmatpush1.bf16.msra.mxu0 %v4470
          %4486 = vmatprep.subr.bf16.mxu0 0
          %4487 = vmatpush1.bf16.msra.mxu0 0
          %4488 = vmatprep.subr.bf16.mxu0 0
          %4489 = vmatpush1.bf16.msra.mxu0 0
          %4490 = vmatprep.subr.bf16.mxu0 0
          %4491 = vmatpush1.bf16.msra.mxu0 0
          %4492 = vmatprep.subr.bf16.mxu0 0
          %4493 = vmatpush1.bf16.msra.mxu0 0
          %4494 = vmatprep.subr.bf16.mxu0 0
          %4495 = vmatpush1.bf16.msra.mxu0 0
          %4496 = vmatprep.subr.bf16.mxu0 0
          %4497 = vmatpush1.bf16.msra.mxu0 0
          %4498 = vmatprep.subr.bf16.mxu0 0
          %4499 = vmatpush1.bf16.msra.mxu0 0
          %4500 = vmatprep.subr.bf16.mxu0 0
          %4501 = vmatpush1.bf16.msra.mxu0 0
          %4502 = vmatprep.subr.bf16.mxu0 0
          %4503 = vmatpush1.bf16.msra.mxu0 0
          %4504 = vmatprep.subr.bf16.mxu0 0
          %4505 = vmatpush1.bf16.msra.mxu0 0
          %4506 = vmatprep.subr.bf16.mxu0 0
          %4507 = vmatpush1.bf16.msra.mxu0 0
          %4508 = vmatprep.subr.bf16.mxu0 0
          %4509 = vmatpush1.bf16.msra.mxu0 0
          %4510 = vmatprep.mubr.bf16.mxu0 0
          %4511 = vmatmul.mubr.bf16.gmra.mrb[0].mxu0 %v4476
          %v4512 = vpop.f32.mrb[0].mxu0
          %v4513 = vadd.f32 %v4449, %v4512
          %v4514 = vpop.f32.mrb[0].mxu0
          %v4515 = vpop.f32.mrb[0].mxu0
          %v4516 = vpop.f32.mrb[0].mxu0
          %4517 = vdwg.mxu0
          %v4518 = vlaneseq
          %v4519 = vand.u32 %v4518, 127
          %vm4520 = vcmp.lt.s32.totalorder %v4519, 3
          %v4521 = vsel %vm4520, %v4513, 0.0
          %4522 = vst [vmem:[%s1517] sm:$0x1] %v4521
        $region236: #{tpu_custom_call.1} parent=139 // pred_fallthru
          _
        %s4523 = sand.u32 %s806, 1
        %s4524 = scalar_lea.sflag [#allocation5], %s4523
        %s4525 = sand.u32 %s806, 1
        %s4526 = smul.addr %s4525, 2
        %s4527 = scalar_lea.vmem [#allocation34], %s4526
        %s4528 = sand.u32 %s91, 1
        %s4529 = scalar_lea.sflag [#allocation36], %s4528
        %s4530 = sand.u32 %s832, 1
        %s4531 = scalar_lea.vmem [#allocation35], %s4530
        %s4532 = sand.u32 %s91, 1
        %s4533 = scalar_lea.sflag [#allocation36], %s4532
        %s4534 = sand.u32 %s858, 1
        %s4535 = scalar_lea.vmem [#allocation37], %s4534
        // Predicated region
        $region237: #{tpu_custom_call.1} parent=139 // pred_check
          %p4536 = pneg %p816
        $region238: #{tpu_custom_call.1} parent=139 // pred_check_branch
          %4538 = sbr.rel (%p4536) target = $region240
        $region239: #{tpu_custom_call.1} parent=139 // pred_region
          %s4540 = ssub.s32 32, 32
          %4541 = vsyncadd %s4524, %s4540
          %s4542 = smul.addr %s95, 2
          %s4543 = smul.addr %s4542, 16
          %s4544 = scalar_lea.hbm %s61, %s4543
          %s4546 = sshll.u32 %s4527, 4
          %s4547 = int_to_ptr.vmem [resolvable:$true] %s4546
          %4549 = dma.vmem_to_hbm [thread:$0]  %s4547, 32, %s4544, %s4524
        $region240: #{tpu_custom_call.1} parent=139 // pred_fallthru
          _
        // Predicated region
        $region241: #{tpu_custom_call.1} parent=139 // pred_check
          %p4550 = pneg %p842
        $region242: #{tpu_custom_call.1} parent=139 // pred_check_branch
          %4552 = sbr.rel (%p4550) target = $region244
        $region243: #{tpu_custom_call.1} parent=139 // pred_region
          %s4554 = ssub.s32 16, 16
          %4555 = vsyncadd %s4529, %s4554
          %s4556 = smul.addr %s95, 16
          %s4557 = scalar_lea.hbm %s63, %s4556
          %s4559 = sshll.u32 %s4531, 4
          %s4560 = int_to_ptr.vmem [resolvable:$true] %s4559
          %4562 = dma.vmem_to_hbm [thread:$0]  %s4560, 16, %s4557, %s4529
        $region244: #{tpu_custom_call.1} parent=139 // pred_fallthru
          _
        // Predicated region
        $region245: #{tpu_custom_call.1} parent=139 // pred_check
          %p4563 = pneg %p868
        $region246: #{tpu_custom_call.1} parent=139 // pred_check_branch
          %4565 = sbr.rel (%p4563) target = $region248
        $region247: #{tpu_custom_call.1} parent=139 // pred_region
          %s4567 = ssub.s32 16, 16
          %4568 = vsyncadd %s4533, %s4567
          %s4569 = smul.addr %s95, 16
          %s4570 = scalar_lea.hbm %s65, %s4569
          %s4572 = sshll.u32 %s4535, 4
          %s4573 = int_to_ptr.vmem [resolvable:$true] %s4572
          %4575 = dma.vmem_to_hbm [thread:$0]  %s4573, 16, %s4570, %s4533
        $region248: #{tpu_custom_call.1} parent=139 // pred_fallthru
          _
      $region140: #{tpu_custom_call.1} parent=5 // pred_fallthru
        _
      %p4576 = scmp.le.s32.totalorder 2, %s86
      // Predicated region
      $region249: #{tpu_custom_call.1} parent=5 // pred_check
        %p4577 = pneg %p4576
      $region250: #{tpu_custom_call.1} parent=5 // pred_check_branch
        %4579 = sbr.rel (%p4577) target = $region252
      $region251: #{tpu_custom_call.1} parent=5 // pred_region
        %s4580 = ssub.s32 %s86, 2
        // Predicated region
        $region253: #{tpu_custom_call.1} parent=251 // pred_check
          %p4581 = pneg %p822
        $region254: #{tpu_custom_call.1} parent=251 // pred_check_branch
          %4583 = sbr.rel (%p4581) target = $region256
        $region255: #{tpu_custom_call.1} parent=251 // pred_region
          %s4584 = sand.u32 %s807, 1
          %s4585 = scalar_lea.sflag [#allocation5], %s4584
          %s4586 = sand.u32 %s807, 1
          %s4587 = smul.addr %s4586, 2
          %s4588 = scalar_lea.vmem [#allocation34], %s4587
          %4589 = dma.done %s4585, 32
        $region256: #{tpu_custom_call.1} parent=251 // pred_fallthru
          _
        // Predicated region
        $region257: #{tpu_custom_call.1} parent=251 // pred_check
          %p4590 = pneg %p848
        $region258: #{tpu_custom_call.1} parent=251 // pred_check_branch
          %4592 = sbr.rel (%p4590) target = $region260
        $region259: #{tpu_custom_call.1} parent=251 // pred_region
          %s4593 = sand.u32 %s92, 1
          %s4594 = scalar_lea.sflag [#allocation36], %s4593
          %s4595 = sand.u32 %s833, 1
          %s4596 = scalar_lea.vmem [#allocation35], %s4595
          %4597 = dma.done %s4594, 16
        $region260: #{tpu_custom_call.1} parent=251 // pred_fallthru
          _
        // Predicated region
        $region261: #{tpu_custom_call.1} parent=251 // pred_check
          %p4598 = pneg %p874
        $region262: #{tpu_custom_call.1} parent=251 // pred_check_branch
          %4600 = sbr.rel (%p4598) target = $region264
        $region263: #{tpu_custom_call.1} parent=251 // pred_region
          %s4601 = sand.u32 %s92, 1
          %s4602 = scalar_lea.sflag [#allocation36], %s4601
          %s4603 = sand.u32 %s859, 1
          %s4604 = scalar_lea.vmem [#allocation37], %s4603
          %4605 = dma.done %s4602, 16
        $region264: #{tpu_custom_call.1} parent=251 // pred_fallthru
          _
      $region252: #{tpu_custom_call.1} parent=5 // pred_fallthru
        _
    $region6: #{tpu_custom_call.1} parent=1 // loop_footer
      %s90 = sadd.s32 1, %s86
    $region7: #{tpu_custom_call.1} parent=1 // loop_footer_branch
      %85 = sbr.rel target = $region3
    $region8: #{tpu_custom_call.1} parent=1 // loop_exit
      _
    %4606 = vsyncpa [#allocation4], 1
    %s4607 = scalar_lea.sflag [#allocation4], 1
    %4608 = vsyncpa %s4607, 1
    %4609 = vsyncpa [#allocation7], 1
    %4610 = vsyncpa [#allocation18], 1
    %4611 = vsyncpa [#allocation21], 1
    %4612 = vsyncpa [#allocation24], 1
    %4613 = vsyncpa [#allocation27], 1
    %4614 = vsyncpa [#allocation30], 1
    %4615 = vsyncpa [#allocation33], 1
    %4616 = vsyncpa [#allocation5], 1
    %s4617 = scalar_lea.sflag [#allocation5], 1
    %4618 = vsyncpa %s4617, 1
    %4619 = vsyncpa [#allocation36], 1
    %s4620 = scalar_lea.sflag [#allocation36], 1
    %4621 = vsyncpa %s4620, 1

</llo_original>
